<compile_context>
chip_gen: v7x
topology: tpu7x:2x2x1
jax: 0.10.0
libtpu: 0.0.40
codegen_flags: <defaults>
</compile_context>

<pallas_src>
import functools

import jax
import jax.numpy as jnp
from jax.experimental import pallas as pl
from jax.experimental.pallas import tpu as pltpu

EPS = 1e-5

# Channel pieces (indices into the running feature list [x, x1, x2, x3]) that
# make up each Conv_Block's input concatenation (PyTorch concat order):
#   d1: x                       d2: cat(x, x1)
#   d3: cat(x2, x, x1, x1)      d4: cat(x3, x2, x, x1, x1, x, x1, x1)
_BLOCK_PIECES = ((0,), (0, 1), (2, 0, 1, 1), (3, 2, 0, 1, 1, 0, 1, 1))


# ------------------------- fused Pallas kernel -------------------------

def _dense_block_kernel(x_ref, masks_ref, s1_ref, b1_ref, w1_ref, b2_ref,
                        w3_ref, b3_ref, out_ref, slab1_ref, slab3_ref,
                        *, H, W, C):
    """One grid step = one image.  Layout: channels on sublanes, H*W on lanes.

    out_ref rows hold, in order, [x4 | x3 | x2 | x1 | x] (the module's output
    concat).  Features are written there as soon as they are produced and are
    re-read on demand when building later blocks' 1x1 input slabs.
    """
    HW = H * W
    # Row offset of feature id f (0=x, 1=x1, ..., 4=x4) inside out_ref.
    row_of = (4 * C, 3 * C, 2 * C, 1 * C, 0)

    # The input image is the last channel group of the output concat.
    out_ref[pl.ds(4 * C, C), :] = x_ref[...].astype(jnp.float32)

    for blk, piece_ids in enumerate(_BLOCK_PIECES):
        kc = len(piece_ids) * C

        # ---- BN1 -> ReLU -> Conv1x1 (+ folded BN2 scale) : ONE wide-K matmul
        for j, fid in enumerate(piece_ids):
            slab1_ref[pl.ds(j * C, C), :] = out_ref[pl.ds(row_of[fid], C), :]
        s1 = s1_ref[blk]                                     # (8C, 1)
        b1 = b1_ref[blk]                                     # (8C, 1)
        u = jnp.maximum(slab1_ref[pl.ds(0, kc), :] * s1[:kc] + b1[:kc], 0.0)
        y = jnp.dot(w1_ref[blk][:, :kc], u,
                    preferred_element_type=jnp.float32)      # (C, HW)
        y = jnp.maximum(y + b2_ref[blk], 0.0)                # folded BN2 shift

        # ---- Conv3x3 (padding=1) : ONE matmul over a (9C, HW) im2col slab --
        # tap (dy,dx) needs t[:, p] = y[:, p + dy*W + dx]; jnp.roll-style
        # semantics -> shift = -(dy*W+dx) (mod HW); out-of-image positions are
        # zeroed by the precomputed per-tap masks.
        tap = 0
        for dy in (-1, 0, 1):
            for dx in (-1, 0, 1):
                off = dy * W + dx
                if off == 0:
                    t = y
                else:
                    t = pltpu.roll(y, (-off) % HW, axis=1) * masks_ref[tap]
                slab3_ref[pl.ds(tap * C, C), :] = t
                tap += 1
        z = jnp.dot(w3_ref[blk], slab3_ref[...],
                    preferred_element_type=jnp.float32) + b3_ref[blk]

        out_ref[pl.ds(row_of[blk + 1], C), :] = z.astype(out_ref.dtype)


# ------------------------- kernel wrapper -------------------------

def dense_block_pallas(x2d, masks, packed, H, W):
    N, C, HW = x2d.shape
    kernel = functools.partial(_dense_block_kernel, H=H, W=W, C=C)

    def const_spec(a):
        return pl.BlockSpec(a.shape, lambda n: (0,) * a.ndim)

    return pl.pallas_call(
        kernel,
        out_shape=jax.ShapeDtypeStruct((N, 5 * C, HW), jnp.float32),
        grid_spec=pltpu.PrefetchScalarGridSpec(
            num_scalar_prefetch=0,
            grid=(N,),
            in_specs=[
                pl.BlockSpec((None, C, HW), lambda n: (n, 0, 0)),
                const_spec(masks),
                const_spec(packed["s1"]), const_spec(packed["b1"]),
                const_spec(packed["w1"]), const_spec(packed["b2"]),
                const_spec(packed["w3"]), const_spec(packed["b3"]),
            ],
            out_specs=pl.BlockSpec((None, 5 * C, HW), lambda n: (n, 0, 0)),
            scratch_shapes=[
                pltpu.VMEM((8 * C, HW), jnp.float32),   # 1x1 concat slab
                pltpu.VMEM((9 * C, HW), jnp.float32),   # 3x3 im2col slab
            ],
        ),
        compiler_params=pltpu.CompilerParams(
            dimension_semantics=("parallel",),
            vmem_limit_bytes=64 * 1024 * 1024),
    )(x2d, masks, packed["s1"], packed["b1"], packed["w1"],
      packed["b2"], packed["w3"], packed["b3"])


# ------------------------- host-side packing / glue -------------------------

def _make_tap_masks(H, W):
    """(9, 1, H*W) f32 validity masks for the 9 conv taps, dy/dx in {-1,0,1}."""
    hw = H * W
    h_idx = jnp.arange(hw, dtype=jnp.int32) // W
    w_idx = jnp.arange(hw, dtype=jnp.int32) % W
    rows = []
    for dy in (-1, 0, 1):
        for dx in (-1, 0, 1):
            ok = ((h_idx + dy >= 0) & (h_idx + dy < H) &
                  (w_idx + dx >= 0) & (w_idx + dx < W))
            rows.append(ok.astype(jnp.float32))
    return jnp.stack(rows, 0).reshape(9, 1, hw)


def _pack_params(params, C):
    """Per-block weight slabs for the (C, HW) layout.

    BN2 scale folded into the 1x1 weights, conv1 bias folded into b2; the 1x1
    weights / BN1 params are padded on the input-channel axis to the largest
    block (8C) so they stack; 3x3 weights flatten to (C, 9*C), tap = 3*ky+kx.
    """
    KMAX = 8 * C
    s1_l, b1_l, w1_l, b2_l, w3_l, b3_l = [], [], [], [], [], []
    for name in ("d1", "d2", "d3", "d4"):
        p = params[name]
        cin = p["w1"].shape[0]
        pad = KMAX - cin
        w1_eff = (p["w1"] * p["s2"][None, :]).T            # (C, cin)
        w1_l.append(jnp.pad(w1_eff, ((0, 0), (0, pad))))
        s1_l.append(jnp.pad(p["s1"], (0, pad)).reshape(KMAX, 1))
        b1_l.append(jnp.pad(p["b1"], (0, pad)).reshape(KMAX, 1))
        b2_l.append(p["b2"].reshape(C, 1))
        b3_l.append(p["b3"].reshape(C, 1))
        # (O, I, 3, 3) -> (O, ky, kx, I) -> (O, 9*I)
        w3_l.append(jnp.transpose(p["w3"], (0, 2, 3, 1)).reshape(C, 9 * C))
    return dict(
        s1=jnp.stack(s1_l, 0),          # (4, 8C, 1)
        b1=jnp.stack(b1_l, 0),          # (4, 8C, 1)
        w1=jnp.stack(w1_l, 0),          # (4, C, 8C)
        b2=jnp.stack(b2_l, 0),          # (4, C, 1)
        w3=jnp.stack(w3_l, 0),          # (4, C, 9C)
        b3=jnp.stack(b3_l, 0),          # (4, C, 1)
    )


@jax.jit
def dense_block_forward(x_nchw, params):
    N, C, H, W = x_nchw.shape
    x2d = x_nchw.reshape(N, C, H * W)                # no layout transpose
    masks = _make_tap_masks(H, W)
    packed = _pack_params(params, C)
    out = dense_block_pallas(x2d, masks, packed, H, W)   # (N, 5C, HW)
    return out.reshape(N, 5 * C, H, W)               # pure reshape to NCHW


# ------------------------- pure-JAX reference -------------------------

def _ref_conv_block(x, p):
    h = jnp.maximum(x * p["s1"].reshape(1, 1, 1, -1)
                    + p["b1"].reshape(1, 1, 1, -1), 0.0)
    y = jnp.einsum("nhwi,io->nhwo", h, p["w1"])
    y = jnp.maximum(y * p["s2"].reshape(1, 1, 1, -1)
                    + p["b2"].reshape(1, 1, 1, -1), 0.0)
    out = jax.lax.conv_general_dilated(
        y, p["w3"], window_strides=(1, 1), padding=((1, 1), (1, 1)),
        dimension_numbers=("NHWC", "OIHW", "NHWC"))
    return out + p["b3"].reshape(1, 1, 1, -1)


def dense_block_reference(x_nchw, params):
    x = jnp.transpose(x_nchw, (0, 2, 3, 1))
    x1 = _ref_conv_block(x, params["d1"])
    xc1 = jnp.concatenate([x, x1], axis=-1)
    x2 = _ref_conv_block(xc1, params["d2"])
    xc2 = jnp.concatenate([x2, xc1, x1], axis=-1)
    x3 = _ref_conv_block(xc2, params["d3"])
    xc3 = jnp.concatenate([x3, xc2, xc1, x1], axis=-1)
    x4 = _ref_conv_block(xc3, params["d4"])
    out = jnp.concatenate([x4, x3, x2, x1, x], axis=-1)
    return jnp.transpose(out, (0, 3, 1, 2))


# ------------------------- deterministic parameters -------------------------

def make_block_params(key, cin, cout):
    ks = jax.random.split(key, 12)
    u = lambda k, s: jax.random.uniform(k, s, jnp.float32, 0.5, 1.5)
    n = lambda k, s, sc: jax.random.normal(k, s, jnp.float32) * sc

    g1, be1 = u(ks[0], (cin,)), n(ks[1], (cin,), 0.1)
    m1, v1 = n(ks[2], (cin,), 0.1), u(ks[3], (cin,))
    w1 = n(ks[4], (cout, cin), 1.0 / float(cin) ** 0.5)   # Conv2d(cin,cout,1)
    bc1 = n(ks[5], (cout,), 0.05)
    g2, be2 = u(ks[6], (cout,)), n(ks[7], (cout,), 0.1)
    m2, v2 = n(ks[8], (cout,), 0.1), u(ks[9], (cout,))
    w3 = n(ks[10], (cout, cout, 3, 3), 1.0 / float(9 * cout) ** 0.5)
    bc3 = n(ks[11], (cout,), 0.05)

    s1 = g1 / jnp.sqrt(v1 + EPS)
    b1 = be1 - m1 * s1
    s2 = g2 / jnp.sqrt(v2 + EPS)
    b2 = be2 - m2 * s2 + bc1 * s2        # fold 1x1-conv bias through BN2
    return dict(
        w1=jnp.transpose(w1),            # (cin, cout)
        s1=s1, b1=b1, s2=s2, b2=b2,
        w3=w3,                           # (O, I, 3, 3)
        b3=bc3,
    )


def make_dense_params(key, c):
    k1, k2, k3, k4 = jax.random.split(key, 4)
    return dict(
        d1=make_block_params(k1, 1 * c, c),
        d2=make_block_params(k2, 2 * c, c),
        d3=make_block_params(k3, 4 * c, c),
        d4=make_block_params(k4, 8 * c, c),
    )


# ------------------------- main -------------------------

if __name__ == "__main__":
    N, C, H, W = 2, 4, 16, 16
    key = jax.random.PRNGKey(0)
    kx, kp = jax.random.split(key)
    x = jax.random.normal(kx, (N, C, H, W), jnp.float32)   # NCHW, like PyTorch
    params = make_dense_params(kp, C)

    out = jax.block_until_ready(dense_block_forward(x, params))
    assert out.shape == (N, 5 * C, H, W), out.shape

    ref = dense_block_reference(x, params)
    err = float(jnp.max(jnp.abs(out - ref)))
    assert err < 1e-3, f"mismatch vs reference: {err}"
    print("KERNEL_OK")
</pallas_src>

<mosaic_0001>
module attributes {stable_mosaic.version = 11 : i64} {
  func.func @_dense_block_kernel(%arg0: i32, %arg1: memref<1x4x256xf32, #tpu.memory_space<vmem>>, %arg2: memref<9x1x256xf32, #tpu.memory_space<vmem>>, %arg3: memref<4x32x1xf32, #tpu.memory_space<vmem>>, %arg4: memref<4x32x1xf32, #tpu.memory_space<vmem>>, %arg5: memref<4x4x32xf32, #tpu.memory_space<vmem>>, %arg6: memref<4x4x1xf32, #tpu.memory_space<vmem>>, %arg7: memref<4x4x36xf32, #tpu.memory_space<vmem>>, %arg8: memref<4x4x1xf32, #tpu.memory_space<vmem>>, %arg9: memref<1x20x256xf32, #tpu.memory_space<vmem>>, %arg10: memref<32x256xf32, #tpu.memory_space<vmem>>, %arg11: memref<36x256xf32, #tpu.memory_space<vmem>>) attributes {dimension_semantics = [#tpu.dimension_semantics<parallel>], iteration_bounds = array<i64: 2>, scalar_prefetch = 0 : i64, scratch_operands = 2 : i64, tpu.core_type = #tpu.core_type<tc>, window_params = [{transform_indices = @transform_0, window_bounds = array<i64: 1, 4, 256>}, {pipeline_mode = #tpu.pipeline_mode<synchronous>, transform_indices = @transform_1, window_bounds = array<i64: 9, 1, 256>}, {pipeline_mode = #tpu.pipeline_mode<synchronous>, transform_indices = @transform_2, window_bounds = array<i64: 4, 32, 1>}, {pipeline_mode = #tpu.pipeline_mode<synchronous>, transform_indices = @transform_3, window_bounds = array<i64: 4, 32, 1>}, {pipeline_mode = #tpu.pipeline_mode<synchronous>, transform_indices = @transform_4, window_bounds = array<i64: 4, 4, 32>}, {pipeline_mode = #tpu.pipeline_mode<synchronous>, transform_indices = @transform_5, window_bounds = array<i64: 4, 4, 1>}, {pipeline_mode = #tpu.pipeline_mode<synchronous>, transform_indices = @transform_6, window_bounds = array<i64: 4, 4, 36>}, {pipeline_mode = #tpu.pipeline_mode<synchronous>, transform_indices = @transform_7, window_bounds = array<i64: 4, 4, 1>}, {transform_indices = @transform_8, window_bounds = array<i64: 1, 20, 256>}]} {
    %c0 = arith.constant 0 : index
    %c0_0 = arith.constant 0 : index
    %c0_1 = arith.constant 0 : index
    %0 = vector.load %arg1[%c0, %c0_0, %c0_1] : memref<1x4x256xf32, #tpu.memory_space<vmem>>, vector<1x4x256xf32>
    %1 = vector.shape_cast %0 : vector<1x4x256xf32> to vector<4x256xf32>
    %c0_2 = arith.constant 0 : index
    %c16 = arith.constant 16 : index
    %c0_3 = arith.constant 0 : index
    %2 = vector.load %arg9[%c0_2, %c16, %c0_3] : memref<1x20x256xf32, #tpu.memory_space<vmem>>, vector<1x4x256xf32>
    %3 = vector.shape_cast %2 : vector<1x4x256xf32> to vector<4x256xf32>
    %4 = vector.shape_cast %1 : vector<4x256xf32> to vector<1x4x256xf32>
    tpu.vector_store %arg9[%c0_2, %c16, %c0_3], %4 {strides = array<i32>} : memref<1x20x256xf32, #tpu.memory_space<vmem>>, vector<1x4x256xf32>,
    %c0_4 = arith.constant 0 : index
    %c16_5 = arith.constant 16 : index
    %c0_6 = arith.constant 0 : index
    %5 = vector.load %arg9[%c0_4, %c16_5, %c0_6] : memref<1x20x256xf32, #tpu.memory_space<vmem>>, vector<1x4x256xf32>
    %6 = vector.shape_cast %5 : vector<1x4x256xf32> to vector<4x256xf32>
    %c0_7 = arith.constant 0 : index
    %c0_8 = arith.constant 0 : index
    %7 = vector.load %arg10[%c0_7, %c0_8] : memref<32x256xf32, #tpu.memory_space<vmem>>, vector<4x256xf32>
    tpu.vector_store %arg10[%c0_7, %c0_8], %6 {strides = array<i32>} : memref<32x256xf32, #tpu.memory_space<vmem>>, vector<4x256xf32>,
    %c0_9 = arith.constant 0 : index
    %c0_10 = arith.constant 0 : index
    %c0_11 = arith.constant 0 : index
    %8 = vector.load %arg3[%c0_9, %c0_10, %c0_11] : memref<4x32x1xf32, #tpu.memory_space<vmem>>, vector<1x32x1xf32>
    %9 = vector.shape_cast %8 : vector<1x32x1xf32> to vector<32x1xf32>
    %c0_12 = arith.constant 0 : index
    %c0_13 = arith.constant 0 : index
    %c0_14 = arith.constant 0 : index
    %10 = vector.load %arg4[%c0_12, %c0_13, %c0_14] : memref<4x32x1xf32, #tpu.memory_space<vmem>>, vector<1x32x1xf32>
    %11 = vector.shape_cast %10 : vector<1x32x1xf32> to vector<32x1xf32>
    %c0_15 = arith.constant 0 : index
    %c0_16 = arith.constant 0 : index
    %12 = vector.load %arg10[%c0_15, %c0_16] : memref<32x256xf32, #tpu.memory_space<vmem>>, vector<4x256xf32>
    %13 = vector.extract_strided_slice %9 {offsets = [0, 0], sizes = [4, 1], strides = [1, 1]} : vector<32x1xf32> to vector<4x1xf32>
    %14 = vector.broadcast %13 : vector<4x1xf32> to vector<4x256xf32>
    %15 = arith.mulf %12, %14 : vector<4x256xf32>
    %16 = vector.extract_strided_slice %11 {offsets = [0, 0], sizes = [4, 1], strides = [1, 1]} : vector<32x1xf32> to vector<4x1xf32>
    %17 = vector.broadcast %16 : vector<4x1xf32> to vector<4x256xf32>
    %18 = arith.addf %15, %17 : vector<4x256xf32>
    %cst = arith.constant 0.000000e+00 : f32
    %19 = vector.broadcast %cst : f32 to vector<4x256xf32>
    %20 = arith.maximumf %18, %19 : vector<4x256xf32>
    %c0_17 = arith.constant 0 : index
    %c0_18 = arith.constant 0 : index
    %c0_19 = arith.constant 0 : index
    %21 = vector.load %arg5[%c0_17, %c0_18, %c0_19] : memref<4x4x32xf32, #tpu.memory_space<vmem>>, vector<1x4x32xf32>
    %22 = vector.shape_cast %21 : vector<1x4x32xf32> to vector<4x32xf32>
    %23 = vector.extract_strided_slice %22 {offsets = [0, 0], sizes = [4, 4], strides = [1, 1]} : vector<4x32xf32> to vector<4x4xf32>
    %cst_20 = arith.constant dense<0.000000e+00> : vector<4x256xf32>
    %24 = tpu.matmul %23, %20, %cst_20 {dimension_numbers = #tpu.dot_dimension_numbers<[1], [0], [0], [1], [0, 0, 1, 1], [], []>} : vector<4x4xf32>, vector<4x256xf32>, vector<4x256xf32> -> vector<4x256xf32>
    %c0_21 = arith.constant 0 : index
    %c0_22 = arith.constant 0 : index
    %c0_23 = arith.constant 0 : index
    %25 = vector.load %arg6[%c0_21, %c0_22, %c0_23] : memref<4x4x1xf32, #tpu.memory_space<vmem>>, vector<1x4x1xf32>
    %26 = vector.shape_cast %25 : vector<1x4x1xf32> to vector<4x1xf32>
    %27 = vector.broadcast %26 : vector<4x1xf32> to vector<4x256xf32>
    %28 = arith.addf %24, %27 : vector<4x256xf32>
    %cst_24 = arith.constant 0.000000e+00 : f32
    %29 = vector.broadcast %cst_24 : f32 to vector<4x256xf32>
    %30 = arith.maximumf %28, %29 : vector<4x256xf32>
    %c17_i32 = arith.constant 17 : i32
    %31 = tpu.dynamic_rotate %30 by %c17_i32 dim 1 : vector<4x256xf32>, i32 -> vector<4x256xf32>
    %c0_25 = arith.constant 0 : index
    %c0_26 = arith.constant 0 : index
    %c0_27 = arith.constant 0 : index
    %32 = vector.load %arg2[%c0_25, %c0_26, %c0_27] : memref<9x1x256xf32, #tpu.memory_space<vmem>>, vector<1x1x256xf32>
    %33 = vector.shape_cast %32 : vector<1x1x256xf32> to vector<1x256xf32>
    %34 = vector.broadcast %33 : vector<1x256xf32> to vector<4x256xf32>
    %35 = arith.mulf %31, %34 : vector<4x256xf32>
    %c0_28 = arith.constant 0 : index
    %c0_29 = arith.constant 0 : index
    %36 = vector.load %arg11[%c0_28, %c0_29] : memref<36x256xf32, #tpu.memory_space<vmem>>, vector<4x256xf32>
    tpu.vector_store %arg11[%c0_28, %c0_29], %35 {strides = array<i32>} : memref<36x256xf32, #tpu.memory_space<vmem>>, vector<4x256xf32>,
    %c16_i32 = arith.constant 16 : i32
    %37 = tpu.dynamic_rotate %30 by %c16_i32 dim 1 : vector<4x256xf32>, i32 -> vector<4x256xf32>
    %c1 = arith.constant 1 : index
    %c0_30 = arith.constant 0 : index
    %c0_31 = arith.constant 0 : index
    %38 = vector.load %arg2[%c1, %c0_30, %c0_31] : memref<9x1x256xf32, #tpu.memory_space<vmem>>, vector<1x1x256xf32>
    %39 = vector.shape_cast %38 : vector<1x1x256xf32> to vector<1x256xf32>
    %40 = vector.broadcast %39 : vector<1x256xf32> to vector<4x256xf32>
    %41 = arith.mulf %37, %40 : vector<4x256xf32>
    %c4 = arith.constant 4 : index
    %c0_32 = arith.constant 0 : index
    %42 = vector.load %arg11[%c4, %c0_32] : memref<36x256xf32, #tpu.memory_space<vmem>>, vector<4x256xf32>
    tpu.vector_store %arg11[%c4, %c0_32], %41 {strides = array<i32>} : memref<36x256xf32, #tpu.memory_space<vmem>>, vector<4x256xf32>,
    %c15_i32 = arith.constant 15 : i32
    %43 = tpu.dynamic_rotate %30 by %c15_i32 dim 1 : vector<4x256xf32>, i32 -> vector<4x256xf32>
    %c2 = arith.constant 2 : index
    %c0_33 = arith.constant 0 : index
    %c0_34 = arith.constant 0 : index
    %44 = vector.load %arg2[%c2, %c0_33, %c0_34] : memref<9x1x256xf32, #tpu.memory_space<vmem>>, vector<1x1x256xf32>
    %45 = vector.shape_cast %44 : vector<1x1x256xf32> to vector<1x256xf32>
    %46 = vector.broadcast %45 : vector<1x256xf32> to vector<4x256xf32>
    %47 = arith.mulf %43, %46 : vector<4x256xf32>
    %c8 = arith.constant 8 : index
    %c0_35 = arith.constant 0 : index
    %48 = vector.load %arg11[%c8, %c0_35] : memref<36x256xf32, #tpu.memory_space<vmem>>, vector<4x256xf32>
    tpu.vector_store %arg11[%c8, %c0_35], %47 {strides = array<i32>} : memref<36x256xf32, #tpu.memory_space<vmem>>, vector<4x256xf32>,
    %c1_i32 = arith.constant 1 : i32
    %49 = tpu.dynamic_rotate %30 by %c1_i32 dim 1 : vector<4x256xf32>, i32 -> vector<4x256xf32>
    %c3 = arith.constant 3 : index
    %c0_36 = arith.constant 0 : index
    %c0_37 = arith.constant 0 : index
    %50 = vector.load %arg2[%c3, %c0_36, %c0_37] : memref<9x1x256xf32, #tpu.memory_space<vmem>>, vector<1x1x256xf32>
    %51 = vector.shape_cast %50 : vector<1x1x256xf32> to vector<1x256xf32>
    %52 = vector.broadcast %51 : vector<1x256xf32> to vector<4x256xf32>
    %53 = arith.mulf %49, %52 : vector<4x256xf32>
    %c12 = arith.constant 12 : index
    %c0_38 = arith.constant 0 : index
    %54 = vector.load %arg11[%c12, %c0_38] : memref<36x256xf32, #tpu.memory_space<vmem>>, vector<4x256xf32>
    tpu.vector_store %arg11[%c12, %c0_38], %53 {strides = array<i32>} : memref<36x256xf32, #tpu.memory_space<vmem>>, vector<4x256xf32>,
    %c16_39 = arith.constant 16 : index
    %c0_40 = arith.constant 0 : index
    %55 = vector.load %arg11[%c16_39, %c0_40] : memref<36x256xf32, #tpu.memory_space<vmem>>, vector<4x256xf32>
    tpu.vector_store %arg11[%c16_39, %c0_40], %30 {strides = array<i32>} : memref<36x256xf32, #tpu.memory_space<vmem>>, vector<4x256xf32>,
    %c255_i32 = arith.constant 255 : i32
    %56 = tpu.dynamic_rotate %30 by %c255_i32 dim 1 : vector<4x256xf32>, i32 -> vector<4x256xf32>
    %c5 = arith.constant 5 : index
    %c0_41 = arith.constant 0 : index
    %c0_42 = arith.constant 0 : index
    %57 = vector.load %arg2[%c5, %c0_41, %c0_42] : memref<9x1x256xf32, #tpu.memory_space<vmem>>, vector<1x1x256xf32>
    %58 = vector.shape_cast %57 : vector<1x1x256xf32> to vector<1x256xf32>
    %59 = vector.broadcast %58 : vector<1x256xf32> to vector<4x256xf32>
    %60 = arith.mulf %56, %59 : vector<4x256xf32>
    %c20 = arith.constant 20 : index
    %c0_43 = arith.constant 0 : index
    %61 = vector.load %arg11[%c20, %c0_43] : memref<36x256xf32, #tpu.memory_space<vmem>>, vector<4x256xf32>
    tpu.vector_store %arg11[%c20, %c0_43], %60 {strides = array<i32>} : memref<36x256xf32, #tpu.memory_space<vmem>>, vector<4x256xf32>,
    %c241_i32 = arith.constant 241 : i32
    %62 = tpu.dynamic_rotate %30 by %c241_i32 dim 1 : vector<4x256xf32>, i32 -> vector<4x256xf32>
    %c6 = arith.constant 6 : index
    %c0_44 = arith.constant 0 : index
    %c0_45 = arith.constant 0 : index
    %63 = vector.load %arg2[%c6, %c0_44, %c0_45] : memref<9x1x256xf32, #tpu.memory_space<vmem>>, vector<1x1x256xf32>
    %64 = vector.shape_cast %63 : vector<1x1x256xf32> to vector<1x256xf32>
    %65 = vector.broadcast %64 : vector<1x256xf32> to vector<4x256xf32>
    %66 = arith.mulf %62, %65 : vector<4x256xf32>
    %c24 = arith.constant 24 : index
    %c0_46 = arith.constant 0 : index
    %67 = vector.load %arg11[%c24, %c0_46] : memref<36x256xf32, #tpu.memory_space<vmem>>, vector<4x256xf32>
    tpu.vector_store %arg11[%c24, %c0_46], %66 {strides = array<i32>} : memref<36x256xf32, #tpu.memory_space<vmem>>, vector<4x256xf32>,
    %c240_i32 = arith.constant 240 : i32
    %68 = tpu.dynamic_rotate %30 by %c240_i32 dim 1 : vector<4x256xf32>, i32 -> vector<4x256xf32>
    %c7 = arith.constant 7 : index
    %c0_47 = arith.constant 0 : index
    %c0_48 = arith.constant 0 : index
    %69 = vector.load %arg2[%c7, %c0_47, %c0_48] : memref<9x1x256xf32, #tpu.memory_space<vmem>>, vector<1x1x256xf32>
    %70 = vector.shape_cast %69 : vector<1x1x256xf32> to vector<1x256xf32>
    %71 = vector.broadcast %70 : vector<1x256xf32> to vector<4x256xf32>
    %72 = arith.mulf %68, %71 : vector<4x256xf32>
    %c28 = arith.constant 28 : index
    %c0_49 = arith.constant 0 : index
    %73 = vector.load %arg11[%c28, %c0_49] : memref<36x256xf32, #tpu.memory_space<vmem>>, vector<4x256xf32>
    tpu.vector_store %arg11[%c28, %c0_49], %72 {strides = array<i32>} : memref<36x256xf32, #tpu.memory_space<vmem>>, vector<4x256xf32>,
    %c239_i32 = arith.constant 239 : i32
    %74 = tpu.dynamic_rotate %30 by %c239_i32 dim 1 : vector<4x256xf32>, i32 -> vector<4x256xf32>
    %c8_50 = arith.constant 8 : index
    %c0_51 = arith.constant 0 : index
    %c0_52 = arith.constant 0 : index
    %75 = vector.load %arg2[%c8_50, %c0_51, %c0_52] : memref<9x1x256xf32, #tpu.memory_space<vmem>>, vector<1x1x256xf32>
    %76 = vector.shape_cast %75 : vector<1x1x256xf32> to vector<1x256xf32>
    %77 = vector.broadcast %76 : vector<1x256xf32> to vector<4x256xf32>
    %78 = arith.mulf %74, %77 : vector<4x256xf32>
    %c32 = arith.constant 32 : index
    %c0_53 = arith.constant 0 : index
    %79 = vector.load %arg11[%c32, %c0_53] : memref<36x256xf32, #tpu.memory_space<vmem>>, vector<4x256xf32>
    tpu.vector_store %arg11[%c32, %c0_53], %78 {strides = array<i32>} : memref<36x256xf32, #tpu.memory_space<vmem>>, vector<4x256xf32>,
    %c0_54 = arith.constant 0 : index
    %c0_55 = arith.constant 0 : index
    %c0_56 = arith.constant 0 : index
    %80 = vector.load %arg7[%c0_54, %c0_55, %c0_56] : memref<4x4x36xf32, #tpu.memory_space<vmem>>, vector<1x4x36xf32>
    %81 = vector.shape_cast %80 : vector<1x4x36xf32> to vector<4x36xf32>
    %c0_57 = arith.constant 0 : index
    %c0_58 = arith.constant 0 : index
    %82 = vector.load %arg11[%c0_57, %c0_58] : memref<36x256xf32, #tpu.memory_space<vmem>>, vector<36x256xf32>
    %cst_59 = arith.constant dense<0.000000e+00> : vector<4x256xf32>
    %83 = tpu.matmul %81, %82, %cst_59 {dimension_numbers = #tpu.dot_dimension_numbers<[1], [0], [0], [1], [0, 0, 1, 1], [], []>} : vector<4x36xf32>, vector<36x256xf32>, vector<4x256xf32> -> vector<4x256xf32>
    %c0_60 = arith.constant 0 : index
    %c0_61 = arith.constant 0 : index
    %c0_62 = arith.constant 0 : index
    %84 = vector.load %arg8[%c0_60, %c0_61, %c0_62] : memref<4x4x1xf32, #tpu.memory_space<vmem>>, vector<1x4x1xf32>
    %85 = vector.shape_cast %84 : vector<1x4x1xf32> to vector<4x1xf32>
    %86 = vector.broadcast %85 : vector<4x1xf32> to vector<4x256xf32>
    %87 = arith.addf %83, %86 : vector<4x256xf32>
    %c0_63 = arith.constant 0 : index
    %c12_64 = arith.constant 12 : index
    %c0_65 = arith.constant 0 : index
    %88 = vector.load %arg9[%c0_63, %c12_64, %c0_65] : memref<1x20x256xf32, #tpu.memory_space<vmem>>, vector<1x4x256xf32>
    %89 = vector.shape_cast %88 : vector<1x4x256xf32> to vector<4x256xf32>
    %90 = vector.shape_cast %87 : vector<4x256xf32> to vector<1x4x256xf32>
    tpu.vector_store %arg9[%c0_63, %c12_64, %c0_65], %90 {strides = array<i32>} : memref<1x20x256xf32, #tpu.memory_space<vmem>>, vector<1x4x256xf32>,
    %c0_66 = arith.constant 0 : index
    %c16_67 = arith.constant 16 : index
    %c0_68 = arith.constant 0 : index
    %91 = vector.load %arg9[%c0_66, %c16_67, %c0_68] : memref<1x20x256xf32, #tpu.memory_space<vmem>>, vector<1x4x256xf32>
    %92 = vector.shape_cast %91 : vector<1x4x256xf32> to vector<4x256xf32>
    %c0_69 = arith.constant 0 : index
    %c0_70 = arith.constant 0 : index
    %93 = vector.load %arg10[%c0_69, %c0_70] : memref<32x256xf32, #tpu.memory_space<vmem>>, vector<4x256xf32>
    tpu.vector_store %arg10[%c0_69, %c0_70], %92 {strides = array<i32>} : memref<32x256xf32, #tpu.memory_space<vmem>>, vector<4x256xf32>,
    %c0_71 = arith.constant 0 : index
    %c12_72 = arith.constant 12 : index
    %c0_73 = arith.constant 0 : index
    %94 = vector.load %arg9[%c0_71, %c12_72, %c0_73] : memref<1x20x256xf32, #tpu.memory_space<vmem>>, vector<1x4x256xf32>
    %95 = vector.shape_cast %94 : vector<1x4x256xf32> to vector<4x256xf32>
    %c4_74 = arith.constant 4 : index
    %c0_75 = arith.constant 0 : index
    %96 = vector.load %arg10[%c4_74, %c0_75] : memref<32x256xf32, #tpu.memory_space<vmem>>, vector<4x256xf32>
    tpu.vector_store %arg10[%c4_74, %c0_75], %95 {strides = array<i32>} : memref<32x256xf32, #tpu.memory_space<vmem>>, vector<4x256xf32>,
    %c1_76 = arith.constant 1 : index
    %c0_77 = arith.constant 0 : index
    %c0_78 = arith.constant 0 : index
    %97 = vector.load %arg3[%c1_76, %c0_77, %c0_78] : memref<4x32x1xf32, #tpu.memory_space<vmem>>, vector<1x32x1xf32>
    %98 = vector.shape_cast %97 : vector<1x32x1xf32> to vector<32x1xf32>
    %c1_79 = arith.constant 1 : index
    %c0_80 = arith.constant 0 : index
    %c0_81 = arith.constant 0 : index
    %99 = vector.load %arg4[%c1_79, %c0_80, %c0_81] : memref<4x32x1xf32, #tpu.memory_space<vmem>>, vector<1x32x1xf32>
    %100 = vector.shape_cast %99 : vector<1x32x1xf32> to vector<32x1xf32>
    %c0_82 = arith.constant 0 : index
    %c0_83 = arith.constant 0 : index
    %101 = vector.load %arg10[%c0_82, %c0_83] : memref<32x256xf32, #tpu.memory_space<vmem>>, vector<8x256xf32>
    %102 = vector.extract_strided_slice %98 {offsets = [0, 0], sizes = [8, 1], strides = [1, 1]} : vector<32x1xf32> to vector<8x1xf32>
    %103 = vector.broadcast %102 : vector<8x1xf32> to vector<8x256xf32>
    %104 = arith.mulf %101, %103 : vector<8x256xf32>
    %105 = vector.extract_strided_slice %100 {offsets = [0, 0], sizes = [8, 1], strides = [1, 1]} : vector<32x1xf32> to vector<8x1xf32>
    %106 = vector.broadcast %105 : vector<8x1xf32> to vector<8x256xf32>
    %107 = arith.addf %104, %106 : vector<8x256xf32>
    %cst_84 = arith.constant 0.000000e+00 : f32
    %108 = vector.broadcast %cst_84 : f32 to vector<8x256xf32>
    %109 = arith.maximumf %107, %108 : vector<8x256xf32>
    %c1_85 = arith.constant 1 : index
    %c0_86 = arith.constant 0 : index
    %c0_87 = arith.constant 0 : index
    %110 = vector.load %arg5[%c1_85, %c0_86, %c0_87] : memref<4x4x32xf32, #tpu.memory_space<vmem>>, vector<1x4x32xf32>
    %111 = vector.shape_cast %110 : vector<1x4x32xf32> to vector<4x32xf32>
    %112 = vector.extract_strided_slice %111 {offsets = [0, 0], sizes = [4, 8], strides = [1, 1]} : vector<4x32xf32> to vector<4x8xf32>
    %cst_88 = arith.constant dense<0.000000e+00> : vector<4x256xf32>
    %113 = tpu.matmul %112, %109, %cst_88 {dimension_numbers = #tpu.dot_dimension_numbers<[1], [0], [0], [1], [0, 0, 1, 1], [], []>} : vector<4x8xf32>, vector<8x256xf32>, vector<4x256xf32> -> vector<4x256xf32>
    %c1_89 = arith.constant 1 : index
    %c0_90 = arith.constant 0 : index
    %c0_91 = arith.constant 0 : index
    %114 = vector.load %arg6[%c1_89, %c0_90, %c0_91] : memref<4x4x1xf32, #tpu.memory_space<vmem>>, vector<1x4x1xf32>
    %115 = vector.shape_cast %114 : vector<1x4x1xf32> to vector<4x1xf32>
    %116 = vector.broadcast %115 : vector<4x1xf32> to vector<4x256xf32>
    %117 = arith.addf %113, %116 : vector<4x256xf32>
    %cst_92 = arith.constant 0.000000e+00 : f32
    %118 = vector.broadcast %cst_92 : f32 to vector<4x256xf32>
    %119 = arith.maximumf %117, %118 : vector<4x256xf32>
    %c17_i32_93 = arith.constant 17 : i32
    %120 = tpu.dynamic_rotate %119 by %c17_i32_93 dim 1 : vector<4x256xf32>, i32 -> vector<4x256xf32>
    %c0_94 = arith.constant 0 : index
    %c0_95 = arith.constant 0 : index
    %c0_96 = arith.constant 0 : index
    %121 = vector.load %arg2[%c0_94, %c0_95, %c0_96] : memref<9x1x256xf32, #tpu.memory_space<vmem>>, vector<1x1x256xf32>
    %122 = vector.shape_cast %121 : vector<1x1x256xf32> to vector<1x256xf32>
    %123 = vector.broadcast %122 : vector<1x256xf32> to vector<4x256xf32>
    %124 = arith.mulf %120, %123 : vector<4x256xf32>
    %c0_97 = arith.constant 0 : index
    %c0_98 = arith.constant 0 : index
    %125 = vector.load %arg11[%c0_97, %c0_98] : memref<36x256xf32, #tpu.memory_space<vmem>>, vector<4x256xf32>
    tpu.vector_store %arg11[%c0_97, %c0_98], %124 {strides = array<i32>} : memref<36x256xf32, #tpu.memory_space<vmem>>, vector<4x256xf32>,
    %c16_i32_99 = arith.constant 16 : i32
    %126 = tpu.dynamic_rotate %119 by %c16_i32_99 dim 1 : vector<4x256xf32>, i32 -> vector<4x256xf32>
    %c1_100 = arith.constant 1 : index
    %c0_101 = arith.constant 0 : index
    %c0_102 = arith.constant 0 : index
    %127 = vector.load %arg2[%c1_100, %c0_101, %c0_102] : memref<9x1x256xf32, #tpu.memory_space<vmem>>, vector<1x1x256xf32>
    %128 = vector.shape_cast %127 : vector<1x1x256xf32> to vector<1x256xf32>
    %129 = vector.broadcast %128 : vector<1x256xf32> to vector<4x256xf32>
    %130 = arith.mulf %126, %129 : vector<4x256xf32>
    %c4_103 = arith.constant 4 : index
    %c0_104 = arith.constant 0 : index
    %131 = vector.load %arg11[%c4_103, %c0_104] : memref<36x256xf32, #tpu.memory_space<vmem>>, vector<4x256xf32>
    tpu.vector_store %arg11[%c4_103, %c0_104], %130 {strides = array<i32>} : memref<36x256xf32, #tpu.memory_space<vmem>>, vector<4x256xf32>,
    %c15_i32_105 = arith.constant 15 : i32
    %132 = tpu.dynamic_rotate %119 by %c15_i32_105 dim 1 : vector<4x256xf32>, i32 -> vector<4x256xf32>
    %c2_106 = arith.constant 2 : index
    %c0_107 = arith.constant 0 : index
    %c0_108 = arith.constant 0 : index
    %133 = vector.load %arg2[%c2_106, %c0_107, %c0_108] : memref<9x1x256xf32, #tpu.memory_space<vmem>>, vector<1x1x256xf32>
    %134 = vector.shape_cast %133 : vector<1x1x256xf32> to vector<1x256xf32>
    %135 = vector.broadcast %134 : vector<1x256xf32> to vector<4x256xf32>
    %136 = arith.mulf %132, %135 : vector<4x256xf32>
    %c8_109 = arith.constant 8 : index
    %c0_110 = arith.constant 0 : index
    %137 = vector.load %arg11[%c8_109, %c0_110] : memref<36x256xf32, #tpu.memory_space<vmem>>, vector<4x256xf32>
    tpu.vector_store %arg11[%c8_109, %c0_110], %136 {strides = array<i32>} : memref<36x256xf32, #tpu.memory_space<vmem>>, vector<4x256xf32>,
    %c1_i32_111 = arith.constant 1 : i32
    %138 = tpu.dynamic_rotate %119 by %c1_i32_111 dim 1 : vector<4x256xf32>, i32 -> vector<4x256xf32>
    %c3_112 = arith.constant 3 : index
    %c0_113 = arith.constant 0 : index
    %c0_114 = arith.constant 0 : index
    %139 = vector.load %arg2[%c3_112, %c0_113, %c0_114] : memref<9x1x256xf32, #tpu.memory_space<vmem>>, vector<1x1x256xf32>
    %140 = vector.shape_cast %139 : vector<1x1x256xf32> to vector<1x256xf32>
    %141 = vector.broadcast %140 : vector<1x256xf32> to vector<4x256xf32>
    %142 = arith.mulf %138, %141 : vector<4x256xf32>
    %c12_115 = arith.constant 12 : index
    %c0_116 = arith.constant 0 : index
    %143 = vector.load %arg11[%c12_115, %c0_116] : memref<36x256xf32, #tpu.memory_space<vmem>>, vector<4x256xf32>
    tpu.vector_store %arg11[%c12_115, %c0_116], %142 {strides = array<i32>} : memref<36x256xf32, #tpu.memory_space<vmem>>, vector<4x256xf32>,
    %c16_117 = arith.constant 16 : index
    %c0_118 = arith.constant 0 : index
    %144 = vector.load %arg11[%c16_117, %c0_118] : memref<36x256xf32, #tpu.memory_space<vmem>>, vector<4x256xf32>
    tpu.vector_store %arg11[%c16_117, %c0_118], %119 {strides = array<i32>} : memref<36x256xf32, #tpu.memory_space<vmem>>, vector<4x256xf32>,
    %c255_i32_119 = arith.constant 255 : i32
    %145 = tpu.dynamic_rotate %119 by %c255_i32_119 dim 1 : vector<4x256xf32>, i32 -> vector<4x256xf32>
    %c5_120 = arith.constant 5 : index
    %c0_121 = arith.constant 0 : index
    %c0_122 = arith.constant 0 : index
    %146 = vector.load %arg2[%c5_120, %c0_121, %c0_122] : memref<9x1x256xf32, #tpu.memory_space<vmem>>, vector<1x1x256xf32>
    %147 = vector.shape_cast %146 : vector<1x1x256xf32> to vector<1x256xf32>
    %148 = vector.broadcast %147 : vector<1x256xf32> to vector<4x256xf32>
    %149 = arith.mulf %145, %148 : vector<4x256xf32>
    %c20_123 = arith.constant 20 : index
    %c0_124 = arith.constant 0 : index
    %150 = vector.load %arg11[%c20_123, %c0_124] : memref<36x256xf32, #tpu.memory_space<vmem>>, vector<4x256xf32>
    tpu.vector_store %arg11[%c20_123, %c0_124], %149 {strides = array<i32>} : memref<36x256xf32, #tpu.memory_space<vmem>>, vector<4x256xf32>,
    %c241_i32_125 = arith.constant 241 : i32
    %151 = tpu.dynamic_rotate %119 by %c241_i32_125 dim 1 : vector<4x256xf32>, i32 -> vector<4x256xf32>
    %c6_126 = arith.constant 6 : index
    %c0_127 = arith.constant 0 : index
    %c0_128 = arith.constant 0 : index
    %152 = vector.load %arg2[%c6_126, %c0_127, %c0_128] : memref<9x1x256xf32, #tpu.memory_space<vmem>>, vector<1x1x256xf32>
    %153 = vector.shape_cast %152 : vector<1x1x256xf32> to vector<1x256xf32>
    %154 = vector.broadcast %153 : vector<1x256xf32> to vector<4x256xf32>
    %155 = arith.mulf %151, %154 : vector<4x256xf32>
    %c24_129 = arith.constant 24 : index
    %c0_130 = arith.constant 0 : index
    %156 = vector.load %arg11[%c24_129, %c0_130] : memref<36x256xf32, #tpu.memory_space<vmem>>, vector<4x256xf32>
    tpu.vector_store %arg11[%c24_129, %c0_130], %155 {strides = array<i32>} : memref<36x256xf32, #tpu.memory_space<vmem>>, vector<4x256xf32>,
    %c240_i32_131 = arith.constant 240 : i32
    %157 = tpu.dynamic_rotate %119 by %c240_i32_131 dim 1 : vector<4x256xf32>, i32 -> vector<4x256xf32>
    %c7_132 = arith.constant 7 : index
    %c0_133 = arith.constant 0 : index
    %c0_134 = arith.constant 0 : index
    %158 = vector.load %arg2[%c7_132, %c0_133, %c0_134] : memref<9x1x256xf32, #tpu.memory_space<vmem>>, vector<1x1x256xf32>
    %159 = vector.shape_cast %158 : vector<1x1x256xf32> to vector<1x256xf32>
    %160 = vector.broadcast %159 : vector<1x256xf32> to vector<4x256xf32>
    %161 = arith.mulf %157, %160 : vector<4x256xf32>
    %c28_135 = arith.constant 28 : index
    %c0_136 = arith.constant 0 : index
    %162 = vector.load %arg11[%c28_135, %c0_136] : memref<36x256xf32, #tpu.memory_space<vmem>>, vector<4x256xf32>
    tpu.vector_store %arg11[%c28_135, %c0_136], %161 {strides = array<i32>} : memref<36x256xf32, #tpu.memory_space<vmem>>, vector<4x256xf32>,
    %c239_i32_137 = arith.constant 239 : i32
    %163 = tpu.dynamic_rotate %119 by %c239_i32_137 dim 1 : vector<4x256xf32>, i32 -> vector<4x256xf32>
    %c8_138 = arith.constant 8 : index
    %c0_139 = arith.constant 0 : index
    %c0_140 = arith.constant 0 : index
    %164 = vector.load %arg2[%c8_138, %c0_139, %c0_140] : memref<9x1x256xf32, #tpu.memory_space<vmem>>, vector<1x1x256xf32>
    %165 = vector.shape_cast %164 : vector<1x1x256xf32> to vector<1x256xf32>
    %166 = vector.broadcast %165 : vector<1x256xf32> to vector<4x256xf32>
    %167 = arith.mulf %163, %166 : vector<4x256xf32>
    %c32_141 = arith.constant 32 : index
    %c0_142 = arith.constant 0 : index
    %168 = vector.load %arg11[%c32_141, %c0_142] : memref<36x256xf32, #tpu.memory_space<vmem>>, vector<4x256xf32>
    tpu.vector_store %arg11[%c32_141, %c0_142], %167 {strides = array<i32>} : memref<36x256xf32, #tpu.memory_space<vmem>>, vector<4x256xf32>,
    %c1_143 = arith.constant 1 : index
    %c0_144 = arith.constant 0 : index
    %c0_145 = arith.constant 0 : index
    %169 = vector.load %arg7[%c1_143, %c0_144, %c0_145] : memref<4x4x36xf32, #tpu.memory_space<vmem>>, vector<1x4x36xf32>
    %170 = vector.shape_cast %169 : vector<1x4x36xf32> to vector<4x36xf32>
    %c0_146 = arith.constant 0 : index
    %c0_147 = arith.constant 0 : index
    %171 = vector.load %arg11[%c0_146, %c0_147] : memref<36x256xf32, #tpu.memory_space<vmem>>, vector<36x256xf32>
    %cst_148 = arith.constant dense<0.000000e+00> : vector<4x256xf32>
    %172 = tpu.matmul %170, %171, %cst_148 {dimension_numbers = #tpu.dot_dimension_numbers<[1], [0], [0], [1], [0, 0, 1, 1], [], []>} : vector<4x36xf32>, vector<36x256xf32>, vector<4x256xf32> -> vector<4x256xf32>
    %c1_149 = arith.constant 1 : index
    %c0_150 = arith.constant 0 : index
    %c0_151 = arith.constant 0 : index
    %173 = vector.load %arg8[%c1_149, %c0_150, %c0_151] : memref<4x4x1xf32, #tpu.memory_space<vmem>>, vector<1x4x1xf32>
    %174 = vector.shape_cast %173 : vector<1x4x1xf32> to vector<4x1xf32>
    %175 = vector.broadcast %174 : vector<4x1xf32> to vector<4x256xf32>
    %176 = arith.addf %172, %175 : vector<4x256xf32>
    %c0_152 = arith.constant 0 : index
    %c8_153 = arith.constant 8 : index
    %c0_154 = arith.constant 0 : index
    %177 = vector.load %arg9[%c0_152, %c8_153, %c0_154] : memref<1x20x256xf32, #tpu.memory_space<vmem>>, vector<1x4x256xf32>
    %178 = vector.shape_cast %177 : vector<1x4x256xf32> to vector<4x256xf32>
    %179 = vector.shape_cast %176 : vector<4x256xf32> to vector<1x4x256xf32>
    tpu.vector_store %arg9[%c0_152, %c8_153, %c0_154], %179 {strides = array<i32>} : memref<1x20x256xf32, #tpu.memory_space<vmem>>, vector<1x4x256xf32>,
    %c0_155 = arith.constant 0 : index
    %c8_156 = arith.constant 8 : index
    %c0_157 = arith.constant 0 : index
    %180 = vector.load %arg9[%c0_155, %c8_156, %c0_157] : memref<1x20x256xf32, #tpu.memory_space<vmem>>, vector<1x4x256xf32>
    %181 = vector.shape_cast %180 : vector<1x4x256xf32> to vector<4x256xf32>
    %c0_158 = arith.constant 0 : index
    %c0_159 = arith.constant 0 : index
    %182 = vector.load %arg10[%c0_158, %c0_159] : memref<32x256xf32, #tpu.memory_space<vmem>>, vector<4x256xf32>
    tpu.vector_store %arg10[%c0_158, %c0_159], %181 {strides = array<i32>} : memref<32x256xf32, #tpu.memory_space<vmem>>, vector<4x256xf32>,
    %c0_160 = arith.constant 0 : index
    %c16_161 = arith.constant 16 : index
    %c0_162 = arith.constant 0 : index
    %183 = vector.load %arg9[%c0_160, %c16_161, %c0_162] : memref<1x20x256xf32, #tpu.memory_space<vmem>>, vector<1x4x256xf32>
    %184 = vector.shape_cast %183 : vector<1x4x256xf32> to vector<4x256xf32>
    %c4_163 = arith.constant 4 : index
    %c0_164 = arith.constant 0 : index
    %185 = vector.load %arg10[%c4_163, %c0_164] : memref<32x256xf32, #tpu.memory_space<vmem>>, vector<4x256xf32>
    tpu.vector_store %arg10[%c4_163, %c0_164], %184 {strides = array<i32>} : memref<32x256xf32, #tpu.memory_space<vmem>>, vector<4x256xf32>,
    %c0_165 = arith.constant 0 : index
    %c12_166 = arith.constant 12 : index
    %c0_167 = arith.constant 0 : index
    %186 = vector.load %arg9[%c0_165, %c12_166, %c0_167] : memref<1x20x256xf32, #tpu.memory_space<vmem>>, vector<1x4x256xf32>
    %187 = vector.shape_cast %186 : vector<1x4x256xf32> to vector<4x256xf32>
    %c8_168 = arith.constant 8 : index
    %c0_169 = arith.constant 0 : index
    %188 = vector.load %arg10[%c8_168, %c0_169] : memref<32x256xf32, #tpu.memory_space<vmem>>, vector<4x256xf32>
    tpu.vector_store %arg10[%c8_168, %c0_169], %187 {strides = array<i32>} : memref<32x256xf32, #tpu.memory_space<vmem>>, vector<4x256xf32>,
    %c0_170 = arith.constant 0 : index
    %c12_171 = arith.constant 12 : index
    %c0_172 = arith.constant 0 : index
    %189 = vector.load %arg9[%c0_170, %c12_171, %c0_172] : memref<1x20x256xf32, #tpu.memory_space<vmem>>, vector<1x4x256xf32>
    %190 = vector.shape_cast %189 : vector<1x4x256xf32> to vector<4x256xf32>
    %c12_173 = arith.constant 12 : index
    %c0_174 = arith.constant 0 : index
    %191 = vector.load %arg10[%c12_173, %c0_174] : memref<32x256xf32, #tpu.memory_space<vmem>>, vector<4x256xf32>
    tpu.vector_store %arg10[%c12_173, %c0_174], %190 {strides = array<i32>} : memref<32x256xf32, #tpu.memory_space<vmem>>, vector<4x256xf32>,
    %c2_175 = arith.constant 2 : index
    %c0_176 = arith.constant 0 : index
    %c0_177 = arith.constant 0 : index
    %192 = vector.load %arg3[%c2_175, %c0_176, %c0_177] : memref<4x32x1xf32, #tpu.memory_space<vmem>>, vector<1x32x1xf32>
    %193 = vector.shape_cast %192 : vector<1x32x1xf32> to vector<32x1xf32>
    %c2_178 = arith.constant 2 : index
    %c0_179 = arith.constant 0 : index
    %c0_180 = arith.constant 0 : index
    %194 = vector.load %arg4[%c2_178, %c0_179, %c0_180] : memref<4x32x1xf32, #tpu.memory_space<vmem>>, vector<1x32x1xf32>
    %195 = vector.shape_cast %194 : vector<1x32x1xf32> to vector<32x1xf32>
    %c0_181 = arith.constant 0 : index
    %c0_182 = arith.constant 0 : index
    %196 = vector.load %arg10[%c0_181, %c0_182] : memref<32x256xf32, #tpu.memory_space<vmem>>, vector<16x256xf32>
    %197 = vector.extract_strided_slice %193 {offsets = [0, 0], sizes = [16, 1], strides = [1, 1]} : vector<32x1xf32> to vector<16x1xf32>
    %198 = vector.broadcast %197 : vector<16x1xf32> to vector<16x256xf32>
    %199 = arith.mulf %196, %198 : vector<16x256xf32>
    %200 = vector.extract_strided_slice %195 {offsets = [0, 0], sizes = [16, 1], strides = [1, 1]} : vector<32x1xf32> to vector<16x1xf32>
    %201 = vector.broadcast %200 : vector<16x1xf32> to vector<16x256xf32>
    %202 = arith.addf %199, %201 : vector<16x256xf32>
    %cst_183 = arith.constant 0.000000e+00 : f32
    %203 = vector.broadcast %cst_183 : f32 to vector<16x256xf32>
    %204 = arith.maximumf %202, %203 : vector<16x256xf32>
    %c2_184 = arith.constant 2 : index
    %c0_185 = arith.constant 0 : index
    %c0_186 = arith.constant 0 : index
    %205 = vector.load %arg5[%c2_184, %c0_185, %c0_186] : memref<4x4x32xf32, #tpu.memory_space<vmem>>, vector<1x4x32xf32>
    %206 = vector.shape_cast %205 : vector<1x4x32xf32> to vector<4x32xf32>
    %207 = vector.extract_strided_slice %206 {offsets = [0, 0], sizes = [4, 16], strides = [1, 1]} : vector<4x32xf32> to vector<4x16xf32>
    %cst_187 = arith.constant dense<0.000000e+00> : vector<4x256xf32>
    %208 = tpu.matmul %207, %204, %cst_187 {dimension_numbers = #tpu.dot_dimension_numbers<[1], [0], [0], [1], [0, 0, 1, 1], [], []>} : vector<4x16xf32>, vector<16x256xf32>, vector<4x256xf32> -> vector<4x256xf32>
    %c2_188 = arith.constant 2 : index
    %c0_189 = arith.constant 0 : index
    %c0_190 = arith.constant 0 : index
    %209 = vector.load %arg6[%c2_188, %c0_189, %c0_190] : memref<4x4x1xf32, #tpu.memory_space<vmem>>, vector<1x4x1xf32>
    %210 = vector.shape_cast %209 : vector<1x4x1xf32> to vector<4x1xf32>
    %211 = vector.broadcast %210 : vector<4x1xf32> to vector<4x256xf32>
    %212 = arith.addf %208, %211 : vector<4x256xf32>
    %cst_191 = arith.constant 0.000000e+00 : f32
    %213 = vector.broadcast %cst_191 : f32 to vector<4x256xf32>
    %214 = arith.maximumf %212, %213 : vector<4x256xf32>
    %c17_i32_192 = arith.constant 17 : i32
    %215 = tpu.dynamic_rotate %214 by %c17_i32_192 dim 1 : vector<4x256xf32>, i32 -> vector<4x256xf32>
    %c0_193 = arith.constant 0 : index
    %c0_194 = arith.constant 0 : index
    %c0_195 = arith.constant 0 : index
    %216 = vector.load %arg2[%c0_193, %c0_194, %c0_195] : memref<9x1x256xf32, #tpu.memory_space<vmem>>, vector<1x1x256xf32>
    %217 = vector.shape_cast %216 : vector<1x1x256xf32> to vector<1x256xf32>
    %218 = vector.broadcast %217 : vector<1x256xf32> to vector<4x256xf32>
    %219 = arith.mulf %215, %218 : vector<4x256xf32>
    %c0_196 = arith.constant 0 : index
    %c0_197 = arith.constant 0 : index
    %220 = vector.load %arg11[%c0_196, %c0_197] : memref<36x256xf32, #tpu.memory_space<vmem>>, vector<4x256xf32>
    tpu.vector_store %arg11[%c0_196, %c0_197], %219 {strides = array<i32>} : memref<36x256xf32, #tpu.memory_space<vmem>>, vector<4x256xf32>,
    %c16_i32_198 = arith.constant 16 : i32
    %221 = tpu.dynamic_rotate %214 by %c16_i32_198 dim 1 : vector<4x256xf32>, i32 -> vector<4x256xf32>
    %c1_199 = arith.constant 1 : index
    %c0_200 = arith.constant 0 : index
    %c0_201 = arith.constant 0 : index
    %222 = vector.load %arg2[%c1_199, %c0_200, %c0_201] : memref<9x1x256xf32, #tpu.memory_space<vmem>>, vector<1x1x256xf32>
    %223 = vector.shape_cast %222 : vector<1x1x256xf32> to vector<1x256xf32>
    %224 = vector.broadcast %223 : vector<1x256xf32> to vector<4x256xf32>
    %225 = arith.mulf %221, %224 : vector<4x256xf32>
    %c4_202 = arith.constant 4 : index
    %c0_203 = arith.constant 0 : index
    %226 = vector.load %arg11[%c4_202, %c0_203] : memref<36x256xf32, #tpu.memory_space<vmem>>, vector<4x256xf32>
    tpu.vector_store %arg11[%c4_202, %c0_203], %225 {strides = array<i32>} : memref<36x256xf32, #tpu.memory_space<vmem>>, vector<4x256xf32>,
    %c15_i32_204 = arith.constant 15 : i32
    %227 = tpu.dynamic_rotate %214 by %c15_i32_204 dim 1 : vector<4x256xf32>, i32 -> vector<4x256xf32>
    %c2_205 = arith.constant 2 : index
    %c0_206 = arith.constant 0 : index
    %c0_207 = arith.constant 0 : index
    %228 = vector.load %arg2[%c2_205, %c0_206, %c0_207] : memref<9x1x256xf32, #tpu.memory_space<vmem>>, vector<1x1x256xf32>
    %229 = vector.shape_cast %228 : vector<1x1x256xf32> to vector<1x256xf32>
    %230 = vector.broadcast %229 : vector<1x256xf32> to vector<4x256xf32>
    %231 = arith.mulf %227, %230 : vector<4x256xf32>
    %c8_208 = arith.constant 8 : index
    %c0_209 = arith.constant 0 : index
    %232 = vector.load %arg11[%c8_208, %c0_209] : memref<36x256xf32, #tpu.memory_space<vmem>>, vector<4x256xf32>
    tpu.vector_store %arg11[%c8_208, %c0_209], %231 {strides = array<i32>} : memref<36x256xf32, #tpu.memory_space<vmem>>, vector<4x256xf32>,
    %c1_i32_210 = arith.constant 1 : i32
    %233 = tpu.dynamic_rotate %214 by %c1_i32_210 dim 1 : vector<4x256xf32>, i32 -> vector<4x256xf32>
    %c3_211 = arith.constant 3 : index
    %c0_212 = arith.constant 0 : index
    %c0_213 = arith.constant 0 : index
    %234 = vector.load %arg2[%c3_211, %c0_212, %c0_213] : memref<9x1x256xf32, #tpu.memory_space<vmem>>, vector<1x1x256xf32>
    %235 = vector.shape_cast %234 : vector<1x1x256xf32> to vector<1x256xf32>
    %236 = vector.broadcast %235 : vector<1x256xf32> to vector<4x256xf32>
    %237 = arith.mulf %233, %236 : vector<4x256xf32>
    %c12_214 = arith.constant 12 : index
    %c0_215 = arith.constant 0 : index
    %238 = vector.load %arg11[%c12_214, %c0_215] : memref<36x256xf32, #tpu.memory_space<vmem>>, vector<4x256xf32>
    tpu.vector_store %arg11[%c12_214, %c0_215], %237 {strides = array<i32>} : memref<36x256xf32, #tpu.memory_space<vmem>>, vector<4x256xf32>,
    %c16_216 = arith.constant 16 : index
    %c0_217 = arith.constant 0 : index
    %239 = vector.load %arg11[%c16_216, %c0_217] : memref<36x256xf32, #tpu.memory_space<vmem>>, vector<4x256xf32>
    tpu.vector_store %arg11[%c16_216, %c0_217], %214 {strides = array<i32>} : memref<36x256xf32, #tpu.memory_space<vmem>>, vector<4x256xf32>,
    %c255_i32_218 = arith.constant 255 : i32
    %240 = tpu.dynamic_rotate %214 by %c255_i32_218 dim 1 : vector<4x256xf32>, i32 -> vector<4x256xf32>
    %c5_219 = arith.constant 5 : index
    %c0_220 = arith.constant 0 : index
    %c0_221 = arith.constant 0 : index
    %241 = vector.load %arg2[%c5_219, %c0_220, %c0_221] : memref<9x1x256xf32, #tpu.memory_space<vmem>>, vector<1x1x256xf32>
    %242 = vector.shape_cast %241 : vector<1x1x256xf32> to vector<1x256xf32>
    %243 = vector.broadcast %242 : vector<1x256xf32> to vector<4x256xf32>
    %244 = arith.mulf %240, %243 : vector<4x256xf32>
    %c20_222 = arith.constant 20 : index
    %c0_223 = arith.constant 0 : index
    %245 = vector.load %arg11[%c20_222, %c0_223] : memref<36x256xf32, #tpu.memory_space<vmem>>, vector<4x256xf32>
    tpu.vector_store %arg11[%c20_222, %c0_223], %244 {strides = array<i32>} : memref<36x256xf32, #tpu.memory_space<vmem>>, vector<4x256xf32>,
    %c241_i32_224 = arith.constant 241 : i32
    %246 = tpu.dynamic_rotate %214 by %c241_i32_224 dim 1 : vector<4x256xf32>, i32 -> vector<4x256xf32>
    %c6_225 = arith.constant 6 : index
    %c0_226 = arith.constant 0 : index
    %c0_227 = arith.constant 0 : index
    %247 = vector.load %arg2[%c6_225, %c0_226, %c0_227] : memref<9x1x256xf32, #tpu.memory_space<vmem>>, vector<1x1x256xf32>
    %248 = vector.shape_cast %247 : vector<1x1x256xf32> to vector<1x256xf32>
    %249 = vector.broadcast %248 : vector<1x256xf32> to vector<4x256xf32>
    %250 = arith.mulf %246, %249 : vector<4x256xf32>
    %c24_228 = arith.constant 24 : index
    %c0_229 = arith.constant 0 : index
    %251 = vector.load %arg11[%c24_228, %c0_229] : memref<36x256xf32, #tpu.memory_space<vmem>>, vector<4x256xf32>
    tpu.vector_store %arg11[%c24_228, %c0_229], %250 {strides = array<i32>} : memref<36x256xf32, #tpu.memory_space<vmem>>, vector<4x256xf32>,
    %c240_i32_230 = arith.constant 240 : i32
    %252 = tpu.dynamic_rotate %214 by %c240_i32_230 dim 1 : vector<4x256xf32>, i32 -> vector<4x256xf32>
    %c7_231 = arith.constant 7 : index
    %c0_232 = arith.constant 0 : index
    %c0_233 = arith.constant 0 : index
    %253 = vector.load %arg2[%c7_231, %c0_232, %c0_233] : memref<9x1x256xf32, #tpu.memory_space<vmem>>, vector<1x1x256xf32>
    %254 = vector.shape_cast %253 : vector<1x1x256xf32> to vector<1x256xf32>
    %255 = vector.broadcast %254 : vector<1x256xf32> to vector<4x256xf32>
    %256 = arith.mulf %252, %255 : vector<4x256xf32>
    %c28_234 = arith.constant 28 : index
    %c0_235 = arith.constant 0 : index
    %257 = vector.load %arg11[%c28_234, %c0_235] : memref<36x256xf32, #tpu.memory_space<vmem>>, vector<4x256xf32>
    tpu.vector_store %arg11[%c28_234, %c0_235], %256 {strides = array<i32>} : memref<36x256xf32, #tpu.memory_space<vmem>>, vector<4x256xf32>,
    %c239_i32_236 = arith.constant 239 : i32
    %258 = tpu.dynamic_rotate %214 by %c239_i32_236 dim 1 : vector<4x256xf32>, i32 -> vector<4x256xf32>
    %c8_237 = arith.constant 8 : index
    %c0_238 = arith.constant 0 : index
    %c0_239 = arith.constant 0 : index
    %259 = vector.load %arg2[%c8_237, %c0_238, %c0_239] : memref<9x1x256xf32, #tpu.memory_space<vmem>>, vector<1x1x256xf32>
    %260 = vector.shape_cast %259 : vector<1x1x256xf32> to vector<1x256xf32>
    %261 = vector.broadcast %260 : vector<1x256xf32> to vector<4x256xf32>
    %262 = arith.mulf %258, %261 : vector<4x256xf32>
    %c32_240 = arith.constant 32 : index
    %c0_241 = arith.constant 0 : index
    %263 = vector.load %arg11[%c32_240, %c0_241] : memref<36x256xf32, #tpu.memory_space<vmem>>, vector<4x256xf32>
    tpu.vector_store %arg11[%c32_240, %c0_241], %262 {strides = array<i32>} : memref<36x256xf32, #tpu.memory_space<vmem>>, vector<4x256xf32>,
    %c2_242 = arith.constant 2 : index
    %c0_243 = arith.constant 0 : index
    %c0_244 = arith.constant 0 : index
    %264 = vector.load %arg7[%c2_242, %c0_243, %c0_244] : memref<4x4x36xf32, #tpu.memory_space<vmem>>, vector<1x4x36xf32>
    %265 = vector.shape_cast %264 : vector<1x4x36xf32> to vector<4x36xf32>
    %c0_245 = arith.constant 0 : index
    %c0_246 = arith.constant 0 : index
    %266 = vector.load %arg11[%c0_245, %c0_246] : memref<36x256xf32, #tpu.memory_space<vmem>>, vector<36x256xf32>
    %cst_247 = arith.constant dense<0.000000e+00> : vector<4x256xf32>
    %267 = tpu.matmul %265, %266, %cst_247 {dimension_numbers = #tpu.dot_dimension_numbers<[1], [0], [0], [1], [0, 0, 1, 1], [], []>} : vector<4x36xf32>, vector<36x256xf32>, vector<4x256xf32> -> vector<4x256xf32>
    %c2_248 = arith.constant 2 : index
    %c0_249 = arith.constant 0 : index
    %c0_250 = arith.constant 0 : index
    %268 = vector.load %arg8[%c2_248, %c0_249, %c0_250] : memref<4x4x1xf32, #tpu.memory_space<vmem>>, vector<1x4x1xf32>
    %269 = vector.shape_cast %268 : vector<1x4x1xf32> to vector<4x1xf32>
    %270 = vector.broadcast %269 : vector<4x1xf32> to vector<4x256xf32>
    %271 = arith.addf %267, %270 : vector<4x256xf32>
    %c0_251 = arith.constant 0 : index
    %c4_252 = arith.constant 4 : index
    %c0_253 = arith.constant 0 : index
    %272 = vector.load %arg9[%c0_251, %c4_252, %c0_253] : memref<1x20x256xf32, #tpu.memory_space<vmem>>, vector<1x4x256xf32>
    %273 = vector.shape_cast %272 : vector<1x4x256xf32> to vector<4x256xf32>
    %274 = vector.shape_cast %271 : vector<4x256xf32> to vector<1x4x256xf32>
    tpu.vector_store %arg9[%c0_251, %c4_252, %c0_253], %274 {strides = array<i32>} : memref<1x20x256xf32, #tpu.memory_space<vmem>>, vector<1x4x256xf32>,
    %c0_254 = arith.constant 0 : index
    %c4_255 = arith.constant 4 : index
    %c0_256 = arith.constant 0 : index
    %275 = vector.load %arg9[%c0_254, %c4_255, %c0_256] : memref<1x20x256xf32, #tpu.memory_space<vmem>>, vector<1x4x256xf32>
    %276 = vector.shape_cast %275 : vector<1x4x256xf32> to vector<4x256xf32>
    %c0_257 = arith.constant 0 : index
    %c0_258 = arith.constant 0 : index
    %277 = vector.load %arg10[%c0_257, %c0_258] : memref<32x256xf32, #tpu.memory_space<vmem>>, vector<4x256xf32>
    tpu.vector_store %arg10[%c0_257, %c0_258], %276 {strides = array<i32>} : memref<32x256xf32, #tpu.memory_space<vmem>>, vector<4x256xf32>,
    %c0_259 = arith.constant 0 : index
    %c8_260 = arith.constant 8 : index
    %c0_261 = arith.constant 0 : index
    %278 = vector.load %arg9[%c0_259, %c8_260, %c0_261] : memref<1x20x256xf32, #tpu.memory_space<vmem>>, vector<1x4x256xf32>
    %279 = vector.shape_cast %278 : vector<1x4x256xf32> to vector<4x256xf32>
    %c4_262 = arith.constant 4 : index
    %c0_263 = arith.constant 0 : index
    %280 = vector.load %arg10[%c4_262, %c0_263] : memref<32x256xf32, #tpu.memory_space<vmem>>, vector<4x256xf32>
    tpu.vector_store %arg10[%c4_262, %c0_263], %279 {strides = array<i32>} : memref<32x256xf32, #tpu.memory_space<vmem>>, vector<4x256xf32>,
    %c0_264 = arith.constant 0 : index
    %c16_265 = arith.constant 16 : index
    %c0_266 = arith.constant 0 : index
    %281 = vector.load %arg9[%c0_264, %c16_265, %c0_266] : memref<1x20x256xf32, #tpu.memory_space<vmem>>, vector<1x4x256xf32>
    %282 = vector.shape_cast %281 : vector<1x4x256xf32> to vector<4x256xf32>
    %c8_267 = arith.constant 8 : index
    %c0_268 = arith.constant 0 : index
    %283 = vector.load %arg10[%c8_267, %c0_268] : memref<32x256xf32, #tpu.memory_space<vmem>>, vector<4x256xf32>
    tpu.vector_store %arg10[%c8_267, %c0_268], %282 {strides = array<i32>} : memref<32x256xf32, #tpu.memory_space<vmem>>, vector<4x256xf32>,
    %c0_269 = arith.constant 0 : index
    %c12_270 = arith.constant 12 : index
    %c0_271 = arith.constant 0 : index
    %284 = vector.load %arg9[%c0_269, %c12_270, %c0_271] : memref<1x20x256xf32, #tpu.memory_space<vmem>>, vector<1x4x256xf32>
    %285 = vector.shape_cast %284 : vector<1x4x256xf32> to vector<4x256xf32>
    %c12_272 = arith.constant 12 : index
    %c0_273 = arith.constant 0 : index
    %286 = vector.load %arg10[%c12_272, %c0_273] : memref<32x256xf32, #tpu.memory_space<vmem>>, vector<4x256xf32>
    tpu.vector_store %arg10[%c12_272, %c0_273], %285 {strides = array<i32>} : memref<32x256xf32, #tpu.memory_space<vmem>>, vector<4x256xf32>,
    %c0_274 = arith.constant 0 : index
    %c12_275 = arith.constant 12 : index
    %c0_276 = arith.constant 0 : index
    %287 = vector.load %arg9[%c0_274, %c12_275, %c0_276] : memref<1x20x256xf32, #tpu.memory_space<vmem>>, vector<1x4x256xf32>
    %288 = vector.shape_cast %287 : vector<1x4x256xf32> to vector<4x256xf32>
    %c16_277 = arith.constant 16 : index
    %c0_278 = arith.constant 0 : index
    %289 = vector.load %arg10[%c16_277, %c0_278] : memref<32x256xf32, #tpu.memory_space<vmem>>, vector<4x256xf32>
    tpu.vector_store %arg10[%c16_277, %c0_278], %288 {strides = array<i32>} : memref<32x256xf32, #tpu.memory_space<vmem>>, vector<4x256xf32>,
    %c0_279 = arith.constant 0 : index
    %c16_280 = arith.constant 16 : index
    %c0_281 = arith.constant 0 : index
    %290 = vector.load %arg9[%c0_279, %c16_280, %c0_281] : memref<1x20x256xf32, #tpu.memory_space<vmem>>, vector<1x4x256xf32>
    %291 = vector.shape_cast %290 : vector<1x4x256xf32> to vector<4x256xf32>
    %c20_282 = arith.constant 20 : index
    %c0_283 = arith.constant 0 : index
    %292 = vector.load %arg10[%c20_282, %c0_283] : memref<32x256xf32, #tpu.memory_space<vmem>>, vector<4x256xf32>
    tpu.vector_store %arg10[%c20_282, %c0_283], %291 {strides = array<i32>} : memref<32x256xf32, #tpu.memory_space<vmem>>, vector<4x256xf32>,
    %c0_284 = arith.constant 0 : index
    %c12_285 = arith.constant 12 : index
    %c0_286 = arith.constant 0 : index
    %293 = vector.load %arg9[%c0_284, %c12_285, %c0_286] : memref<1x20x256xf32, #tpu.memory_space<vmem>>, vector<1x4x256xf32>
    %294 = vector.shape_cast %293 : vector<1x4x256xf32> to vector<4x256xf32>
    %c24_287 = arith.constant 24 : index
    %c0_288 = arith.constant 0 : index
    %295 = vector.load %arg10[%c24_287, %c0_288] : memref<32x256xf32, #tpu.memory_space<vmem>>, vector<4x256xf32>
    tpu.vector_store %arg10[%c24_287, %c0_288], %294 {strides = array<i32>} : memref<32x256xf32, #tpu.memory_space<vmem>>, vector<4x256xf32>,
    %c0_289 = arith.constant 0 : index
    %c12_290 = arith.constant 12 : index
    %c0_291 = arith.constant 0 : index
    %296 = vector.load %arg9[%c0_289, %c12_290, %c0_291] : memref<1x20x256xf32, #tpu.memory_space<vmem>>, vector<1x4x256xf32>
    %297 = vector.shape_cast %296 : vector<1x4x256xf32> to vector<4x256xf32>
    %c28_292 = arith.constant 28 : index
    %c0_293 = arith.constant 0 : index
    %298 = vector.load %arg10[%c28_292, %c0_293] : memref<32x256xf32, #tpu.memory_space<vmem>>, vector<4x256xf32>
    tpu.vector_store %arg10[%c28_292, %c0_293], %297 {strides = array<i32>} : memref<32x256xf32, #tpu.memory_space<vmem>>, vector<4x256xf32>,
    %c3_294 = arith.constant 3 : index
    %c0_295 = arith.constant 0 : index
    %c0_296 = arith.constant 0 : index
    %299 = vector.load %arg3[%c3_294, %c0_295, %c0_296] : memref<4x32x1xf32, #tpu.memory_space<vmem>>, vector<1x32x1xf32>
    %300 = vector.shape_cast %299 : vector<1x32x1xf32> to vector<32x1xf32>
    %c3_297 = arith.constant 3 : index
    %c0_298 = arith.constant 0 : index
    %c0_299 = arith.constant 0 : index
    %301 = vector.load %arg4[%c3_297, %c0_298, %c0_299] : memref<4x32x1xf32, #tpu.memory_space<vmem>>, vector<1x32x1xf32>
    %302 = vector.shape_cast %301 : vector<1x32x1xf32> to vector<32x1xf32>
    %c0_300 = arith.constant 0 : index
    %c0_301 = arith.constant 0 : index
    %303 = vector.load %arg10[%c0_300, %c0_301] : memref<32x256xf32, #tpu.memory_space<vmem>>, vector<32x256xf32>
    %304 = vector.broadcast %300 : vector<32x1xf32> to vector<32x256xf32>
    %305 = arith.mulf %303, %304 : vector<32x256xf32>
    %306 = vector.broadcast %302 : vector<32x1xf32> to vector<32x256xf32>
    %307 = arith.addf %305, %306 : vector<32x256xf32>
    %cst_302 = arith.constant 0.000000e+00 : f32
    %308 = vector.broadcast %cst_302 : f32 to vector<32x256xf32>
    %309 = arith.maximumf %307, %308 : vector<32x256xf32>
    %c3_303 = arith.constant 3 : index
    %c0_304 = arith.constant 0 : index
    %c0_305 = arith.constant 0 : index
    %310 = vector.load %arg5[%c3_303, %c0_304, %c0_305] : memref<4x4x32xf32, #tpu.memory_space<vmem>>, vector<1x4x32xf32>
    %311 = vector.shape_cast %310 : vector<1x4x32xf32> to vector<4x32xf32>
    %cst_306 = arith.constant dense<0.000000e+00> : vector<4x256xf32>
    %312 = tpu.matmul %311, %309, %cst_306 {dimension_numbers = #tpu.dot_dimension_numbers<[1], [0], [0], [1], [0, 0, 1, 1], [], []>} : vector<4x32xf32>, vector<32x256xf32>, vector<4x256xf32> -> vector<4x256xf32>
    %c3_307 = arith.constant 3 : index
    %c0_308 = arith.constant 0 : index
    %c0_309 = arith.constant 0 : index
    %313 = vector.load %arg6[%c3_307, %c0_308, %c0_309] : memref<4x4x1xf32, #tpu.memory_space<vmem>>, vector<1x4x1xf32>
    %314 = vector.shape_cast %313 : vector<1x4x1xf32> to vector<4x1xf32>
    %315 = vector.broadcast %314 : vector<4x1xf32> to vector<4x256xf32>
    %316 = arith.addf %312, %315 : vector<4x256xf32>
    %cst_310 = arith.constant 0.000000e+00 : f32
    %317 = vector.broadcast %cst_310 : f32 to vector<4x256xf32>
    %318 = arith.maximumf %316, %317 : vector<4x256xf32>
    %c17_i32_311 = arith.constant 17 : i32
    %319 = tpu.dynamic_rotate %318 by %c17_i32_311 dim 1 : vector<4x256xf32>, i32 -> vector<4x256xf32>
    %c0_312 = arith.constant 0 : index
    %c0_313 = arith.constant 0 : index
    %c0_314 = arith.constant 0 : index
    %320 = vector.load %arg2[%c0_312, %c0_313, %c0_314] : memref<9x1x256xf32, #tpu.memory_space<vmem>>, vector<1x1x256xf32>
    %321 = vector.shape_cast %320 : vector<1x1x256xf32> to vector<1x256xf32>
    %322 = vector.broadcast %321 : vector<1x256xf32> to vector<4x256xf32>
    %323 = arith.mulf %319, %322 : vector<4x256xf32>
    %c0_315 = arith.constant 0 : index
    %c0_316 = arith.constant 0 : index
    %324 = vector.load %arg11[%c0_315, %c0_316] : memref<36x256xf32, #tpu.memory_space<vmem>>, vector<4x256xf32>
    tpu.vector_store %arg11[%c0_315, %c0_316], %323 {strides = array<i32>} : memref<36x256xf32, #tpu.memory_space<vmem>>, vector<4x256xf32>,
    %c16_i32_317 = arith.constant 16 : i32
    %325 = tpu.dynamic_rotate %318 by %c16_i32_317 dim 1 : vector<4x256xf32>, i32 -> vector<4x256xf32>
    %c1_318 = arith.constant 1 : index
    %c0_319 = arith.constant 0 : index
    %c0_320 = arith.constant 0 : index
    %326 = vector.load %arg2[%c1_318, %c0_319, %c0_320] : memref<9x1x256xf32, #tpu.memory_space<vmem>>, vector<1x1x256xf32>
    %327 = vector.shape_cast %326 : vector<1x1x256xf32> to vector<1x256xf32>
    %328 = vector.broadcast %327 : vector<1x256xf32> to vector<4x256xf32>
    %329 = arith.mulf %325, %328 : vector<4x256xf32>
    %c4_321 = arith.constant 4 : index
    %c0_322 = arith.constant 0 : index
    %330 = vector.load %arg11[%c4_321, %c0_322] : memref<36x256xf32, #tpu.memory_space<vmem>>, vector<4x256xf32>
    tpu.vector_store %arg11[%c4_321, %c0_322], %329 {strides = array<i32>} : memref<36x256xf32, #tpu.memory_space<vmem>>, vector<4x256xf32>,
    %c15_i32_323 = arith.constant 15 : i32
    %331 = tpu.dynamic_rotate %318 by %c15_i32_323 dim 1 : vector<4x256xf32>, i32 -> vector<4x256xf32>
    %c2_324 = arith.constant 2 : index
    %c0_325 = arith.constant 0 : index
    %c0_326 = arith.constant 0 : index
    %332 = vector.load %arg2[%c2_324, %c0_325, %c0_326] : memref<9x1x256xf32, #tpu.memory_space<vmem>>, vector<1x1x256xf32>
    %333 = vector.shape_cast %332 : vector<1x1x256xf32> to vector<1x256xf32>
    %334 = vector.broadcast %333 : vector<1x256xf32> to vector<4x256xf32>
    %335 = arith.mulf %331, %334 : vector<4x256xf32>
    %c8_327 = arith.constant 8 : index
    %c0_328 = arith.constant 0 : index
    %336 = vector.load %arg11[%c8_327, %c0_328] : memref<36x256xf32, #tpu.memory_space<vmem>>, vector<4x256xf32>
    tpu.vector_store %arg11[%c8_327, %c0_328], %335 {strides = array<i32>} : memref<36x256xf32, #tpu.memory_space<vmem>>, vector<4x256xf32>,
    %c1_i32_329 = arith.constant 1 : i32
    %337 = tpu.dynamic_rotate %318 by %c1_i32_329 dim 1 : vector<4x256xf32>, i32 -> vector<4x256xf32>
    %c3_330 = arith.constant 3 : index
    %c0_331 = arith.constant 0 : index
    %c0_332 = arith.constant 0 : index
    %338 = vector.load %arg2[%c3_330, %c0_331, %c0_332] : memref<9x1x256xf32, #tpu.memory_space<vmem>>, vector<1x1x256xf32>
    %339 = vector.shape_cast %338 : vector<1x1x256xf32> to vector<1x256xf32>
    %340 = vector.broadcast %339 : vector<1x256xf32> to vector<4x256xf32>
    %341 = arith.mulf %337, %340 : vector<4x256xf32>
    %c12_333 = arith.constant 12 : index
    %c0_334 = arith.constant 0 : index
    %342 = vector.load %arg11[%c12_333, %c0_334] : memref<36x256xf32, #tpu.memory_space<vmem>>, vector<4x256xf32>
    tpu.vector_store %arg11[%c12_333, %c0_334], %341 {strides = array<i32>} : memref<36x256xf32, #tpu.memory_space<vmem>>, vector<4x256xf32>,
    %c16_335 = arith.constant 16 : index
    %c0_336 = arith.constant 0 : index
    %343 = vector.load %arg11[%c16_335, %c0_336] : memref<36x256xf32, #tpu.memory_space<vmem>>, vector<4x256xf32>
    tpu.vector_store %arg11[%c16_335, %c0_336], %318 {strides = array<i32>} : memref<36x256xf32, #tpu.memory_space<vmem>>, vector<4x256xf32>,
    %c255_i32_337 = arith.constant 255 : i32
    %344 = tpu.dynamic_rotate %318 by %c255_i32_337 dim 1 : vector<4x256xf32>, i32 -> vector<4x256xf32>
    %c5_338 = arith.constant 5 : index
    %c0_339 = arith.constant 0 : index
    %c0_340 = arith.constant 0 : index
    %345 = vector.load %arg2[%c5_338, %c0_339, %c0_340] : memref<9x1x256xf32, #tpu.memory_space<vmem>>, vector<1x1x256xf32>
    %346 = vector.shape_cast %345 : vector<1x1x256xf32> to vector<1x256xf32>
    %347 = vector.broadcast %346 : vector<1x256xf32> to vector<4x256xf32>
    %348 = arith.mulf %344, %347 : vector<4x256xf32>
    %c20_341 = arith.constant 20 : index
    %c0_342 = arith.constant 0 : index
    %349 = vector.load %arg11[%c20_341, %c0_342] : memref<36x256xf32, #tpu.memory_space<vmem>>, vector<4x256xf32>
    tpu.vector_store %arg11[%c20_341, %c0_342], %348 {strides = array<i32>} : memref<36x256xf32, #tpu.memory_space<vmem>>, vector<4x256xf32>,
    %c241_i32_343 = arith.constant 241 : i32
    %350 = tpu.dynamic_rotate %318 by %c241_i32_343 dim 1 : vector<4x256xf32>, i32 -> vector<4x256xf32>
    %c6_344 = arith.constant 6 : index
    %c0_345 = arith.constant 0 : index
    %c0_346 = arith.constant 0 : index
    %351 = vector.load %arg2[%c6_344, %c0_345, %c0_346] : memref<9x1x256xf32, #tpu.memory_space<vmem>>, vector<1x1x256xf32>
    %352 = vector.shape_cast %351 : vector<1x1x256xf32> to vector<1x256xf32>
    %353 = vector.broadcast %352 : vector<1x256xf32> to vector<4x256xf32>
    %354 = arith.mulf %350, %353 : vector<4x256xf32>
    %c24_347 = arith.constant 24 : index
    %c0_348 = arith.constant 0 : index
    %355 = vector.load %arg11[%c24_347, %c0_348] : memref<36x256xf32, #tpu.memory_space<vmem>>, vector<4x256xf32>
    tpu.vector_store %arg11[%c24_347, %c0_348], %354 {strides = array<i32>} : memref<36x256xf32, #tpu.memory_space<vmem>>, vector<4x256xf32>,
    %c240_i32_349 = arith.constant 240 : i32
    %356 = tpu.dynamic_rotate %318 by %c240_i32_349 dim 1 : vector<4x256xf32>, i32 -> vector<4x256xf32>
    %c7_350 = arith.constant 7 : index
    %c0_351 = arith.constant 0 : index
    %c0_352 = arith.constant 0 : index
    %357 = vector.load %arg2[%c7_350, %c0_351, %c0_352] : memref<9x1x256xf32, #tpu.memory_space<vmem>>, vector<1x1x256xf32>
    %358 = vector.shape_cast %357 : vector<1x1x256xf32> to vector<1x256xf32>
    %359 = vector.broadcast %358 : vector<1x256xf32> to vector<4x256xf32>
    %360 = arith.mulf %356, %359 : vector<4x256xf32>
    %c28_353 = arith.constant 28 : index
    %c0_354 = arith.constant 0 : index
    %361 = vector.load %arg11[%c28_353, %c0_354] : memref<36x256xf32, #tpu.memory_space<vmem>>, vector<4x256xf32>
    tpu.vector_store %arg11[%c28_353, %c0_354], %360 {strides = array<i32>} : memref<36x256xf32, #tpu.memory_space<vmem>>, vector<4x256xf32>,
    %c239_i32_355 = arith.constant 239 : i32
    %362 = tpu.dynamic_rotate %318 by %c239_i32_355 dim 1 : vector<4x256xf32>, i32 -> vector<4x256xf32>
    %c8_356 = arith.constant 8 : index
    %c0_357 = arith.constant 0 : index
    %c0_358 = arith.constant 0 : index
    %363 = vector.load %arg2[%c8_356, %c0_357, %c0_358] : memref<9x1x256xf32, #tpu.memory_space<vmem>>, vector<1x1x256xf32>
    %364 = vector.shape_cast %363 : vector<1x1x256xf32> to vector<1x256xf32>
    %365 = vector.broadcast %364 : vector<1x256xf32> to vector<4x256xf32>
    %366 = arith.mulf %362, %365 : vector<4x256xf32>
    %c32_359 = arith.constant 32 : index
    %c0_360 = arith.constant 0 : index
    %367 = vector.load %arg11[%c32_359, %c0_360] : memref<36x256xf32, #tpu.memory_space<vmem>>, vector<4x256xf32>
    tpu.vector_store %arg11[%c32_359, %c0_360], %366 {strides = array<i32>} : memref<36x256xf32, #tpu.memory_space<vmem>>, vector<4x256xf32>,
    %c3_361 = arith.constant 3 : index
    %c0_362 = arith.constant 0 : index
    %c0_363 = arith.constant 0 : index
    %368 = vector.load %arg7[%c3_361, %c0_362, %c0_363] : memref<4x4x36xf32, #tpu.memory_space<vmem>>, vector<1x4x36xf32>
    %369 = vector.shape_cast %368 : vector<1x4x36xf32> to vector<4x36xf32>
    %c0_364 = arith.constant 0 : index
    %c0_365 = arith.constant 0 : index
    %370 = vector.load %arg11[%c0_364, %c0_365] : memref<36x256xf32, #tpu.memory_space<vmem>>, vector<36x256xf32>
    %cst_366 = arith.constant dense<0.000000e+00> : vector<4x256xf32>
    %371 = tpu.matmul %369, %370, %cst_366 {dimension_numbers = #tpu.dot_dimension_numbers<[1], [0], [0], [1], [0, 0, 1, 1], [], []>} : vector<4x36xf32>, vector<36x256xf32>, vector<4x256xf32> -> vector<4x256xf32>
    %c3_367 = arith.constant 3 : index
    %c0_368 = arith.constant 0 : index
    %c0_369 = arith.constant 0 : index
    %372 = vector.load %arg8[%c3_367, %c0_368, %c0_369] : memref<4x4x1xf32, #tpu.memory_space<vmem>>, vector<1x4x1xf32>
    %373 = vector.shape_cast %372 : vector<1x4x1xf32> to vector<4x1xf32>
    %374 = vector.broadcast %373 : vector<4x1xf32> to vector<4x256xf32>
    %375 = arith.addf %371, %374 : vector<4x256xf32>
    %c0_370 = arith.constant 0 : index
    %c0_371 = arith.constant 0 : index
    %c0_372 = arith.constant 0 : index
    %376 = vector.load %arg9[%c0_370, %c0_371, %c0_372] : memref<1x20x256xf32, #tpu.memory_space<vmem>>, vector<1x4x256xf32>
    %377 = vector.shape_cast %376 : vector<1x4x256xf32> to vector<4x256xf32>
    %378 = vector.shape_cast %375 : vector<4x256xf32> to vector<1x4x256xf32>
    tpu.vector_store %arg9[%c0_370, %c0_371, %c0_372], %378 {strides = array<i32>} : memref<1x20x256xf32, #tpu.memory_space<vmem>>, vector<1x4x256xf32>,
    return
  }
  func.func @transform_0(%arg0: i32) -> (i32, i32, i32) {
    %c0_i32 = arith.constant 0 : i32
    %c0_i32_0 = arith.constant 0 : i32
    %c0_i32_1 = arith.constant 0 : i32
    return %arg0, %c0_i32, %c0_i32_0 : i32, i32, i32
  }
  func.func @transform_1(%arg0: i32) -> (i32, i32, i32) {
    %c0_i32 = arith.constant 0 : i32
    %c0_i32_0 = arith.constant 0 : i32
    %c0_i32_1 = arith.constant 0 : i32
    %c0_i32_2 = arith.constant 0 : i32
    return %c0_i32, %c0_i32_0, %c0_i32_1 : i32, i32, i32
  }
  func.func @transform_2(%arg0: i32) -> (i32, i32, i32) {
    %c0_i32 = arith.constant 0 : i32
    %c0_i32_0 = arith.constant 0 : i32
    %c0_i32_1 = arith.constant 0 : i32
    %c0_i32_2 = arith.constant 0 : i32
    return %c0_i32, %c0_i32_0, %c0_i32_1 : i32, i32, i32
  }
  func.func @transform_3(%arg0: i32) -> (i32, i32, i32) {
    %c0_i32 = arith.constant 0 : i32
    %c0_i32_0 = arith.constant 0 : i32
    %c0_i32_1 = arith.constant 0 : i32
    %c0_i32_2 = arith.constant 0 : i32
    return %c0_i32, %c0_i32_0, %c0_i32_1 : i32, i32, i32
  }
  func.func @transform_4(%arg0: i32) -> (i32, i32, i32) {
    %c0_i32 = arith.constant 0 : i32
    %c0_i32_0 = arith.constant 0 : i32
    %c0_i32_1 = arith.constant 0 : i32
    %c0_i32_2 = arith.constant 0 : i32
    return %c0_i32, %c0_i32_0, %c0_i32_1 : i32, i32, i32
  }
  func.func @transform_5(%arg0: i32) -> (i32, i32, i32) {
    %c0_i32 = arith.constant 0 : i32
    %c0_i32_0 = arith.constant 0 : i32
    %c0_i32_1 = arith.constant 0 : i32
    %c0_i32_2 = arith.constant 0 : i32
    return %c0_i32, %c0_i32_0, %c0_i32_1 : i32, i32, i32
  }
  func.func @transform_6(%arg0: i32) -> (i32, i32, i32) {
    %c0_i32 = arith.constant 0 : i32
    %c0_i32_0 = arith.constant 0 : i32
    %c0_i32_1 = arith.constant 0 : i32
    %c0_i32_2 = arith.constant 0 : i32
    return %c0_i32, %c0_i32_0, %c0_i32_1 : i32, i32, i32
  }
  func.func @transform_7(%arg0: i32) -> (i32, i32, i32) {
    %c0_i32 = arith.constant 0 : i32
    %c0_i32_0 = arith.constant 0 : i32
    %c0_i32_1 = arith.constant 0 : i32
    %c0_i32_2 = arith.constant 0 : i32
    return %c0_i32, %c0_i32_0, %c0_i32_1 : i32, i32, i32
  }
  func.func @transform_8(%arg0: i32) -> (i32, i32, i32) {
    %c0_i32 = arith.constant 0 : i32
    %c0_i32_0 = arith.constant 0 : i32
    %c0_i32_1 = arith.constant 0 : i32
    return %arg0, %c0_i32, %c0_i32_0 : i32, i32, i32
  }
}

</mosaic_0001>

<llo_original>
// kernel: dense_block_forward.1
$region0: #{dense_block_forward.1}
  #allocation0 [shape = 'u32[]', space=smem, size = 0x4, offset = 0x4, fixed_abs, tag = 'smem constant byte address 0x4 - core index']
  #allocation1 [shape = 'u32[144,128]{1,0:T(1,128)}', space=vmem, size = 0x12000, scoped, tag = 'internal scratch']
  #allocation2 [shape = 'f32[32,256]{1,0:T(8,128)}', space=vmem, size = 0x8000, scoped, tag = 'scratch operand']
  #allocation3 [shape = 'f32[36,256]{1,0:T(8,128)}', space=vmem, size = 0xa000, scoped, tag = 'scratch operand']
  %s0 = inlined_call_operand.hbm [shape: f32[2,4,256], index: 0, kind: input, shape index: {}]
  %s1 = inlined_call_operand.hbm [shape: f32[9,1,256], index: 1, kind: input, shape index: {}]
  %s2 = inlined_call_operand.hbm [shape: f32[4,32,1], index: 2, kind: input, shape index: {}]
  %s3 = inlined_call_operand.hbm [shape: f32[4,32,1], index: 3, kind: input, shape index: {}]
  %s4 = inlined_call_operand.hbm [shape: f32[4,4,32], index: 4, kind: input, shape index: {}]
  %s5 = inlined_call_operand.hbm [shape: f32[4,4,1], index: 5, kind: input, shape index: {}]
  %s6 = inlined_call_operand.hbm [shape: f32[4,4,36], index: 6, kind: input, shape index: {}]
  %s7 = inlined_call_operand.hbm [shape: f32[4,4,1], index: 7, kind: input, shape index: {}]
  %s8 = inlined_call_operand.hbm [shape: f32[2,20,256], index: 8, kind: output, shape index: {}]
  %s9 = sld [smem:[#allocation0]]
  $region97: #{dense_block_forward.1} parent=0
    _
  %s11 = ssub.s32 1, %s9
  %s12 = scalar_select 0, %s11, %s9
  $region1: #{dense_block_forward.1} parent=0
    #allocation4 [shape = 'u8[8192]{0}', space=vmem, size = 0x2000, scoped, tag = 'input window, operand 0']
    #allocation5 [shape = 's32[2]{0}', space=sflag, size = 0x8, scoped, tag = 'scoped memory for dense_block_forward.1']
    #allocation6 [shape = 's32[2]{0}', space=sflag, size = 0x8, scoped, tag = 'scoped memory for dense_block_forward.1']
    #allocation7 [shape = 'u8[9216]{0}', space=vmem, size = 0x2400, scoped, tag = 'input window, operand 1, single buffered']
    #allocation8 [shape = 's32[1]{0}', space=sflag, size = 0x4, scoped, tag = 'scoped memory for dense_block_forward.1']
    #allocation9 [shape = 'u8[65536]{0}', space=vmem, size = 0x10000, scoped, tag = 'input window, operand 2, single buffered']
    #allocation10 [shape = 'u8[65536]{0}', space=vmem, size = 0x10000, scoped, tag = 'input window, operand 3, single buffered']
    #allocation11 [shape = 's32[1]{0}', space=sflag, size = 0x4, scoped, tag = 'scoped memory for dense_block_forward.1']
    #allocation12 [shape = 'u8[8192]{0}', space=vmem, size = 0x2000, scoped, tag = 'input window, operand 4, single buffered']
    #allocation13 [shape = 'u8[8192]{0}', space=vmem, size = 0x2000, scoped, tag = 'input window, operand 5, single buffered']
    #allocation14 [shape = 's32[1]{0}', space=sflag, size = 0x4, scoped, tag = 'scoped memory for dense_block_forward.1']
    #allocation15 [shape = 'u8[8192]{0}', space=vmem, size = 0x2000, scoped, tag = 'input window, operand 6, single buffered']
    #allocation16 [shape = 'u8[8192]{0}', space=vmem, size = 0x2000, scoped, tag = 'input window, operand 7, single buffered']
    #allocation17 [shape = 's32[1]{0}', space=sflag, size = 0x4, scoped, tag = 'scoped memory for dense_block_forward.1']
    #allocation18 [shape = 'u8[49152]{0}', space=vmem, size = 0xc000, scoped, tag = 'output window, operand 0']
    %13 = vsyncpa [#allocation5], 0
    %s14 = scalar_lea.sflag [#allocation5], 1
    %15 = vsyncpa %s14, 0
    %16 = vsyncpa [#allocation8], 0
    %17 = vsyncpa [#allocation11], 0
    %18 = vsyncpa [#allocation14], 0
    %19 = vsyncpa [#allocation17], 0
    %20 = vsyncpa [#allocation6], 0
    %s21 = scalar_lea.sflag [#allocation6], 1
    %22 = vsyncpa %s21, 0
    loop: start=0, step=1, limit=4
    $region2: #{dense_block_forward.1} parent=1 // loop_pre_header
      _
    $region3: #{dense_block_forward.1} parent=1 // loop_header
      %s24 = sphi 0, %s28
      %p25 = scmp.ge.s32.totalorder %s24, 4
      %s34 = sphi 0, %s36
      %s37 = sphi 0, %s34
      %s38 = sphi 0, %s37
      %s54 = sphi 0, %s38
      %s58 = sphi 0, %s58
      %s60 = sphi 0, %s58
      %s61 = sphi 0, %s60
      %s75 = sphi 0, %s61
      %s79 = sphi 0, %s79
      %s81 = sphi 0, %s79
      %s82 = sphi 0, %s81
      %s96 = sphi 0, %s82
      %s100 = sphi 0, %s100
      %s102 = sphi 0, %s100
      %s103 = sphi 0, %s102
      %s117 = sphi 0, %s103
      %s121 = sphi 0, %s121
      %s123 = sphi 0, %s121
      %s124 = sphi 0, %s123
      %s138 = sphi 0, %s124
      %s142 = sphi 0, %s142
      %s144 = sphi 0, %s142
      %s145 = sphi 0, %s144
      %s159 = sphi 0, %s145
      %s163 = sphi 0, %s163
      %s165 = sphi 0, %s163
      %s166 = sphi 0, %s165
      %s180 = sphi 0, %s166
      %s184 = sphi 0, %s184
      %s186 = sphi 0, %s184
      %s187 = sphi 0, %s186
      %s201 = sphi 0, %s187
      %s207 = sphi 0, %s209
      %s210 = sphi 0, %s207
      %s211 = sphi 0, %s210
      %s227 = sphi 0, %s211
    $region4: #{dense_block_forward.1} parent=1 // loop_header_branch
      %27 = sbr.rel (%p25) target = $region8
    $region5: #{dense_block_forward.1} parent=1 // loop_body
      %s29 = ssub.s32 %s24, 1
      %s30 = ssub.s32 %s24, 2
      %s31 = sadd.s32 %s24, 1
      %s32 = ssub.s32 %s24, %s31
      %p33 = scmp.eq.s32.totalorder %s32, 0
      %s35 = sadd.s32 %s34, 1
      %s36 = scalar_select %p33, %s34, %s35
      %p39 = pneg %p33
      %p40 = scmp.eq.s32.totalorder %s24, 1
      %p41 = por %p39, %p40
      %p42 = scmp.ne.s32.totalorder %s34, %s37
      %p43 = scmp.eq.s32.totalorder %s24, 0
      %p44 = por %p42, %p43
      %p45 = scmp.ne.s32.totalorder %s34, %s37
      %p46 = scmp.eq.s32.totalorder %s29, 1
      %p47 = por %p45, %p46
      %p48 = scmp.ne.s32.totalorder %s37, %s38
      %p49 = scmp.eq.s32.totalorder %s29, 0
      %p50 = por %p48, %p49
      %p51 = scmp.ne.s32.totalorder %s37, %s38
      %p52 = scmp.eq.s32.totalorder %s30, 1
      %p53 = por %p51, %p52
      %p55 = scmp.ne.s32.totalorder %s38, %s54
      %p56 = scmp.eq.s32.totalorder %s30, 0
      %p57 = por %p55, %p56
      %s59 = sadd.s32 %s58, 1
      %p62 = scmp.eq.s32.totalorder %s24, 1
      %p63 = scmp.ne.s32.totalorder %s58, %s60
      %p64 = scmp.eq.s32.totalorder %s24, 0
      %p65 = por %p63, %p64
      %p66 = scmp.ne.s32.totalorder %s58, %s60
      %p67 = scmp.eq.s32.totalorder %s29, 1
      %p68 = por %p66, %p67
      %p69 = scmp.ne.s32.totalorder %s60, %s61
      %p70 = scmp.eq.s32.totalorder %s29, 0
      %p71 = por %p69, %p70
      %p72 = scmp.ne.s32.totalorder %s60, %s61
      %p73 = scmp.eq.s32.totalorder %s30, 1
      %p74 = por %p72, %p73
      %p76 = scmp.ne.s32.totalorder %s61, %s75
      %p77 = scmp.eq.s32.totalorder %s30, 0
      %p78 = por %p76, %p77
      %s80 = sadd.s32 %s79, 1
      %p83 = scmp.eq.s32.totalorder %s24, 1
      %p84 = scmp.ne.s32.totalorder %s79, %s81
      %p85 = scmp.eq.s32.totalorder %s24, 0
      %p86 = por %p84, %p85
      %p87 = scmp.ne.s32.totalorder %s79, %s81
      %p88 = scmp.eq.s32.totalorder %s29, 1
      %p89 = por %p87, %p88
      %p90 = scmp.ne.s32.totalorder %s81, %s82
      %p91 = scmp.eq.s32.totalorder %s29, 0
      %p92 = por %p90, %p91
      %p93 = scmp.ne.s32.totalorder %s81, %s82
      %p94 = scmp.eq.s32.totalorder %s30, 1
      %p95 = por %p93, %p94
      %p97 = scmp.ne.s32.totalorder %s82, %s96
      %p98 = scmp.eq.s32.totalorder %s30, 0
      %p99 = por %p97, %p98
      %s101 = sadd.s32 %s100, 1
      %p104 = scmp.eq.s32.totalorder %s24, 1
      %p105 = scmp.ne.s32.totalorder %s100, %s102
      %p106 = scmp.eq.s32.totalorder %s24, 0
      %p107 = por %p105, %p106
      %p108 = scmp.ne.s32.totalorder %s100, %s102
      %p109 = scmp.eq.s32.totalorder %s29, 1
      %p110 = por %p108, %p109
      %p111 = scmp.ne.s32.totalorder %s102, %s103
      %p112 = scmp.eq.s32.totalorder %s29, 0
      %p113 = por %p111, %p112
      %p114 = scmp.ne.s32.totalorder %s102, %s103
      %p115 = scmp.eq.s32.totalorder %s30, 1
      %p116 = por %p114, %p115
      %p118 = scmp.ne.s32.totalorder %s103, %s117
      %p119 = scmp.eq.s32.totalorder %s30, 0
      %p120 = por %p118, %p119
      %s122 = sadd.s32 %s121, 1
      %p125 = scmp.eq.s32.totalorder %s24, 1
      %p126 = scmp.ne.s32.totalorder %s121, %s123
      %p127 = scmp.eq.s32.totalorder %s24, 0
      %p128 = por %p126, %p127
      %p129 = scmp.ne.s32.totalorder %s121, %s123
      %p130 = scmp.eq.s32.totalorder %s29, 1
      %p131 = por %p129, %p130
      %p132 = scmp.ne.s32.totalorder %s123, %s124
      %p133 = scmp.eq.s32.totalorder %s29, 0
      %p134 = por %p132, %p133
      %p135 = scmp.ne.s32.totalorder %s123, %s124
      %p136 = scmp.eq.s32.totalorder %s30, 1
      %p137 = por %p135, %p136
      %p139 = scmp.ne.s32.totalorder %s124, %s138
      %p140 = scmp.eq.s32.totalorder %s30, 0
      %p141 = por %p139, %p140
      %s143 = sadd.s32 %s142, 1
      %p146 = scmp.eq.s32.totalorder %s24, 1
      %p147 = scmp.ne.s32.totalorder %s142, %s144
      %p148 = scmp.eq.s32.totalorder %s24, 0
      %p149 = por %p147, %p148
      %p150 = scmp.ne.s32.totalorder %s142, %s144
      %p151 = scmp.eq.s32.totalorder %s29, 1
      %p152 = por %p150, %p151
      %p153 = scmp.ne.s32.totalorder %s144, %s145
      %p154 = scmp.eq.s32.totalorder %s29, 0
      %p155 = por %p153, %p154
      %p156 = scmp.ne.s32.totalorder %s144, %s145
      %p157 = scmp.eq.s32.totalorder %s30, 1
      %p158 = por %p156, %p157
      %p160 = scmp.ne.s32.totalorder %s145, %s159
      %p161 = scmp.eq.s32.totalorder %s30, 0
      %p162 = por %p160, %p161
      %s164 = sadd.s32 %s163, 1
      %p167 = scmp.eq.s32.totalorder %s24, 1
      %p168 = scmp.ne.s32.totalorder %s163, %s165
      %p169 = scmp.eq.s32.totalorder %s24, 0
      %p170 = por %p168, %p169
      %p171 = scmp.ne.s32.totalorder %s163, %s165
      %p172 = scmp.eq.s32.totalorder %s29, 1
      %p173 = por %p171, %p172
      %p174 = scmp.ne.s32.totalorder %s165, %s166
      %p175 = scmp.eq.s32.totalorder %s29, 0
      %p176 = por %p174, %p175
      %p177 = scmp.ne.s32.totalorder %s165, %s166
      %p178 = scmp.eq.s32.totalorder %s30, 1
      %p179 = por %p177, %p178
      %p181 = scmp.ne.s32.totalorder %s166, %s180
      %p182 = scmp.eq.s32.totalorder %s30, 0
      %p183 = por %p181, %p182
      %s185 = sadd.s32 %s184, 1
      %p188 = scmp.eq.s32.totalorder %s24, 1
      %p189 = scmp.ne.s32.totalorder %s184, %s186
      %p190 = scmp.eq.s32.totalorder %s24, 0
      %p191 = por %p189, %p190
      %p192 = scmp.ne.s32.totalorder %s184, %s186
      %p193 = scmp.eq.s32.totalorder %s29, 1
      %p194 = por %p192, %p193
      %p195 = scmp.ne.s32.totalorder %s186, %s187
      %p196 = scmp.eq.s32.totalorder %s29, 0
      %p197 = por %p195, %p196
      %p198 = scmp.ne.s32.totalorder %s186, %s187
      %p199 = scmp.eq.s32.totalorder %s30, 1
      %p200 = por %p198, %p199
      %p202 = scmp.ne.s32.totalorder %s187, %s201
      %p203 = scmp.eq.s32.totalorder %s30, 0
      %p204 = por %p202, %p203
      %s205 = ssub.s32 %s24, %s31
      %p206 = scmp.eq.s32.totalorder %s205, 0
      %s208 = sadd.s32 %s207, 1
      %s209 = scalar_select %p206, %s207, %s208
      %p212 = pneg %p206
      %p213 = scmp.eq.s32.totalorder %s24, 1
      %p214 = por %p212, %p213
      %p215 = scmp.ne.s32.totalorder %s207, %s210
      %p216 = scmp.eq.s32.totalorder %s24, 0
      %p217 = por %p215, %p216
      %p218 = scmp.ne.s32.totalorder %s207, %s210
      %p219 = scmp.eq.s32.totalorder %s29, 1
      %p220 = por %p218, %p219
      %p221 = scmp.ne.s32.totalorder %s210, %s211
      %p222 = scmp.eq.s32.totalorder %s29, 0
      %p223 = por %p221, %p222
      %p224 = scmp.ne.s32.totalorder %s210, %s211
      %p225 = scmp.eq.s32.totalorder %s30, 1
      %p226 = por %p224, %p225
      %p228 = scmp.ne.s32.totalorder %s211, %s227
      %p229 = scmp.eq.s32.totalorder %s30, 0
      %p230 = por %p228, %p229
      %p231 = scmp.le.s32.totalorder 1, %s24
      %p232 = scmp.lt.s32.totalorder %s24, 3
      %p233 = pnand %p231, %p232
      %p234 = pneg %p233
      // Predicated region
      $region9: #{dense_block_forward.1} parent=5 // pred_check
        _
      $region10: #{dense_block_forward.1} parent=5 // pred_check_branch
        %236 = sbr.rel (%p233) target = $region12
      $region11: #{dense_block_forward.1} parent=5 // pred_region
        %s237 = ssub.s32 %s24, 1
        // Predicated region
        $region13: #{dense_block_forward.1} parent=11 // pred_check
          %p238 = pneg %p71
        $region14: #{dense_block_forward.1} parent=11 // pred_check_branch
          %240 = sbr.rel (%p238) target = $region16
        $region15: #{dense_block_forward.1} parent=11 // pred_region
          %s242 = ssub.s32 288, 288
          %243 = vsyncadd [#allocation8], %s242
          %s244 = sshll.u32 [#allocation7], 4
          %s245 = int_to_ptr.vmem [resolvable:$true] %s244
          %250 = dma.hbm_to_vmem [thread:$0]  %s1, 288, %s245, [#allocation8], 32, 32, 2
        $region16: #{dense_block_forward.1} parent=11 // pred_fallthru
          _
        // Predicated region
        $region17: #{dense_block_forward.1} parent=11 // pred_check
          %p251 = pneg %p92
        $region18: #{dense_block_forward.1} parent=11 // pred_check_branch
          %253 = sbr.rel (%p251) target = $region20
        $region19: #{dense_block_forward.1} parent=11 // pred_region
          %s255 = ssub.s32 2048, 2048
          %256 = vsyncadd [#allocation8], %s255
          %s257 = sshll.u32 [#allocation9], 4
          %s258 = int_to_ptr.vmem [resolvable:$true] %s257
          %263 = dma.hbm_to_vmem [thread:$0]  %s2, 2048, %s258, [#allocation8], 128, 128, 8
        $region20: #{dense_block_forward.1} parent=11 // pred_fallthru
          _
        // Predicated region
        $region21: #{dense_block_forward.1} parent=11 // pred_check
          %p264 = pneg %p113
        $region22: #{dense_block_forward.1} parent=11 // pred_check_branch
          %266 = sbr.rel (%p264) target = $region24
        $region23: #{dense_block_forward.1} parent=11 // pred_region
          %s268 = ssub.s32 2048, 2048
          %269 = vsyncadd [#allocation11], %s268
          %s270 = sshll.u32 [#allocation10], 4
          %s271 = int_to_ptr.vmem [resolvable:$true] %s270
          %276 = dma.hbm_to_vmem [thread:$0]  %s3, 2048, %s271, [#allocation11], 128, 128, 8
        $region24: #{dense_block_forward.1} parent=11 // pred_fallthru
          _
        // Predicated region
        $region25: #{dense_block_forward.1} parent=11 // pred_check
          %p277 = pneg %p134
        $region26: #{dense_block_forward.1} parent=11 // pred_check_branch
          %279 = sbr.rel (%p277) target = $region28
        $region27: #{dense_block_forward.1} parent=11 // pred_region
          %s281 = ssub.s32 256, 256
          %282 = vsyncadd [#allocation11], %s281
          %s283 = sshll.u32 [#allocation12], 4
          %s284 = int_to_ptr.vmem [resolvable:$true] %s283
          %289 = dma.hbm_to_vmem [thread:$0]  %s4, 256, %s284, [#allocation11], 64, 64, 4
        $region28: #{dense_block_forward.1} parent=11 // pred_fallthru
          _
        // Predicated region
        $region29: #{dense_block_forward.1} parent=11 // pred_check
          %p290 = pneg %p155
        $region30: #{dense_block_forward.1} parent=11 // pred_check_branch
          %292 = sbr.rel (%p290) target = $region32
        $region31: #{dense_block_forward.1} parent=11 // pred_region
          %s294 = ssub.s32 256, 256
          %295 = vsyncadd [#allocation14], %s294
          %s296 = sshll.u32 [#allocation13], 4
          %s297 = int_to_ptr.vmem [resolvable:$true] %s296
          %302 = dma.hbm_to_vmem [thread:$0]  %s5, 256, %s297, [#allocation14], 64, 64, 4
        $region32: #{dense_block_forward.1} parent=11 // pred_fallthru
          _
        // Predicated region
        $region33: #{dense_block_forward.1} parent=11 // pred_check
          %p303 = pneg %p176
        $region34: #{dense_block_forward.1} parent=11 // pred_check_branch
          %305 = sbr.rel (%p303) target = $region36
        $region35: #{dense_block_forward.1} parent=11 // pred_region
          %s307 = ssub.s32 256, 256
          %308 = vsyncadd [#allocation14], %s307
          %s309 = sshll.u32 [#allocation15], 4
          %s310 = int_to_ptr.vmem [resolvable:$true] %s309
          %315 = dma.hbm_to_vmem [thread:$0]  %s6, 256, %s310, [#allocation14], 64, 64, 4
        $region36: #{dense_block_forward.1} parent=11 // pred_fallthru
          _
        // Predicated region
        $region37: #{dense_block_forward.1} parent=11 // pred_check
          %p316 = pneg %p197
        $region38: #{dense_block_forward.1} parent=11 // pred_check_branch
          %318 = sbr.rel (%p316) target = $region40
        $region39: #{dense_block_forward.1} parent=11 // pred_region
          %s320 = ssub.s32 256, 256
          %321 = vsyncadd [#allocation17], %s320
          %s322 = sshll.u32 [#allocation16], 4
          %s323 = int_to_ptr.vmem [resolvable:$true] %s322
          %328 = dma.hbm_to_vmem [thread:$0]  %s7, 256, %s323, [#allocation17], 64, 64, 4
        $region40: #{dense_block_forward.1} parent=11 // pred_fallthru
          _
      $region12: #{dense_block_forward.1} parent=5 // pred_fallthru
        _
      %p329 = scmp.lt.s32.totalorder %s24, 2
      // Predicated region
      $region41: #{dense_block_forward.1} parent=5 // pred_check
        %p330 = pneg %p329
      $region42: #{dense_block_forward.1} parent=5 // pred_check_branch
        %332 = sbr.rel (%p330) target = $region44
      $region43: #{dense_block_forward.1} parent=5 // pred_region
        // Predicated region
        $region45: #{dense_block_forward.1} parent=43 // pred_check
          %p333 = pneg %p44
        $region46: #{dense_block_forward.1} parent=43 // pred_check_branch
          %335 = sbr.rel (%p333) target = $region48
        $region47: #{dense_block_forward.1} parent=43 // pred_region
          %s336 = sand.u32 %s34, 1
          %s337 = scalar_lea.sflag [#allocation5], %s336
          %s338 = sand.u32 %s34, 1
          %s339 = smul.addr %s338, 8
          %s340 = scalar_lea.vmem [#allocation4], %s339
          %s342 = ssub.s32 128, 128
          %343 = vsyncadd %s337, %s342
          %s344 = smul.addr %s24, 2
          %s345 = smul.addr %s344, 64
          %s346 = scalar_lea.hbm %s0, %s345
          %s348 = sshll.u32 %s340, 4
          %s349 = int_to_ptr.vmem [resolvable:$true] %s348
          %351 = dma.hbm_to_vmem [thread:$0]  %s346, 128, %s349, %s337
        $region48: #{dense_block_forward.1} parent=43 // pred_fallthru
          _
      $region44: #{dense_block_forward.1} parent=5 // pred_fallthru
        _
      %p352 = scmp.le.s32.totalorder 1, %s24
      %p353 = scmp.lt.s32.totalorder %s24, 3
      %p354 = pnand %p352, %p353
      %p355 = pneg %p354
      // Predicated region
      $region49: #{dense_block_forward.1} parent=5 // pred_check
        _
      $region50: #{dense_block_forward.1} parent=5 // pred_check_branch
        %357 = sbr.rel (%p354) target = $region52
      $region51: #{dense_block_forward.1} parent=5 // pred_region
        %s358 = ssub.s32 %s24, 1
        %s359 = sand.u32 %s37, 1
        %s360 = scalar_lea.sflag [#allocation5], %s359
        %s361 = sand.u32 %s37, 1
        %s362 = smul.addr %s361, 8
        %s363 = scalar_lea.vmem [#allocation4], %s362
        // Predicated region
        $region53: #{dense_block_forward.1} parent=51 // pred_check
          %p364 = pneg %p50
        $region54: #{dense_block_forward.1} parent=51 // pred_check_branch
          %366 = sbr.rel (%p364) target = $region56
        $region55: #{dense_block_forward.1} parent=51 // pred_region
          %367 = dma.done %s360, 128
        $region56: #{dense_block_forward.1} parent=51 // pred_fallthru
          _
        // Predicated region
        $region57: #{dense_block_forward.1} parent=51 // pred_check
          %p368 = pneg %p71
        $region58: #{dense_block_forward.1} parent=51 // pred_check_branch
          %370 = sbr.rel (%p368) target = $region60
        $region59: #{dense_block_forward.1} parent=51 // pred_region
          %371 = dma.done [#allocation8], 288
        $region60: #{dense_block_forward.1} parent=51 // pred_fallthru
          _
        // Predicated region
        $region61: #{dense_block_forward.1} parent=51 // pred_check
          %p372 = pneg %p92
        $region62: #{dense_block_forward.1} parent=51 // pred_check_branch
          %374 = sbr.rel (%p372) target = $region64
        $region63: #{dense_block_forward.1} parent=51 // pred_region
          %375 = dma.done [#allocation8], 2048
        $region64: #{dense_block_forward.1} parent=51 // pred_fallthru
          _
        // Predicated region
        $region65: #{dense_block_forward.1} parent=51 // pred_check
          %p376 = pneg %p113
        $region66: #{dense_block_forward.1} parent=51 // pred_check_branch
          %378 = sbr.rel (%p376) target = $region68
        $region67: #{dense_block_forward.1} parent=51 // pred_region
          %379 = dma.done [#allocation11], 2048
        $region68: #{dense_block_forward.1} parent=51 // pred_fallthru
          _
        // Predicated region
        $region69: #{dense_block_forward.1} parent=51 // pred_check
          %p380 = pneg %p134
        $region70: #{dense_block_forward.1} parent=51 // pred_check_branch
          %382 = sbr.rel (%p380) target = $region72
        $region71: #{dense_block_forward.1} parent=51 // pred_region
          %383 = dma.done [#allocation11], 256
        $region72: #{dense_block_forward.1} parent=51 // pred_fallthru
          _
        // Predicated region
        $region73: #{dense_block_forward.1} parent=51 // pred_check
          %p384 = pneg %p155
        $region74: #{dense_block_forward.1} parent=51 // pred_check_branch
          %386 = sbr.rel (%p384) target = $region76
        $region75: #{dense_block_forward.1} parent=51 // pred_region
          %387 = dma.done [#allocation14], 256
        $region76: #{dense_block_forward.1} parent=51 // pred_fallthru
          _
        // Predicated region
        $region77: #{dense_block_forward.1} parent=51 // pred_check
          %p388 = pneg %p176
        $region78: #{dense_block_forward.1} parent=51 // pred_check_branch
          %390 = sbr.rel (%p388) target = $region80
        $region79: #{dense_block_forward.1} parent=51 // pred_region
          %391 = dma.done [#allocation14], 256
        $region80: #{dense_block_forward.1} parent=51 // pred_fallthru
          _
        // Predicated region
        $region81: #{dense_block_forward.1} parent=51 // pred_check
          %p392 = pneg %p197
        $region82: #{dense_block_forward.1} parent=51 // pred_check_branch
          %394 = sbr.rel (%p392) target = $region84
        $region83: #{dense_block_forward.1} parent=51 // pred_region
          %395 = dma.done [#allocation17], 256
        $region84: #{dense_block_forward.1} parent=51 // pred_fallthru
          _
        %s396 = sand.u32 %s37, 1
        %s397 = scalar_lea.sflag [#allocation5], %s396
        %s398 = sand.u32 %s37, 1
        %s399 = smul.addr %s398, 8
        %s400 = scalar_lea.vmem [#allocation4], %s399
        %p401 = pneg %p50
        %p402 = pneg %p47
        %p403 = pneg %p71
        %p404 = pneg %p68
        %p405 = pneg %p92
        %p406 = pneg %p89
        %p407 = pneg %p113
        %p408 = pneg %p110
        %p409 = pneg %p134
        %p410 = pneg %p131
        %p411 = pneg %p155
        %p412 = pneg %p152
        %p413 = pneg %p176
        %p414 = pneg %p173
        %p415 = pneg %p197
        %p416 = pneg %p194
        %p417 = pneg %p223
        %p418 = pneg %p220
        %s419 = sand.u32 %s210, 1
        %s420 = scalar_lea.sflag [#allocation6], %s419
        %s421 = sand.u32 %s210, 1
        %s422 = smul.addr %s421, 48
        %s423 = scalar_lea.vmem [#allocation18], %s422
        %v424 = vld [vmem:[%s363] sm:$0xff]
        %v426 = vcombine.high %v424, %v424
        %428 = vst [vmem:[%s423 + $0x20] sm:$0xf] %v424
        %429 = vst [vmem:[%s423 + $0x28] sm:$0xf] %v426
        %v430 = vld [vmem:[%s423 + $0x20] sm:$0xf]
        %v431 = vld [vmem:[%s423 + $0x28] sm:$0xf]
        %432 = vst [vmem:[#allocation2] sm:$0xf] %v430
        %433 = vst [vmem:[#allocation2 + $0x8] sm:$0xf] %v431
        %v434 = vld [vmem:[#allocation9] sm:$0xff]
        %v435 = vld [vmem:[#allocation10] sm:$0xff]
        %v436 = vld [vmem:[#allocation2] sm:$0xf]
        %v437 = vld [vmem:[#allocation2 + $0x8] sm:$0xf]
        %439 = vset.pattern.permute.xlu0 0
        %440 = vperm.xlu0 %439, %v434
        %v441 = vpop.permute.xlu0 %440
        %v443 = vmul.f32 %v436, %v441
        %v444 = vmul.f32 %v437, %v441
        %446 = vset.pattern.permute.xlu0 0
        %447 = vperm.xlu0 %446, %v435
        %v448 = vpop.permute.xlu0 %447
        %v450 = vadd.f32 %v443, %v448
        %v451 = vadd.f32 %v444, %v448
        %v452 = vmax.f32 %v450, 0.0
        %v453 = vmax.f32 %v451, 0.0
        %v454 = vld [vmem:[#allocation12] sm:$0xf]
        %v455 = vld [vmem:[#allocation13] sm:$0xf]
        %457 = vset.pattern.permute.xlu0 0
        %458 = vperm.xlu0 %457, %v455
        %v459 = vpop.permute.xlu0 %458
        %vm461 = vcmask 31744
        %v463 = vsel %vm461, %v454, 0
        %vm465 = vcmask 1043456
        %v467 = vsel %vm465, %v452, 0
        %v470 = vsel %vm465, %v453, 0
        %472 = vmatprep.subr.mxu0 %v470
        %473 = vmatpush1.msra.mxu0 %v467
        %474 = vmatprep.subr.mxu0 0.0
        %475 = vmatpush1.msra.mxu0 0.0
        %476 = vmatprep.subr.mxu0 0.0
        %477 = vmatpush1.msra.mxu0 0.0
        %478 = vmatprep.subr.mxu0 0.0
        %479 = vmatpush1.msra.mxu0 0.0
        %480 = vmatprep.subr.mxu0 0.0
        %481 = vmatpush1.msra.mxu0 0.0
        %482 = vmatprep.subr.mxu0 0.0
        %483 = vmatpush1.msra.mxu0 0.0
        %484 = vmatprep.subr.mxu0 0.0
        %485 = vmatpush1.msra.mxu0 0.0
        %486 = vmatprep.subr.mxu0 0.0
        %487 = vmatpush1.msra.mxu0 0.0
        %488 = vmatprep.subr.mxu0 0.0
        %489 = vmatpush1.msra.mxu0 0.0
        %490 = vmatprep.subr.mxu0 0.0
        %491 = vmatpush1.msra.mxu0 0.0
        %492 = vmatprep.subr.mxu0 0.0
        %493 = vmatpush1.msra.mxu0 0.0
        %494 = vmatprep.subr.mxu0 0.0
        %495 = vmatpush1.msra.mxu0 0.0
        %496 = vmatprep.subr.mxu0 0.0
        %497 = vmatpush1.msra.mxu0 0.0
        %498 = vmatprep.subr.mxu0 0.0
        %499 = vmatpush1.msra.mxu0 0.0
        %500 = vmatprep.subr.mxu0 0.0
        %501 = vmatpush1.msra.mxu0 0.0
        %502 = vmatprep.subr.mxu0 0.0
        %503 = vmatpush1.msra.mxu0 0.0
        %504 = vmatprep.subr.mxu0 0.0
        %505 = vmatpush1.msra.mxu0 0.0
        %506 = vmatprep.subr.mxu0 0.0
        %507 = vmatpush1.msra.mxu0 0.0
        %508 = vmatprep.subr.mxu0 0.0
        %509 = vmatpush1.msra.mxu0 0.0
        %510 = vmatprep.subr.mxu0 0.0
        %511 = vmatpush1.msra.mxu0 0.0
        %512 = vmatprep.subr.mxu0 0.0
        %513 = vmatpush1.msra.mxu0 0.0
        %514 = vmatprep.subr.mxu0 0.0
        %515 = vmatpush1.msra.mxu0 0.0
        %516 = vmatprep.subr.mxu0 0.0
        %517 = vmatpush1.msra.mxu0 0.0
        %518 = vmatprep.subr.mxu0 0.0
        %519 = vmatpush1.msra.mxu0 0.0
        %520 = vmatprep.subr.mxu0 0.0
        %521 = vmatpush1.msra.mxu0 0.0
        %522 = vmatprep.subr.mxu0 0.0
        %523 = vmatpush1.msra.mxu0 0.0
        %524 = vmatprep.subr.mxu0 0.0
        %525 = vmatpush1.msra.mxu0 0.0
        %526 = vmatprep.subr.mxu0 0.0
        %527 = vmatpush1.msra.mxu0 0.0
        %528 = vmatprep.subr.mxu0 0.0
        %529 = vmatpush1.msra.mxu0 0.0
        %530 = vmatprep.subr.mxu0 0.0
        %531 = vmatpush1.msra.mxu0 0.0
        %532 = vmatprep.subr.mxu0 0.0
        %533 = vmatpush1.msra.mxu0 0.0
        %534 = vmatprep.subr.mxu0 0.0
        %535 = vmatpush1.msra.mxu0 0.0
        %536 = vmatprep.mubr.f32.mxu0 0.0
        %537 = vmatmul.mubr.f32.gmra.mrb[0].mxu0 %v463
        %v538 = vpop.f32.mrb[0].mxu0
        %v539 = vadd.f32 %v459, %v538
        %v540 = vpop.f32.mrb[0].mxu0
        %v541 = vadd.f32 %v459, %v540
        %542 = vdwg.mxu0
        %v543 = vmax.f32 %v539, 0.0
        %v544 = vmax.f32 %v541, 0.0
        %545 = vrot.lane.b32.xlu0 %v543, 17
        %v546 = vpop.permute.xlu0 %545
        %547 = vrot.lane.b32.xlu0 %v544, 17
        %v548 = vpop.permute.xlu0 %547
        %v549 = vlaneseq
        %v550 = vand.u32 %v549, 127
        %vm551 = vcmp.lt.s32.totalorder %v550, 17
        %v552 = vsel %vm551, %v546, %v548
        %v553 = vsel %vm551, %v548, %v546
        %v554 = vld [vmem:[#allocation7] sm:$0x3]
        %v556 = vlaneseq
        %v557 = vshrl.u32 %v556, 7
        %v558 = vsub.s32 0, %v557
        %v559 = vrot.slane %v554, %v558
        %v560 = vlaneseq
        %v561 = vshrl.u32 %v560, 7
        %v562 = vsub.s32 1, %v561
        %v563 = vrot.slane %v554, %v562
        %v566 = vmul.f32 %v553, %v559
        %v567 = vmul.f32 %v552, %v563
        %568 = vst [vmem:[#allocation3] sm:$0xf] %v566
        %569 = vst [vmem:[#allocation3 + $0x8] sm:$0xf] %v567
        %570 = vrot.lane.b32.xlu0 %v543, 16
        %v571 = vpop.permute.xlu0 %570
        %572 = vrot.lane.b32.xlu0 %v544, 16
        %v573 = vpop.permute.xlu0 %572
        %vm574 = vcmp.lt.s32.totalorder %v550, 16
        %v575 = vsel %vm574, %v571, %v573
        %v576 = vsel %vm574, %v573, %v571
        %s577 = scalar_lea.vmem [#allocation7], 2
        %v578 = vld [vmem:[%s577] sm:$0x3]
        %v580 = vlaneseq
        %v581 = vshrl.u32 %v580, 7
        %v582 = vsub.s32 0, %v581
        %v583 = vrot.slane %v578, %v582
        %v584 = vlaneseq
        %v585 = vshrl.u32 %v584, 7
        %v586 = vsub.s32 1, %v585
        %v587 = vrot.slane %v578, %v586
        %v590 = vmul.f32 %v576, %v583
        %v591 = vmul.f32 %v575, %v587
        %v594 = vrot.slane %v590, 4
        %v595 = vrot.slane %v591, 4
        %598 = vst [vmem:[#allocation3] sm:$0xf0] %v594
        %599 = vst [vmem:[#allocation3 + $0x8] sm:$0xf0] %v595
        %600 = vrot.lane.b32.xlu0 %v543, 15
        %v601 = vpop.permute.xlu0 %600
        %602 = vrot.lane.b32.xlu0 %v544, 15
        %v603 = vpop.permute.xlu0 %602
        %vm604 = vcmp.lt.s32.totalorder %v550, 15
        %v605 = vsel %vm604, %v601, %v603
        %v606 = vsel %vm604, %v603, %v601
        %s607 = scalar_lea.vmem [#allocation7], 4
        %v608 = vld [vmem:[%s607] sm:$0x3]
        %v610 = vlaneseq
        %v611 = vshrl.u32 %v610, 7
        %v612 = vsub.s32 0, %v611
        %v613 = vrot.slane %v608, %v612
        %v614 = vlaneseq
        %v615 = vshrl.u32 %v614, 7
        %v616 = vsub.s32 1, %v615
        %v617 = vrot.slane %v608, %v616
        %v620 = vmul.f32 %v606, %v613
        %v621 = vmul.f32 %v605, %v617
        %622 = vst [vmem:[#allocation3 + $0x10] sm:$0xf] %v620
        %623 = vst [vmem:[#allocation3 + $0x18] sm:$0xf] %v621
        %624 = vrot.lane.b32.xlu0 %v543, 1
        %v625 = vpop.permute.xlu0 %624
        %626 = vrot.lane.b32.xlu0 %v544, 1
        %v627 = vpop.permute.xlu0 %626
        %vm628 = vcmp.lt.s32.totalorder %v550, 1
        %v629 = vsel %vm628, %v625, %v627
        %v630 = vsel %vm628, %v627, %v625
        %s631 = scalar_lea.vmem [#allocation7], 6
        %v632 = vld [vmem:[%s631] sm:$0x3]
        %v634 = vlaneseq
        %v635 = vshrl.u32 %v634, 7
        %v636 = vsub.s32 0, %v635
        %v637 = vrot.slane %v632, %v636
        %v638 = vlaneseq
        %v639 = vshrl.u32 %v638, 7
        %v640 = vsub.s32 1, %v639
        %v641 = vrot.slane %v632, %v640
        %v644 = vmul.f32 %v630, %v637
        %v645 = vmul.f32 %v629, %v641
        %v648 = vrot.slane %v644, 4
        %v649 = vrot.slane %v645, 4
        %652 = vst [vmem:[#allocation3 + $0x10] sm:$0xf0] %v648
        %653 = vst [vmem:[#allocation3 + $0x18] sm:$0xf0] %v649
        %654 = vst [vmem:[#allocation3 + $0x20] sm:$0xf] %v543
        %655 = vst [vmem:[#allocation3 + $0x28] sm:$0xf] %v544
        %656 = vrot.lane.b32.xlu0 %v543, 127
        %v657 = vpop.permute.xlu0 %656
        %658 = vrot.lane.b32.xlu0 %v544, 127
        %v659 = vpop.permute.xlu0 %658
        %vm660 = vcmp.lt.s32.totalorder %v550, 127
        %v661 = vsel %vm660, %v657, %v659
        %v662 = vsel %vm660, %v659, %v657
        %s663 = scalar_lea.vmem [#allocation7], 10
        %v664 = vld [vmem:[%s663] sm:$0x3]
        %v666 = vlaneseq
        %v667 = vshrl.u32 %v666, 7
        %v668 = vsub.s32 0, %v667
        %v669 = vrot.slane %v664, %v668
        %v670 = vlaneseq
        %v671 = vshrl.u32 %v670, 7
        %v672 = vsub.s32 1, %v671
        %v673 = vrot.slane %v664, %v672
        %v676 = vmul.f32 %v661, %v669
        %v677 = vmul.f32 %v662, %v673
        %v680 = vrot.slane %v676, 4
        %v681 = vrot.slane %v677, 4
        %684 = vst [vmem:[#allocation3 + $0x20] sm:$0xf0] %v680
        %685 = vst [vmem:[#allocation3 + $0x28] sm:$0xf0] %v681
        %686 = vrot.lane.b32.xlu0 %v543, 113
        %v687 = vpop.permute.xlu0 %686
        %688 = vrot.lane.b32.xlu0 %v544, 113
        %v689 = vpop.permute.xlu0 %688
        %vm690 = vcmp.lt.s32.totalorder %v550, 113
        %v691 = vsel %vm690, %v687, %v689
        %v692 = vsel %vm690, %v689, %v687
        %s693 = scalar_lea.vmem [#allocation7], 12
        %v694 = vld [vmem:[%s693] sm:$0x3]
        %v696 = vlaneseq
        %v697 = vshrl.u32 %v696, 7
        %v698 = vsub.s32 0, %v697
        %v699 = vrot.slane %v694, %v698
        %v700 = vlaneseq
        %v701 = vshrl.u32 %v700, 7
        %v702 = vsub.s32 1, %v701
        %v703 = vrot.slane %v694, %v702
        %v706 = vmul.f32 %v691, %v699
        %v707 = vmul.f32 %v692, %v703
        %708 = vst [vmem:[#allocation3 + $0x30] sm:$0xf] %v706
        %709 = vst [vmem:[#allocation3 + $0x38] sm:$0xf] %v707
        %710 = vrot.lane.b32.xlu0 %v543, 112
        %v711 = vpop.permute.xlu0 %710
        %712 = vrot.lane.b32.xlu0 %v544, 112
        %v713 = vpop.permute.xlu0 %712
        %vm714 = vcmp.lt.s32.totalorder %v550, 112
        %v715 = vsel %vm714, %v711, %v713
        %v716 = vsel %vm714, %v713, %v711
        %s717 = scalar_lea.vmem [#allocation7], 14
        %v718 = vld [vmem:[%s717] sm:$0x3]
        %v720 = vlaneseq
        %v721 = vshrl.u32 %v720, 7
        %v722 = vsub.s32 0, %v721
        %v723 = vrot.slane %v718, %v722
        %v724 = vlaneseq
        %v725 = vshrl.u32 %v724, 7
        %v726 = vsub.s32 1, %v725
        %v727 = vrot.slane %v718, %v726
        %v730 = vmul.f32 %v715, %v723
        %v731 = vmul.f32 %v716, %v727
        %v734 = vrot.slane %v730, 4
        %v735 = vrot.slane %v731, 4
        %738 = vst [vmem:[#allocation3 + $0x30] sm:$0xf0] %v734
        %739 = vst [vmem:[#allocation3 + $0x38] sm:$0xf0] %v735
        %740 = vrot.lane.b32.xlu0 %v543, 111
        %v741 = vpop.permute.xlu0 %740
        %742 = vrot.lane.b32.xlu0 %v544, 111
        %v743 = vpop.permute.xlu0 %742
        %vm744 = vcmp.lt.s32.totalorder %v550, 111
        %v745 = vsel %vm744, %v741, %v743
        %v746 = vsel %vm744, %v743, %v741
        %s747 = scalar_lea.vmem [#allocation7], 16
        %v748 = vld [vmem:[%s747] sm:$0x3]
        %v750 = vlaneseq
        %v751 = vshrl.u32 %v750, 7
        %v752 = vsub.s32 0, %v751
        %v753 = vrot.slane %v748, %v752
        %v754 = vlaneseq
        %v755 = vshrl.u32 %v754, 7
        %v756 = vsub.s32 1, %v755
        %v757 = vrot.slane %v748, %v756
        %v760 = vmul.f32 %v745, %v753
        %v761 = vmul.f32 %v746, %v757
        %762 = vst [vmem:[#allocation3 + $0x40] sm:$0xf] %v760
        %763 = vst [vmem:[#allocation3 + $0x48] sm:$0xf] %v761
        %v764 = vld [vmem:[#allocation15] sm:$0xf]
        %v765 = vld [vmem:[#allocation3] sm:$0xff]
        %v766 = vld [vmem:[#allocation3 + $0x8] sm:$0xff]
        %v767 = vld [vmem:[#allocation3 + $0x10] sm:$0xff]
        %v768 = vld [vmem:[#allocation3 + $0x18] sm:$0xff]
        %v769 = vld [vmem:[#allocation3 + $0x20] sm:$0xff]
        %v770 = vld [vmem:[#allocation3 + $0x28] sm:$0xff]
        %v771 = vld [vmem:[#allocation3 + $0x30] sm:$0xff]
        %v772 = vld [vmem:[#allocation3 + $0x38] sm:$0xff]
        %v773 = vld [vmem:[#allocation3 + $0x40] sm:$0xf]
        %v774 = vld [vmem:[#allocation3 + $0x48] sm:$0xf]
        %v775 = vld [vmem:[#allocation16] sm:$0xf]
        %777 = vset.pattern.permute.xlu0 0
        %778 = vperm.xlu0 %777, %v775
        %v779 = vpop.permute.xlu0 %778
        %vm781 = vcmask 293888
        %v783 = vsel %vm781, %v764, 0
        %v786 = vsel %vm465, %v773, 0
        %v789 = vsel %vm465, %v774, 0
        %791 = vmatprep.subr.mxu0 %v766
        %792 = vmatpush1.msra.mxu0 %v765
        %793 = vmatprep.subr.mxu0 %v768
        %794 = vmatpush1.msra.mxu0 %v767
        %795 = vmatprep.subr.mxu0 %v770
        %796 = vmatpush1.msra.mxu0 %v769
        %797 = vmatprep.subr.mxu0 %v772
        %798 = vmatpush1.msra.mxu0 %v771
        %799 = vmatprep.subr.mxu0 %v789
        %800 = vmatpush1.msra.mxu0 %v786
        %801 = vmatprep.subr.mxu0 0.0
        %802 = vmatpush1.msra.mxu0 0.0
        %803 = vmatprep.subr.mxu0 0.0
        %804 = vmatpush1.msra.mxu0 0.0
        %805 = vmatprep.subr.mxu0 0.0
        %806 = vmatpush1.msra.mxu0 0.0
        %807 = vmatprep.subr.mxu0 0.0
        %808 = vmatpush1.msra.mxu0 0.0
        %809 = vmatprep.subr.mxu0 0.0
        %810 = vmatpush1.msra.mxu0 0.0
        %811 = vmatprep.subr.mxu0 0.0
        %812 = vmatpush1.msra.mxu0 0.0
        %813 = vmatprep.subr.mxu0 0.0
        %814 = vmatpush1.msra.mxu0 0.0
        %815 = vmatprep.subr.mxu0 0.0
        %816 = vmatpush1.msra.mxu0 0.0
        %817 = vmatprep.subr.mxu0 0.0
        %818 = vmatpush1.msra.mxu0 0.0
        %819 = vmatprep.subr.mxu0 0.0
        %820 = vmatpush1.msra.mxu0 0.0
        %821 = vmatprep.subr.mxu0 0.0
        %822 = vmatpush1.msra.mxu0 0.0
        %823 = vmatprep.subr.mxu0 0.0
        %824 = vmatpush1.msra.mxu0 0.0
        %825 = vmatprep.subr.mxu0 0.0
        %826 = vmatpush1.msra.mxu0 0.0
        %827 = vmatprep.subr.mxu0 0.0
        %828 = vmatpush1.msra.mxu0 0.0
        %829 = vmatprep.subr.mxu0 0.0
        %830 = vmatpush1.msra.mxu0 0.0
        %831 = vmatprep.subr.mxu0 0.0
        %832 = vmatpush1.msra.mxu0 0.0
        %833 = vmatprep.subr.mxu0 0.0
        %834 = vmatpush1.msra.mxu0 0.0
        %835 = vmatprep.subr.mxu0 0.0
        %836 = vmatpush1.msra.mxu0 0.0
        %837 = vmatprep.subr.mxu0 0.0
        %838 = vmatpush1.msra.mxu0 0.0
        %839 = vmatprep.subr.mxu0 0.0
        %840 = vmatpush1.msra.mxu0 0.0
        %841 = vmatprep.subr.mxu0 0.0
        %842 = vmatpush1.msra.mxu0 0.0
        %843 = vmatprep.subr.mxu0 0.0
        %844 = vmatpush1.msra.mxu0 0.0
        %845 = vmatprep.subr.mxu0 0.0
        %846 = vmatpush1.msra.mxu0 0.0
        %847 = vmatprep.subr.mxu0 0.0
        %848 = vmatpush1.msra.mxu0 0.0
        %849 = vmatprep.subr.mxu0 0.0
        %850 = vmatpush1.msra.mxu0 0.0
        %851 = vmatprep.subr.mxu0 0.0
        %852 = vmatpush1.msra.mxu0 0.0
        %853 = vmatprep.subr.mxu0 0.0
        %854 = vmatpush1.msra.mxu0 0.0
        %855 = vmatprep.mubr.f32.mxu0 0.0
        %856 = vmatmul.mubr.f32.gmra.mrb[0].mxu0 %v783
        %v857 = vpop.f32.mrb[0].mxu0
        %v858 = vadd.f32 %v779, %v857
        %v859 = vpop.f32.mrb[0].mxu0
        %v860 = vadd.f32 %v779, %v859
        %861 = vdwg.mxu0
        %v864 = vrot.slane %v858, 4
        %v865 = vrot.slane %v860, 4
        %868 = vst [vmem:[%s423 + $0x10] sm:$0xf0] %v864
        %869 = vst [vmem:[%s423 + $0x18] sm:$0xf0] %v865
        %v870 = vld [vmem:[%s423 + $0x20] sm:$0xf]
        %v871 = vld [vmem:[%s423 + $0x28] sm:$0xf]
        %872 = vst [vmem:[#allocation2] sm:$0xf] %v870
        %873 = vst [vmem:[#allocation2 + $0x8] sm:$0xf] %v871
        %v874 = vld [vmem:[%s423 + $0x10] sm:$0xf0]
        %v875 = vld [vmem:[%s423 + $0x18] sm:$0xf0]
        %876 = vst [vmem:[#allocation2] sm:$0xf0] %v874
        %877 = vst [vmem:[#allocation2 + $0x8] sm:$0xf0] %v875
        %s878 = scalar_lea.vmem [#allocation9], 32
        %v879 = vld [vmem:[%s878] sm:$0xff]
        %s880 = scalar_lea.vmem [#allocation10], 32
        %v881 = vld [vmem:[%s880] sm:$0xff]
        %v882 = vld [vmem:[#allocation2] sm:$0xff]
        %v883 = vld [vmem:[#allocation2 + $0x8] sm:$0xff]
        %885 = vset.pattern.permute.xlu0 0
        %886 = vperm.xlu0 %885, %v879
        %v887 = vpop.permute.xlu0 %886
        %v889 = vmul.f32 %v882, %v887
        %v890 = vmul.f32 %v883, %v887
        %892 = vset.pattern.permute.xlu0 0
        %893 = vperm.xlu0 %892, %v881
        %v894 = vpop.permute.xlu0 %893
        %v896 = vadd.f32 %v889, %v894
        %v897 = vadd.f32 %v890, %v894
        %v898 = vmax.f32 %v896, 0.0
        %v899 = vmax.f32 %v897, 0.0
        %s900 = scalar_lea.vmem [#allocation12], 4
        %v901 = vld [vmem:[%s900] sm:$0xf]
        %s902 = scalar_lea.vmem [#allocation13], 4
        %v903 = vld [vmem:[%s902] sm:$0xf]
        %905 = vset.pattern.permute.xlu0 0
        %906 = vperm.xlu0 %905, %v903
        %v907 = vpop.permute.xlu0 %906
        %vm909 = vcmask 64512
        %v911 = vsel %vm909, %v901, 0
        %913 = vmatprep.subr.mxu0 %v899
        %914 = vmatpush1.msra.mxu0 %v898
        %915 = vmatprep.subr.mxu0 0.0
        %916 = vmatpush1.msra.mxu0 0.0
        %917 = vmatprep.subr.mxu0 0.0
        %918 = vmatpush1.msra.mxu0 0.0
        %919 = vmatprep.subr.mxu0 0.0
        %920 = vmatpush1.msra.mxu0 0.0
        %921 = vmatprep.subr.mxu0 0.0
        %922 = vmatpush1.msra.mxu0 0.0
        %923 = vmatprep.subr.mxu0 0.0
        %924 = vmatpush1.msra.mxu0 0.0
        %925 = vmatprep.subr.mxu0 0.0
        %926 = vmatpush1.msra.mxu0 0.0
        %927 = vmatprep.subr.mxu0 0.0
        %928 = vmatpush1.msra.mxu0 0.0
        %929 = vmatprep.subr.mxu0 0.0
        %930 = vmatpush1.msra.mxu0 0.0
        %931 = vmatprep.subr.mxu0 0.0
        %932 = vmatpush1.msra.mxu0 0.0
        %933 = vmatprep.subr.mxu0 0.0
        %934 = vmatpush1.msra.mxu0 0.0
        %935 = vmatprep.subr.mxu0 0.0
        %936 = vmatpush1.msra.mxu0 0.0
        %937 = vmatprep.subr.mxu0 0.0
        %938 = vmatpush1.msra.mxu0 0.0
        %939 = vmatprep.subr.mxu0 0.0
        %940 = vmatpush1.msra.mxu0 0.0
        %941 = vmatprep.subr.mxu0 0.0
        %942 = vmatpush1.msra.mxu0 0.0
        %943 = vmatprep.subr.mxu0 0.0
        %944 = vmatpush1.msra.mxu0 0.0
        %945 = vmatprep.subr.mxu0 0.0
        %946 = vmatpush1.msra.mxu0 0.0
        %947 = vmatprep.subr.mxu0 0.0
        %948 = vmatpush1.msra.mxu0 0.0
        %949 = vmatprep.subr.mxu0 0.0
        %950 = vmatpush1.msra.mxu0 0.0
        %951 = vmatprep.subr.mxu0 0.0
        %952 = vmatpush1.msra.mxu0 0.0
        %953 = vmatprep.subr.mxu0 0.0
        %954 = vmatpush1.msra.mxu0 0.0
        %955 = vmatprep.subr.mxu0 0.0
        %956 = vmatpush1.msra.mxu0 0.0
        %957 = vmatprep.subr.mxu0 0.0
        %958 = vmatpush1.msra.mxu0 0.0
        %959 = vmatprep.subr.mxu0 0.0
        %960 = vmatpush1.msra.mxu0 0.0
        %961 = vmatprep.subr.mxu0 0.0
        %962 = vmatpush1.msra.mxu0 0.0
        %963 = vmatprep.subr.mxu0 0.0
        %964 = vmatpush1.msra.mxu0 0.0
        %965 = vmatprep.subr.mxu0 0.0
        %966 = vmatpush1.msra.mxu0 0.0
        %967 = vmatprep.subr.mxu0 0.0
        %968 = vmatpush1.msra.mxu0 0.0
        %969 = vmatprep.subr.mxu0 0.0
        %970 = vmatpush1.msra.mxu0 0.0
        %971 = vmatprep.subr.mxu0 0.0
        %972 = vmatpush1.msra.mxu0 0.0
        %973 = vmatprep.subr.mxu0 0.0
        %974 = vmatpush1.msra.mxu0 0.0
        %975 = vmatprep.subr.mxu0 0.0
        %976 = vmatpush1.msra.mxu0 0.0
        %977 = vmatprep.mubr.f32.mxu0 0.0
        %978 = vmatmul.mubr.f32.gmra.mrb[0].mxu0 %v911
        %v979 = vpop.f32.mrb[0].mxu0
        %v980 = vadd.f32 %v907, %v979
        %v981 = vpop.f32.mrb[0].mxu0
        %v982 = vadd.f32 %v907, %v981
        %983 = vdwg.mxu0
        %v984 = vmax.f32 %v980, 0.0
        %v985 = vmax.f32 %v982, 0.0
        %986 = vrot.lane.b32.xlu0 %v984, 17
        %v987 = vpop.permute.xlu0 %986
        %988 = vrot.lane.b32.xlu0 %v985, 17
        %v989 = vpop.permute.xlu0 %988
        %v990 = vsel %vm551, %v987, %v989
        %v991 = vsel %vm551, %v989, %v987
        %v992 = vld [vmem:[#allocation7] sm:$0x3]
        %v994 = vlaneseq
        %v995 = vshrl.u32 %v994, 7
        %v996 = vsub.s32 0, %v995
        %v997 = vrot.slane %v992, %v996
        %v998 = vlaneseq
        %v999 = vshrl.u32 %v998, 7
        %v1000 = vsub.s32 1, %v999
        %v1001 = vrot.slane %v992, %v1000
        %v1004 = vmul.f32 %v991, %v997
        %v1005 = vmul.f32 %v990, %v1001
        %1006 = vst [vmem:[#allocation3] sm:$0xf] %v1004
        %1007 = vst [vmem:[#allocation3 + $0x8] sm:$0xf] %v1005
        %1008 = vrot.lane.b32.xlu0 %v984, 16
        %v1009 = vpop.permute.xlu0 %1008
        %1010 = vrot.lane.b32.xlu0 %v985, 16
        %v1011 = vpop.permute.xlu0 %1010
        %v1012 = vsel %vm574, %v1009, %v1011
        %v1013 = vsel %vm574, %v1011, %v1009
        %v1014 = vld [vmem:[%s577] sm:$0x3]
        %v1016 = vlaneseq
        %v1017 = vshrl.u32 %v1016, 7
        %v1018 = vsub.s32 0, %v1017
        %v1019 = vrot.slane %v1014, %v1018
        %v1020 = vlaneseq
        %v1021 = vshrl.u32 %v1020, 7
        %v1022 = vsub.s32 1, %v1021
        %v1023 = vrot.slane %v1014, %v1022
        %v1026 = vmul.f32 %v1013, %v1019
        %v1027 = vmul.f32 %v1012, %v1023
        %v1030 = vrot.slane %v1026, 4
        %v1031 = vrot.slane %v1027, 4
        %1034 = vst [vmem:[#allocation3] sm:$0xf0] %v1030
        %1035 = vst [vmem:[#allocation3 + $0x8] sm:$0xf0] %v1031
        %1036 = vrot.lane.b32.xlu0 %v984, 15
        %v1037 = vpop.permute.xlu0 %1036
        %1038 = vrot.lane.b32.xlu0 %v985, 15
        %v1039 = vpop.permute.xlu0 %1038
        %v1040 = vsel %vm604, %v1037, %v1039
        %v1041 = vsel %vm604, %v1039, %v1037
        %v1042 = vld [vmem:[%s607] sm:$0x3]
        %v1044 = vlaneseq
        %v1045 = vshrl.u32 %v1044, 7
        %v1046 = vsub.s32 0, %v1045
        %v1047 = vrot.slane %v1042, %v1046
        %v1048 = vlaneseq
        %v1049 = vshrl.u32 %v1048, 7
        %v1050 = vsub.s32 1, %v1049
        %v1051 = vrot.slane %v1042, %v1050
        %v1054 = vmul.f32 %v1041, %v1047
        %v1055 = vmul.f32 %v1040, %v1051
        %1056 = vst [vmem:[#allocation3 + $0x10] sm:$0xf] %v1054
        %1057 = vst [vmem:[#allocation3 + $0x18] sm:$0xf] %v1055
        %1058 = vrot.lane.b32.xlu0 %v984, 1
        %v1059 = vpop.permute.xlu0 %1058
        %1060 = vrot.lane.b32.xlu0 %v985, 1
        %v1061 = vpop.permute.xlu0 %1060
        %v1062 = vsel %vm628, %v1059, %v1061
        %v1063 = vsel %vm628, %v1061, %v1059
        %v1064 = vld [vmem:[%s631] sm:$0x3]
        %v1066 = vlaneseq
        %v1067 = vshrl.u32 %v1066, 7
        %v1068 = vsub.s32 0, %v1067
        %v1069 = vrot.slane %v1064, %v1068
        %v1070 = vlaneseq
        %v1071 = vshrl.u32 %v1070, 7
        %v1072 = vsub.s32 1, %v1071
        %v1073 = vrot.slane %v1064, %v1072
        %v1076 = vmul.f32 %v1063, %v1069
        %v1077 = vmul.f32 %v1062, %v1073
        %v1080 = vrot.slane %v1076, 4
        %v1081 = vrot.slane %v1077, 4
        %1084 = vst [vmem:[#allocation3 + $0x10] sm:$0xf0] %v1080
        %1085 = vst [vmem:[#allocation3 + $0x18] sm:$0xf0] %v1081
        %1086 = vst [vmem:[#allocation3 + $0x20] sm:$0xf] %v984
        %1087 = vst [vmem:[#allocation3 + $0x28] sm:$0xf] %v985
        %1088 = vrot.lane.b32.xlu0 %v984, 127
        %v1089 = vpop.permute.xlu0 %1088
        %1090 = vrot.lane.b32.xlu0 %v985, 127
        %v1091 = vpop.permute.xlu0 %1090
        %v1092 = vsel %vm660, %v1089, %v1091
        %v1093 = vsel %vm660, %v1091, %v1089
        %v1094 = vld [vmem:[%s663] sm:$0x3]
        %v1096 = vlaneseq
        %v1097 = vshrl.u32 %v1096, 7
        %v1098 = vsub.s32 0, %v1097
        %v1099 = vrot.slane %v1094, %v1098
        %v1100 = vlaneseq
        %v1101 = vshrl.u32 %v1100, 7
        %v1102 = vsub.s32 1, %v1101
        %v1103 = vrot.slane %v1094, %v1102
        %v1106 = vmul.f32 %v1092, %v1099
        %v1107 = vmul.f32 %v1093, %v1103
        %v1110 = vrot.slane %v1106, 4
        %v1111 = vrot.slane %v1107, 4
        %1114 = vst [vmem:[#allocation3 + $0x20] sm:$0xf0] %v1110
        %1115 = vst [vmem:[#allocation3 + $0x28] sm:$0xf0] %v1111
        %1116 = vrot.lane.b32.xlu0 %v984, 113
        %v1117 = vpop.permute.xlu0 %1116
        %1118 = vrot.lane.b32.xlu0 %v985, 113
        %v1119 = vpop.permute.xlu0 %1118
        %v1120 = vsel %vm690, %v1117, %v1119
        %v1121 = vsel %vm690, %v1119, %v1117
        %v1122 = vld [vmem:[%s693] sm:$0x3]
        %v1124 = vlaneseq
        %v1125 = vshrl.u32 %v1124, 7
        %v1126 = vsub.s32 0, %v1125
        %v1127 = vrot.slane %v1122, %v1126
        %v1128 = vlaneseq
        %v1129 = vshrl.u32 %v1128, 7
        %v1130 = vsub.s32 1, %v1129
        %v1131 = vrot.slane %v1122, %v1130
        %v1134 = vmul.f32 %v1120, %v1127
        %v1135 = vmul.f32 %v1121, %v1131
        %1136 = vst [vmem:[#allocation3 + $0x30] sm:$0xf] %v1134
        %1137 = vst [vmem:[#allocation3 + $0x38] sm:$0xf] %v1135
        %1138 = vrot.lane.b32.xlu0 %v984, 112
        %v1139 = vpop.permute.xlu0 %1138
        %1140 = vrot.lane.b32.xlu0 %v985, 112
        %v1141 = vpop.permute.xlu0 %1140
        %v1142 = vsel %vm714, %v1139, %v1141
        %v1143 = vsel %vm714, %v1141, %v1139
        %v1144 = vld [vmem:[%s717] sm:$0x3]
        %v1146 = vlaneseq
        %v1147 = vshrl.u32 %v1146, 7
        %v1148 = vsub.s32 0, %v1147
        %v1149 = vrot.slane %v1144, %v1148
        %v1150 = vlaneseq
        %v1151 = vshrl.u32 %v1150, 7
        %v1152 = vsub.s32 1, %v1151
        %v1153 = vrot.slane %v1144, %v1152
        %v1156 = vmul.f32 %v1142, %v1149
        %v1157 = vmul.f32 %v1143, %v1153
        %v1160 = vrot.slane %v1156, 4
        %v1161 = vrot.slane %v1157, 4
        %1164 = vst [vmem:[#allocation3 + $0x30] sm:$0xf0] %v1160
        %1165 = vst [vmem:[#allocation3 + $0x38] sm:$0xf0] %v1161
        %1166 = vrot.lane.b32.xlu0 %v984, 111
        %v1167 = vpop.permute.xlu0 %1166
        %1168 = vrot.lane.b32.xlu0 %v985, 111
        %v1169 = vpop.permute.xlu0 %1168
        %v1170 = vsel %vm744, %v1167, %v1169
        %v1171 = vsel %vm744, %v1169, %v1167
        %v1172 = vld [vmem:[%s747] sm:$0x3]
        %v1174 = vlaneseq
        %v1175 = vshrl.u32 %v1174, 7
        %v1176 = vsub.s32 0, %v1175
        %v1177 = vrot.slane %v1172, %v1176
        %v1178 = vlaneseq
        %v1179 = vshrl.u32 %v1178, 7
        %v1180 = vsub.s32 1, %v1179
        %v1181 = vrot.slane %v1172, %v1180
        %v1184 = vmul.f32 %v1170, %v1177
        %v1185 = vmul.f32 %v1171, %v1181
        %1186 = vst [vmem:[#allocation3 + $0x40] sm:$0xf] %v1184
        %1187 = vst [vmem:[#allocation3 + $0x48] sm:$0xf] %v1185
        %s1188 = scalar_lea.vmem [#allocation15], 4
        %v1189 = vld [vmem:[%s1188] sm:$0xf]
        %v1190 = vld [vmem:[#allocation3] sm:$0xff]
        %v1191 = vld [vmem:[#allocation3 + $0x8] sm:$0xff]
        %v1192 = vld [vmem:[#allocation3 + $0x10] sm:$0xff]
        %v1193 = vld [vmem:[#allocation3 + $0x18] sm:$0xff]
        %v1194 = vld [vmem:[#allocation3 + $0x20] sm:$0xff]
        %v1195 = vld [vmem:[#allocation3 + $0x28] sm:$0xff]
        %v1196 = vld [vmem:[#allocation3 + $0x30] sm:$0xff]
        %v1197 = vld [vmem:[#allocation3 + $0x38] sm:$0xff]
        %v1198 = vld [vmem:[#allocation3 + $0x40] sm:$0xf]
        %v1199 = vld [vmem:[#allocation3 + $0x48] sm:$0xf]
        %s1200 = scalar_lea.vmem [#allocation16], 4
        %v1201 = vld [vmem:[%s1200] sm:$0xf]
        %1203 = vset.pattern.permute.xlu0 0
        %1204 = vperm.xlu0 %1203, %v1201
        %v1205 = vpop.permute.xlu0 %1204
        %v1208 = vsel %vm781, %v1189, 0
        %v1211 = vsel %vm465, %v1198, 0
        %v1214 = vsel %vm465, %v1199, 0
        %1216 = vmatprep.subr.mxu0 %v1191
        %1217 = vmatpush1.msra.mxu0 %v1190
        %1218 = vmatprep.subr.mxu0 %v1193
        %1219 = vmatpush1.msra.mxu0 %v1192
        %1220 = vmatprep.subr.mxu0 %v1195
        %1221 = vmatpush1.msra.mxu0 %v1194
        %1222 = vmatprep.subr.mxu0 %v1197
        %1223 = vmatpush1.msra.mxu0 %v1196
        %1224 = vmatprep.subr.mxu0 %v1214
        %1225 = vmatpush1.msra.mxu0 %v1211
        %1226 = vmatprep.subr.mxu0 0.0
        %1227 = vmatpush1.msra.mxu0 0.0
        %1228 = vmatprep.subr.mxu0 0.0
        %1229 = vmatpush1.msra.mxu0 0.0
        %1230 = vmatprep.subr.mxu0 0.0
        %1231 = vmatpush1.msra.mxu0 0.0
        %1232 = vmatprep.subr.mxu0 0.0
        %1233 = vmatpush1.msra.mxu0 0.0
        %1234 = vmatprep.subr.mxu0 0.0
        %1235 = vmatpush1.msra.mxu0 0.0
        %1236 = vmatprep.subr.mxu0 0.0
        %1237 = vmatpush1.msra.mxu0 0.0
        %1238 = vmatprep.subr.mxu0 0.0
        %1239 = vmatpush1.msra.mxu0 0.0
        %1240 = vmatprep.subr.mxu0 0.0
        %1241 = vmatpush1.msra.mxu0 0.0
        %1242 = vmatprep.subr.mxu0 0.0
        %1243 = vmatpush1.msra.mxu0 0.0
        %1244 = vmatprep.subr.mxu0 0.0
        %1245 = vmatpush1.msra.mxu0 0.0
        %1246 = vmatprep.subr.mxu0 0.0
        %1247 = vmatpush1.msra.mxu0 0.0
        %1248 = vmatprep.subr.mxu0 0.0
        %1249 = vmatpush1.msra.mxu0 0.0
        %1250 = vmatprep.subr.mxu0 0.0
        %1251 = vmatpush1.msra.mxu0 0.0
        %1252 = vmatprep.subr.mxu0 0.0
        %1253 = vmatpush1.msra.mxu0 0.0
        %1254 = vmatprep.subr.mxu0 0.0
        %1255 = vmatpush1.msra.mxu0 0.0
        %1256 = vmatprep.subr.mxu0 0.0
        %1257 = vmatpush1.msra.mxu0 0.0
        %1258 = vmatprep.subr.mxu0 0.0
        %1259 = vmatpush1.msra.mxu0 0.0
        %1260 = vmatprep.subr.mxu0 0.0
        %1261 = vmatpush1.msra.mxu0 0.0
        %1262 = vmatprep.subr.mxu0 0.0
        %1263 = vmatpush1.msra.mxu0 0.0
        %1264 = vmatprep.subr.mxu0 0.0
        %1265 = vmatpush1.msra.mxu0 0.0
        %1266 = vmatprep.subr.mxu0 0.0
        %1267 = vmatpush1.msra.mxu0 0.0
        %1268 = vmatprep.subr.mxu0 0.0
        %1269 = vmatpush1.msra.mxu0 0.0
        %1270 = vmatprep.subr.mxu0 0.0
        %1271 = vmatpush1.msra.mxu0 0.0
        %1272 = vmatprep.subr.mxu0 0.0
        %1273 = vmatpush1.msra.mxu0 0.0
        %1274 = vmatprep.subr.mxu0 0.0
        %1275 = vmatpush1.msra.mxu0 0.0
        %1276 = vmatprep.subr.mxu0 0.0
        %1277 = vmatpush1.msra.mxu0 0.0
        %1278 = vmatprep.subr.mxu0 0.0
        %1279 = vmatpush1.msra.mxu0 0.0
        %1280 = vmatprep.mubr.f32.mxu0 0.0
        %1281 = vmatmul.mubr.f32.gmra.mrb[0].mxu0 %v1208
        %v1282 = vpop.f32.mrb[0].mxu0
        %v1283 = vadd.f32 %v1205, %v1282
        %v1284 = vpop.f32.mrb[0].mxu0
        %v1285 = vadd.f32 %v1205, %v1284
        %1286 = vdwg.mxu0
        %1287 = vst [vmem:[%s423 + $0x10] sm:$0xf] %v1283
        %1288 = vst [vmem:[%s423 + $0x18] sm:$0xf] %v1285
        %v1289 = vld [vmem:[%s423 + $0x10] sm:$0xf]
        %v1290 = vld [vmem:[%s423 + $0x18] sm:$0xf]
        %1291 = vst [vmem:[#allocation2] sm:$0xf] %v1289
        %1292 = vst [vmem:[#allocation2 + $0x8] sm:$0xf] %v1290
        %v1293 = vld [vmem:[%s423 + $0x20] sm:$0xf]
        %v1294 = vld [vmem:[%s423 + $0x28] sm:$0xf]
        %v1297 = vrot.slane %v1293, 4
        %v1298 = vrot.slane %v1294, 4
        %1301 = vst [vmem:[#allocation2] sm:$0xf0] %v1297
        %1302 = vst [vmem:[#allocation2 + $0x8] sm:$0xf0] %v1298
        %v1303 = vld [vmem:[%s423 + $0x10] sm:$0xf0]
        %v1304 = vld [vmem:[%s423 + $0x18] sm:$0xf0]
        %v1307 = vrot.slane %v1303, 4
        %v1308 = vrot.slane %v1304, 4
        %1311 = vst [vmem:[#allocation2 + $0x10] sm:$0xf] %v1307
        %1312 = vst [vmem:[#allocation2 + $0x18] sm:$0xf] %v1308
        %v1313 = vld [vmem:[%s423 + $0x10] sm:$0xf0]
        %v1314 = vld [vmem:[%s423 + $0x18] sm:$0xf0]
        %1315 = vst [vmem:[#allocation2 + $0x10] sm:$0xf0] %v1313
        %1316 = vst [vmem:[#allocation2 + $0x18] sm:$0xf0] %v1314
        %s1317 = scalar_lea.vmem [#allocation9], 64
        %v1318 = vld [vmem:[%s1317] sm:$0xff]
        %v1319 = vld [vmem:[%s1317 + $0x8] sm:$0xff]
        %s1320 = scalar_lea.vmem [#allocation10], 64
        %v1321 = vld [vmem:[%s1320] sm:$0xff]
        %v1322 = vld [vmem:[%s1320 + $0x8] sm:$0xff]
        %v1323 = vld [vmem:[#allocation2] sm:$0xff]
        %v1324 = vld [vmem:[#allocation2 + $0x8] sm:$0xff]
        %v1325 = vld [vmem:[#allocation2 + $0x10] sm:$0xff]
        %v1326 = vld [vmem:[#allocation2 + $0x18] sm:$0xff]
        %1328 = vset.pattern.permute.xlu0 0
        %1329 = vperm.xlu0 %1328, %v1318
        %v1330 = vpop.permute.xlu0 %1329
        %1333 = vset.pattern.permute.xlu0 0
        %1334 = vperm.xlu0 %1333, %v1319
        %v1335 = vpop.permute.xlu0 %1334
        %v1337 = vmul.f32 %v1323, %v1330
        %v1338 = vmul.f32 %v1324, %v1330
        %v1339 = vmul.f32 %v1325, %v1335
        %v1340 = vmul.f32 %v1326, %v1335
        %1342 = vset.pattern.permute.xlu0 0
        %1343 = vperm.xlu0 %1342, %v1321
        %v1344 = vpop.permute.xlu0 %1343
        %1347 = vset.pattern.permute.xlu0 0
        %1348 = vperm.xlu0 %1347, %v1322
        %v1349 = vpop.permute.xlu0 %1348
        %v1351 = vadd.f32 %v1337, %v1344
        %v1352 = vadd.f32 %v1338, %v1344
        %v1353 = vadd.f32 %v1339, %v1349
        %v1354 = vadd.f32 %v1340, %v1349
        %v1355 = vmax.f32 %v1351, 0.0
        %v1356 = vmax.f32 %v1352, 0.0
        %v1357 = vmax.f32 %v1353, 0.0
        %v1358 = vmax.f32 %v1354, 0.0
        %s1359 = scalar_lea.vmem [#allocation12], 8
        %v1360 = vld [vmem:[%s1359] sm:$0xf]
        %s1361 = scalar_lea.vmem [#allocation13], 8
        %v1362 = vld [vmem:[%s1361] sm:$0xf]
        %1364 = vset.pattern.permute.xlu0 0
        %1365 = vperm.xlu0 %1364, %v1362
        %v1366 = vpop.permute.xlu0 %1365
        %vm1368 = vcmask 130048
        %v1370 = vsel %vm1368, %v1360, 0
        %1372 = vmatprep.subr.mxu0 %v1356
        %1373 = vmatpush1.msra.mxu0 %v1355
        %1374 = vmatprep.subr.mxu0 %v1358
        %1375 = vmatpush1.msra.mxu0 %v1357
        %1376 = vmatprep.subr.mxu0 0.0
        %1377 = vmatpush1.msra.mxu0 0.0
        %1378 = vmatprep.subr.mxu0 0.0
        %1379 = vmatpush1.msra.mxu0 0.0
        %1380 = vmatprep.subr.mxu0 0.0
        %1381 = vmatpush1.msra.mxu0 0.0
        %1382 = vmatprep.subr.mxu0 0.0
        %1383 = vmatpush1.msra.mxu0 0.0
        %1384 = vmatprep.subr.mxu0 0.0
        %1385 = vmatpush1.msra.mxu0 0.0
        %1386 = vmatprep.subr.mxu0 0.0
        %1387 = vmatpush1.msra.mxu0 0.0
        %1388 = vmatprep.subr.mxu0 0.0
        %1389 = vmatpush1.msra.mxu0 0.0
        %1390 = vmatprep.subr.mxu0 0.0
        %1391 = vmatpush1.msra.mxu0 0.0
        %1392 = vmatprep.subr.mxu0 0.0
        %1393 = vmatpush1.msra.mxu0 0.0
        %1394 = vmatprep.subr.mxu0 0.0
        %1395 = vmatpush1.msra.mxu0 0.0
        %1396 = vmatprep.subr.mxu0 0.0
        %1397 = vmatpush1.msra.mxu0 0.0
        %1398 = vmatprep.subr.mxu0 0.0
        %1399 = vmatpush1.msra.mxu0 0.0
        %1400 = vmatprep.subr.mxu0 0.0
        %1401 = vmatpush1.msra.mxu0 0.0
        %1402 = vmatprep.subr.mxu0 0.0
        %1403 = vmatpush1.msra.mxu0 0.0
        %1404 = vmatprep.subr.mxu0 0.0
        %1405 = vmatpush1.msra.mxu0 0.0
        %1406 = vmatprep.subr.mxu0 0.0
        %1407 = vmatpush1.msra.mxu0 0.0
        %1408 = vmatprep.subr.mxu0 0.0
        %1409 = vmatpush1.msra.mxu0 0.0
        %1410 = vmatprep.subr.mxu0 0.0
        %1411 = vmatpush1.msra.mxu0 0.0
        %1412 = vmatprep.subr.mxu0 0.0
        %1413 = vmatpush1.msra.mxu0 0.0
        %1414 = vmatprep.subr.mxu0 0.0
        %1415 = vmatpush1.msra.mxu0 0.0
        %1416 = vmatprep.subr.mxu0 0.0
        %1417 = vmatpush1.msra.mxu0 0.0
        %1418 = vmatprep.subr.mxu0 0.0
        %1419 = vmatpush1.msra.mxu0 0.0
        %1420 = vmatprep.subr.mxu0 0.0
        %1421 = vmatpush1.msra.mxu0 0.0
        %1422 = vmatprep.subr.mxu0 0.0
        %1423 = vmatpush1.msra.mxu0 0.0
        %1424 = vmatprep.subr.mxu0 0.0
        %1425 = vmatpush1.msra.mxu0 0.0
        %1426 = vmatprep.subr.mxu0 0.0
        %1427 = vmatpush1.msra.mxu0 0.0
        %1428 = vmatprep.subr.mxu0 0.0
        %1429 = vmatpush1.msra.mxu0 0.0
        %1430 = vmatprep.subr.mxu0 0.0
        %1431 = vmatpush1.msra.mxu0 0.0
        %1432 = vmatprep.subr.mxu0 0.0
        %1433 = vmatpush1.msra.mxu0 0.0
        %1434 = vmatprep.subr.mxu0 0.0
        %1435 = vmatpush1.msra.mxu0 0.0
        %1436 = vmatprep.mubr.f32.mxu0 0.0
        %1437 = vmatmul.mubr.f32.gmra.mrb[0].mxu0 %v1370
        %v1438 = vpop.f32.mrb[0].mxu0
        %v1439 = vadd.f32 %v1366, %v1438
        %v1440 = vpop.f32.mrb[0].mxu0
        %v1441 = vadd.f32 %v1366, %v1440
        %1442 = vdwg.mxu0
        %v1443 = vmax.f32 %v1439, 0.0
        %v1444 = vmax.f32 %v1441, 0.0
        %1445 = vrot.lane.b32.xlu0 %v1443, 17
        %v1446 = vpop.permute.xlu0 %1445
        %1447 = vrot.lane.b32.xlu0 %v1444, 17
        %v1448 = vpop.permute.xlu0 %1447
        %v1449 = vsel %vm551, %v1446, %v1448
        %v1450 = vsel %vm551, %v1448, %v1446
        %v1451 = vld [vmem:[#allocation7] sm:$0x3]
        %v1453 = vlaneseq
        %v1454 = vshrl.u32 %v1453, 7
        %v1455 = vsub.s32 0, %v1454
        %v1456 = vrot.slane %v1451, %v1455
        %v1457 = vlaneseq
        %v1458 = vshrl.u32 %v1457, 7
        %v1459 = vsub.s32 1, %v1458
        %v1460 = vrot.slane %v1451, %v1459
        %v1463 = vmul.f32 %v1450, %v1456
        %v1464 = vmul.f32 %v1449, %v1460
        %1465 = vst [vmem:[#allocation3] sm:$0xf] %v1463
        %1466 = vst [vmem:[#allocation3 + $0x8] sm:$0xf] %v1464
        %1467 = vrot.lane.b32.xlu0 %v1443, 16
        %v1468 = vpop.permute.xlu0 %1467
        %1469 = vrot.lane.b32.xlu0 %v1444, 16
        %v1470 = vpop.permute.xlu0 %1469
        %v1471 = vsel %vm574, %v1468, %v1470
        %v1472 = vsel %vm574, %v1470, %v1468
        %v1473 = vld [vmem:[%s577] sm:$0x3]
        %v1475 = vlaneseq
        %v1476 = vshrl.u32 %v1475, 7
        %v1477 = vsub.s32 0, %v1476
        %v1478 = vrot.slane %v1473, %v1477
        %v1479 = vlaneseq
        %v1480 = vshrl.u32 %v1479, 7
        %v1481 = vsub.s32 1, %v1480
        %v1482 = vrot.slane %v1473, %v1481
        %v1485 = vmul.f32 %v1472, %v1478
        %v1486 = vmul.f32 %v1471, %v1482
        %v1489 = vrot.slane %v1485, 4
        %v1490 = vrot.slane %v1486, 4
        %1493 = vst [vmem:[#allocation3] sm:$0xf0] %v1489
        %1494 = vst [vmem:[#allocation3 + $0x8] sm:$0xf0] %v1490
        %1495 = vrot.lane.b32.xlu0 %v1443, 15
        %v1496 = vpop.permute.xlu0 %1495
        %1497 = vrot.lane.b32.xlu0 %v1444, 15
        %v1498 = vpop.permute.xlu0 %1497
        %v1499 = vsel %vm604, %v1496, %v1498
        %v1500 = vsel %vm604, %v1498, %v1496
        %v1501 = vld [vmem:[%s607] sm:$0x3]
        %v1503 = vlaneseq
        %v1504 = vshrl.u32 %v1503, 7
        %v1505 = vsub.s32 0, %v1504
        %v1506 = vrot.slane %v1501, %v1505
        %v1507 = vlaneseq
        %v1508 = vshrl.u32 %v1507, 7
        %v1509 = vsub.s32 1, %v1508
        %v1510 = vrot.slane %v1501, %v1509
        %v1513 = vmul.f32 %v1500, %v1506
        %v1514 = vmul.f32 %v1499, %v1510
        %1515 = vst [vmem:[#allocation3 + $0x10] sm:$0xf] %v1513
        %1516 = vst [vmem:[#allocation3 + $0x18] sm:$0xf] %v1514
        %1517 = vrot.lane.b32.xlu0 %v1443, 1
        %v1518 = vpop.permute.xlu0 %1517
        %1519 = vrot.lane.b32.xlu0 %v1444, 1
        %v1520 = vpop.permute.xlu0 %1519
        %v1521 = vsel %vm628, %v1518, %v1520
        %v1522 = vsel %vm628, %v1520, %v1518
        %v1523 = vld [vmem:[%s631] sm:$0x3]
        %v1525 = vlaneseq
        %v1526 = vshrl.u32 %v1525, 7
        %v1527 = vsub.s32 0, %v1526
        %v1528 = vrot.slane %v1523, %v1527
        %v1529 = vlaneseq
        %v1530 = vshrl.u32 %v1529, 7
        %v1531 = vsub.s32 1, %v1530
        %v1532 = vrot.slane %v1523, %v1531
        %v1535 = vmul.f32 %v1522, %v1528
        %v1536 = vmul.f32 %v1521, %v1532
        %v1539 = vrot.slane %v1535, 4
        %v1540 = vrot.slane %v1536, 4
        %1543 = vst [vmem:[#allocation3 + $0x10] sm:$0xf0] %v1539
        %1544 = vst [vmem:[#allocation3 + $0x18] sm:$0xf0] %v1540
        %1545 = vst [vmem:[#allocation3 + $0x20] sm:$0xf] %v1443
        %1546 = vst [vmem:[#allocation3 + $0x28] sm:$0xf] %v1444
        %1547 = vrot.lane.b32.xlu0 %v1443, 127
        %v1548 = vpop.permute.xlu0 %1547
        %1549 = vrot.lane.b32.xlu0 %v1444, 127
        %v1550 = vpop.permute.xlu0 %1549
        %v1551 = vsel %vm660, %v1548, %v1550
        %v1552 = vsel %vm660, %v1550, %v1548
        %v1553 = vld [vmem:[%s663] sm:$0x3]
        %v1555 = vlaneseq
        %v1556 = vshrl.u32 %v1555, 7
        %v1557 = vsub.s32 0, %v1556
        %v1558 = vrot.slane %v1553, %v1557
        %v1559 = vlaneseq
        %v1560 = vshrl.u32 %v1559, 7
        %v1561 = vsub.s32 1, %v1560
        %v1562 = vrot.slane %v1553, %v1561
        %v1565 = vmul.f32 %v1551, %v1558
        %v1566 = vmul.f32 %v1552, %v1562
        %v1569 = vrot.slane %v1565, 4
        %v1570 = vrot.slane %v1566, 4
        %1573 = vst [vmem:[#allocation3 + $0x20] sm:$0xf0] %v1569
        %1574 = vst [vmem:[#allocation3 + $0x28] sm:$0xf0] %v1570
        %1575 = vrot.lane.b32.xlu0 %v1443, 113
        %v1576 = vpop.permute.xlu0 %1575
        %1577 = vrot.lane.b32.xlu0 %v1444, 113
        %v1578 = vpop.permute.xlu0 %1577
        %v1579 = vsel %vm690, %v1576, %v1578
        %v1580 = vsel %vm690, %v1578, %v1576
        %v1581 = vld [vmem:[%s693] sm:$0x3]
        %v1583 = vlaneseq
        %v1584 = vshrl.u32 %v1583, 7
        %v1585 = vsub.s32 0, %v1584
        %v1586 = vrot.slane %v1581, %v1585
        %v1587 = vlaneseq
        %v1588 = vshrl.u32 %v1587, 7
        %v1589 = vsub.s32 1, %v1588
        %v1590 = vrot.slane %v1581, %v1589
        %v1593 = vmul.f32 %v1579, %v1586
        %v1594 = vmul.f32 %v1580, %v1590
        %1595 = vst [vmem:[#allocation3 + $0x30] sm:$0xf] %v1593
        %1596 = vst [vmem:[#allocation3 + $0x38] sm:$0xf] %v1594
        %1597 = vrot.lane.b32.xlu0 %v1443, 112
        %v1598 = vpop.permute.xlu0 %1597
        %1599 = vrot.lane.b32.xlu0 %v1444, 112
        %v1600 = vpop.permute.xlu0 %1599
        %v1601 = vsel %vm714, %v1598, %v1600
        %v1602 = vsel %vm714, %v1600, %v1598
        %v1603 = vld [vmem:[%s717] sm:$0x3]
        %v1605 = vlaneseq
        %v1606 = vshrl.u32 %v1605, 7
        %v1607 = vsub.s32 0, %v1606
        %v1608 = vrot.slane %v1603, %v1607
        %v1609 = vlaneseq
        %v1610 = vshrl.u32 %v1609, 7
        %v1611 = vsub.s32 1, %v1610
        %v1612 = vrot.slane %v1603, %v1611
        %v1615 = vmul.f32 %v1601, %v1608
        %v1616 = vmul.f32 %v1602, %v1612
        %v1619 = vrot.slane %v1615, 4
        %v1620 = vrot.slane %v1616, 4
        %1623 = vst [vmem:[#allocation3 + $0x30] sm:$0xf0] %v1619
        %1624 = vst [vmem:[#allocation3 + $0x38] sm:$0xf0] %v1620
        %1625 = vrot.lane.b32.xlu0 %v1443, 111
        %v1626 = vpop.permute.xlu0 %1625
        %1627 = vrot.lane.b32.xlu0 %v1444, 111
        %v1628 = vpop.permute.xlu0 %1627
        %v1629 = vsel %vm744, %v1626, %v1628
        %v1630 = vsel %vm744, %v1628, %v1626
        %v1631 = vld [vmem:[%s747] sm:$0x3]
        %v1633 = vlaneseq
        %v1634 = vshrl.u32 %v1633, 7
        %v1635 = vsub.s32 0, %v1634
        %v1636 = vrot.slane %v1631, %v1635
        %v1637 = vlaneseq
        %v1638 = vshrl.u32 %v1637, 7
        %v1639 = vsub.s32 1, %v1638
        %v1640 = vrot.slane %v1631, %v1639
        %v1643 = vmul.f32 %v1629, %v1636
        %v1644 = vmul.f32 %v1630, %v1640
        %1645 = vst [vmem:[#allocation3 + $0x40] sm:$0xf] %v1643
        %1646 = vst [vmem:[#allocation3 + $0x48] sm:$0xf] %v1644
        %s1647 = scalar_lea.vmem [#allocation15], 8
        %v1648 = vld [vmem:[%s1647] sm:$0xf]
        %v1649 = vld [vmem:[#allocation3] sm:$0xff]
        %v1650 = vld [vmem:[#allocation3 + $0x8] sm:$0xff]
        %v1651 = vld [vmem:[#allocation3 + $0x10] sm:$0xff]
        %v1652 = vld [vmem:[#allocation3 + $0x18] sm:$0xff]
        %v1653 = vld [vmem:[#allocation3 + $0x20] sm:$0xff]
        %v1654 = vld [vmem:[#allocation3 + $0x28] sm:$0xff]
        %v1655 = vld [vmem:[#allocation3 + $0x30] sm:$0xff]
        %v1656 = vld [vmem:[#allocation3 + $0x38] sm:$0xff]
        %v1657 = vld [vmem:[#allocation3 + $0x40] sm:$0xf]
        %v1658 = vld [vmem:[#allocation3 + $0x48] sm:$0xf]
        %s1659 = scalar_lea.vmem [#allocation16], 8
        %v1660 = vld [vmem:[%s1659] sm:$0xf]
        %1662 = vset.pattern.permute.xlu0 0
        %1663 = vperm.xlu0 %1662, %v1660
        %v1664 = vpop.permute.xlu0 %1663
        %v1667 = vsel %vm781, %v1648, 0
        %v1670 = vsel %vm465, %v1657, 0
        %v1673 = vsel %vm465, %v1658, 0
        %1675 = vmatprep.subr.mxu0 %v1650
        %1676 = vmatpush1.msra.mxu0 %v1649
        %1677 = vmatprep.subr.mxu0 %v1652
        %1678 = vmatpush1.msra.mxu0 %v1651
        %1679 = vmatprep.subr.mxu0 %v1654
        %1680 = vmatpush1.msra.mxu0 %v1653
        %1681 = vmatprep.subr.mxu0 %v1656
        %1682 = vmatpush1.msra.mxu0 %v1655
        %1683 = vmatprep.subr.mxu0 %v1673
        %1684 = vmatpush1.msra.mxu0 %v1670
        %1685 = vmatprep.subr.mxu0 0.0
        %1686 = vmatpush1.msra.mxu0 0.0
        %1687 = vmatprep.subr.mxu0 0.0
        %1688 = vmatpush1.msra.mxu0 0.0
        %1689 = vmatprep.subr.mxu0 0.0
        %1690 = vmatpush1.msra.mxu0 0.0
        %1691 = vmatprep.subr.mxu0 0.0
        %1692 = vmatpush1.msra.mxu0 0.0
        %1693 = vmatprep.subr.mxu0 0.0
        %1694 = vmatpush1.msra.mxu0 0.0
        %1695 = vmatprep.subr.mxu0 0.0
        %1696 = vmatpush1.msra.mxu0 0.0
        %1697 = vmatprep.subr.mxu0 0.0
        %1698 = vmatpush1.msra.mxu0 0.0
        %1699 = vmatprep.subr.mxu0 0.0
        %1700 = vmatpush1.msra.mxu0 0.0
        %1701 = vmatprep.subr.mxu0 0.0
        %1702 = vmatpush1.msra.mxu0 0.0
        %1703 = vmatprep.subr.mxu0 0.0
        %1704 = vmatpush1.msra.mxu0 0.0
        %1705 = vmatprep.subr.mxu0 0.0
        %1706 = vmatpush1.msra.mxu0 0.0
        %1707 = vmatprep.subr.mxu0 0.0
        %1708 = vmatpush1.msra.mxu0 0.0
        %1709 = vmatprep.subr.mxu0 0.0
        %1710 = vmatpush1.msra.mxu0 0.0
        %1711 = vmatprep.subr.mxu0 0.0
        %1712 = vmatpush1.msra.mxu0 0.0
        %1713 = vmatprep.subr.mxu0 0.0
        %1714 = vmatpush1.msra.mxu0 0.0
        %1715 = vmatprep.subr.mxu0 0.0
        %1716 = vmatpush1.msra.mxu0 0.0
        %1717 = vmatprep.subr.mxu0 0.0
        %1718 = vmatpush1.msra.mxu0 0.0
        %1719 = vmatprep.subr.mxu0 0.0
        %1720 = vmatpush1.msra.mxu0 0.0
        %1721 = vmatprep.subr.mxu0 0.0
        %1722 = vmatpush1.msra.mxu0 0.0
        %1723 = vmatprep.subr.mxu0 0.0
        %1724 = vmatpush1.msra.mxu0 0.0
        %1725 = vmatprep.subr.mxu0 0.0
        %1726 = vmatpush1.msra.mxu0 0.0
        %1727 = vmatprep.subr.mxu0 0.0
        %1728 = vmatpush1.msra.mxu0 0.0
        %1729 = vmatprep.subr.mxu0 0.0
        %1730 = vmatpush1.msra.mxu0 0.0
        %1731 = vmatprep.subr.mxu0 0.0
        %1732 = vmatpush1.msra.mxu0 0.0
        %1733 = vmatprep.subr.mxu0 0.0
        %1734 = vmatpush1.msra.mxu0 0.0
        %1735 = vmatprep.subr.mxu0 0.0
        %1736 = vmatpush1.msra.mxu0 0.0
        %1737 = vmatprep.subr.mxu0 0.0
        %1738 = vmatpush1.msra.mxu0 0.0
        %1739 = vmatprep.mubr.f32.mxu0 0.0
        %1740 = vmatmul.mubr.f32.gmra.mrb[0].mxu0 %v1667
        %v1741 = vpop.f32.mrb[0].mxu0
        %v1742 = vadd.f32 %v1664, %v1741
        %v1743 = vpop.f32.mrb[0].mxu0
        %v1744 = vadd.f32 %v1664, %v1743
        %1745 = vdwg.mxu0
        %v1748 = vrot.slane %v1742, 4
        %v1749 = vrot.slane %v1744, 4
        %1752 = vst [vmem:[%s423] sm:$0xf0] %v1748
        %1753 = vst [vmem:[%s423 + $0x8] sm:$0xf0] %v1749
        %v1754 = vld [vmem:[%s423] sm:$0xf0]
        %v1755 = vld [vmem:[%s423 + $0x8] sm:$0xf0]
        %v1758 = vrot.slane %v1754, 4
        %v1759 = vrot.slane %v1755, 4
        %1762 = vst [vmem:[#allocation2] sm:$0xf] %v1758
        %1763 = vst [vmem:[#allocation2 + $0x8] sm:$0xf] %v1759
        %v1764 = vld [vmem:[%s423 + $0x10] sm:$0xf]
        %v1765 = vld [vmem:[%s423 + $0x18] sm:$0xf]
        %v1768 = vrot.slane %v1764, 4
        %v1769 = vrot.slane %v1765, 4
        %1772 = vst [vmem:[#allocation2] sm:$0xf0] %v1768
        %1773 = vst [vmem:[#allocation2 + $0x8] sm:$0xf0] %v1769
        %v1774 = vld [vmem:[%s423 + $0x20] sm:$0xf]
        %v1775 = vld [vmem:[%s423 + $0x28] sm:$0xf]
        %1776 = vst [vmem:[#allocation2 + $0x10] sm:$0xf] %v1774
        %1777 = vst [vmem:[#allocation2 + $0x18] sm:$0xf] %v1775
        %v1778 = vld [vmem:[%s423 + $0x10] sm:$0xf0]
        %v1779 = vld [vmem:[%s423 + $0x18] sm:$0xf0]
        %1780 = vst [vmem:[#allocation2 + $0x10] sm:$0xf0] %v1778
        %1781 = vst [vmem:[#allocation2 + $0x18] sm:$0xf0] %v1779
        %v1782 = vld [vmem:[%s423 + $0x10] sm:$0xf0]
        %v1783 = vld [vmem:[%s423 + $0x18] sm:$0xf0]
        %v1786 = vrot.slane %v1782, 4
        %v1787 = vrot.slane %v1783, 4
        %1790 = vst [vmem:[#allocation2 + $0x20] sm:$0xf] %v1786
        %1791 = vst [vmem:[#allocation2 + $0x28] sm:$0xf] %v1787
        %v1792 = vld [vmem:[%s423 + $0x20] sm:$0xf]
        %v1793 = vld [vmem:[%s423 + $0x28] sm:$0xf]
        %v1796 = vrot.slane %v1792, 4
        %v1797 = vrot.slane %v1793, 4
        %1800 = vst [vmem:[#allocation2 + $0x20] sm:$0xf0] %v1796
        %1801 = vst [vmem:[#allocation2 + $0x28] sm:$0xf0] %v1797
        %v1802 = vld [vmem:[%s423 + $0x10] sm:$0xf0]
        %v1803 = vld [vmem:[%s423 + $0x18] sm:$0xf0]
        %v1806 = vrot.slane %v1802, 4
        %v1807 = vrot.slane %v1803, 4
        %1810 = vst [vmem:[#allocation2 + $0x30] sm:$0xf] %v1806
        %1811 = vst [vmem:[#allocation2 + $0x38] sm:$0xf] %v1807
        %v1812 = vld [vmem:[%s423 + $0x10] sm:$0xf0]
        %v1813 = vld [vmem:[%s423 + $0x18] sm:$0xf0]
        %1814 = vst [vmem:[#allocation2 + $0x30] sm:$0xf0] %v1812
        %1815 = vst [vmem:[#allocation2 + $0x38] sm:$0xf0] %v1813
        %s1816 = scalar_lea.vmem [#allocation9], 96
        %v1817 = vld [vmem:[%s1816] sm:$0xff]
        %v1818 = vld [vmem:[%s1816 + $0x8] sm:$0xff]
        %v1819 = vld [vmem:[%s1816 + $0x10] sm:$0xff]
        %v1820 = vld [vmem:[%s1816 + $0x18] sm:$0xff]
        %s1821 = scalar_lea.vmem [#allocation10], 96
        %v1822 = vld [vmem:[%s1821] sm:$0xff]
        %v1823 = vld [vmem:[%s1821 + $0x8] sm:$0xff]
        %v1824 = vld [vmem:[%s1821 + $0x10] sm:$0xff]
        %v1825 = vld [vmem:[%s1821 + $0x18] sm:$0xff]
        %v1826 = vld [vmem:[#allocation2] sm:$0xff]
        %v1827 = vld [vmem:[#allocation2 + $0x8] sm:$0xff]
        %v1828 = vld [vmem:[#allocation2 + $0x10] sm:$0xff]
        %v1829 = vld [vmem:[#allocation2 + $0x18] sm:$0xff]
        %v1830 = vld [vmem:[#allocation2 + $0x20] sm:$0xff]
        %v1831 = vld [vmem:[#allocation2 + $0x28] sm:$0xff]
        %v1832 = vld [vmem:[#allocation2 + $0x30] sm:$0xff]
        %v1833 = vld [vmem:[#allocation2 + $0x38] sm:$0xff]
        %1835 = vset.pattern.permute.xlu0 0
        %1836 = vperm.xlu0 %1835, %v1817
        %v1837 = vpop.permute.xlu0 %1836
        %1840 = vset.pattern.permute.xlu0 0
        %1841 = vperm.xlu0 %1840, %v1818
        %v1842 = vpop.permute.xlu0 %1841
        %1845 = vset.pattern.permute.xlu0 0
        %1846 = vperm.xlu0 %1845, %v1819
        %v1847 = vpop.permute.xlu0 %1846
        %1850 = vset.pattern.permute.xlu0 0
        %1851 = vperm.xlu0 %1850, %v1820
        %v1852 = vpop.permute.xlu0 %1851
        %v1854 = vmul.f32 %v1826, %v1837
        %v1855 = vmul.f32 %v1827, %v1837
        %v1856 = vmul.f32 %v1828, %v1842
        %v1857 = vmul.f32 %v1829, %v1842
        %v1858 = vmul.f32 %v1830, %v1847
        %v1859 = vmul.f32 %v1831, %v1847
        %v1860 = vmul.f32 %v1832, %v1852
        %v1861 = vmul.f32 %v1833, %v1852
        %1863 = vset.pattern.permute.xlu0 0
        %1864 = vperm.xlu0 %1863, %v1822
        %v1865 = vpop.permute.xlu0 %1864
        %1868 = vset.pattern.permute.xlu0 0
        %1869 = vperm.xlu0 %1868, %v1823
        %v1870 = vpop.permute.xlu0 %1869
        %1873 = vset.pattern.permute.xlu0 0
        %1874 = vperm.xlu0 %1873, %v1824
        %v1875 = vpop.permute.xlu0 %1874
        %1878 = vset.pattern.permute.xlu0 0
        %1879 = vperm.xlu0 %1878, %v1825
        %v1880 = vpop.permute.xlu0 %1879
        %v1882 = vadd.f32 %v1854, %v1865
        %v1883 = vadd.f32 %v1855, %v1865
        %v1884 = vadd.f32 %v1856, %v1870
        %v1885 = vadd.f32 %v1857, %v1870
        %v1886 = vadd.f32 %v1858, %v1875
        %v1887 = vadd.f32 %v1859, %v1875
        %v1888 = vadd.f32 %v1860, %v1880
        %v1889 = vadd.f32 %v1861, %v1880
        %v1890 = vmax.f32 %v1882, 0.0
        %v1891 = vmax.f32 %v1883, 0.0
        %v1892 = vmax.f32 %v1884, 0.0
        %v1893 = vmax.f32 %v1885, 0.0
        %v1894 = vmax.f32 %v1886, 0.0
        %v1895 = vmax.f32 %v1887, 0.0
        %v1896 = vmax.f32 %v1888, 0.0
        %v1897 = vmax.f32 %v1889, 0.0
        %s1898 = scalar_lea.vmem [#allocation12], 12
        %v1899 = vld [vmem:[%s1898] sm:$0xf]
        %s1900 = scalar_lea.vmem [#allocation13], 12
        %v1901 = vld [vmem:[%s1900] sm:$0xf]
        %1903 = vset.pattern.permute.xlu0 0
        %1904 = vperm.xlu0 %1903, %v1901
        %v1905 = vpop.permute.xlu0 %1904
        %vm1907 = vcmask 261120
        %v1909 = vsel %vm1907, %v1899, 0
        %1911 = vmatprep.subr.mxu0 %v1891
        %1912 = vmatpush1.msra.mxu0 %v1890
        %1913 = vmatprep.subr.mxu0 %v1893
        %1914 = vmatpush1.msra.mxu0 %v1892
        %1915 = vmatprep.subr.mxu0 %v1895
        %1916 = vmatpush1.msra.mxu0 %v1894
        %1917 = vmatprep.subr.mxu0 %v1897
        %1918 = vmatpush1.msra.mxu0 %v1896
        %1919 = vmatprep.subr.mxu0 0.0
        %1920 = vmatpush1.msra.mxu0 0.0
        %1921 = vmatprep.subr.mxu0 0.0
        %1922 = vmatpush1.msra.mxu0 0.0
        %1923 = vmatprep.subr.mxu0 0.0
        %1924 = vmatpush1.msra.mxu0 0.0
        %1925 = vmatprep.subr.mxu0 0.0
        %1926 = vmatpush1.msra.mxu0 0.0
        %1927 = vmatprep.subr.mxu0 0.0
        %1928 = vmatpush1.msra.mxu0 0.0
        %1929 = vmatprep.subr.mxu0 0.0
        %1930 = vmatpush1.msra.mxu0 0.0
        %1931 = vmatprep.subr.mxu0 0.0
        %1932 = vmatpush1.msra.mxu0 0.0
        %1933 = vmatprep.subr.mxu0 0.0
        %1934 = vmatpush1.msra.mxu0 0.0
        %1935 = vmatprep.subr.mxu0 0.0
        %1936 = vmatpush1.msra.mxu0 0.0
        %1937 = vmatprep.subr.mxu0 0.0
        %1938 = vmatpush1.msra.mxu0 0.0
        %1939 = vmatprep.subr.mxu0 0.0
        %1940 = vmatpush1.msra.mxu0 0.0
        %1941 = vmatprep.subr.mxu0 0.0
        %1942 = vmatpush1.msra.mxu0 0.0
        %1943 = vmatprep.subr.mxu0 0.0
        %1944 = vmatpush1.msra.mxu0 0.0
        %1945 = vmatprep.subr.mxu0 0.0
        %1946 = vmatpush1.msra.mxu0 0.0
        %1947 = vmatprep.subr.mxu0 0.0
        %1948 = vmatpush1.msra.mxu0 0.0
        %1949 = vmatprep.subr.mxu0 0.0
        %1950 = vmatpush1.msra.mxu0 0.0
        %1951 = vmatprep.subr.mxu0 0.0
        %1952 = vmatpush1.msra.mxu0 0.0
        %1953 = vmatprep.subr.mxu0 0.0
        %1954 = vmatpush1.msra.mxu0 0.0
        %1955 = vmatprep.subr.mxu0 0.0
        %1956 = vmatpush1.msra.mxu0 0.0
        %1957 = vmatprep.subr.mxu0 0.0
        %1958 = vmatpush1.msra.mxu0 0.0
        %1959 = vmatprep.subr.mxu0 0.0
        %1960 = vmatpush1.msra.mxu0 0.0
        %1961 = vmatprep.subr.mxu0 0.0
        %1962 = vmatpush1.msra.mxu0 0.0
        %1963 = vmatprep.subr.mxu0 0.0
        %1964 = vmatpush1.msra.mxu0 0.0
        %1965 = vmatprep.subr.mxu0 0.0
        %1966 = vmatpush1.msra.mxu0 0.0
        %1967 = vmatprep.subr.mxu0 0.0
        %1968 = vmatpush1.msra.mxu0 0.0
        %1969 = vmatprep.subr.mxu0 0.0
        %1970 = vmatpush1.msra.mxu0 0.0
        %1971 = vmatprep.subr.mxu0 0.0
        %1972 = vmatpush1.msra.mxu0 0.0
        %1973 = vmatprep.subr.mxu0 0.0
        %1974 = vmatpush1.msra.mxu0 0.0
        %1975 = vmatprep.mubr.f32.mxu0 0.0
        %1976 = vmatmul.mubr.f32.gmra.mrb[0].mxu0 %v1909
        %v1977 = vpop.f32.mrb[0].mxu0
        %v1978 = vadd.f32 %v1905, %v1977
        %v1979 = vpop.f32.mrb[0].mxu0
        %v1980 = vadd.f32 %v1905, %v1979
        %1981 = vdwg.mxu0
        %v1982 = vmax.f32 %v1978, 0.0
        %v1983 = vmax.f32 %v1980, 0.0
        %1984 = vrot.lane.b32.xlu0 %v1982, 17
        %v1985 = vpop.permute.xlu0 %1984
        %1986 = vrot.lane.b32.xlu0 %v1983, 17
        %v1987 = vpop.permute.xlu0 %1986
        %v1988 = vsel %vm551, %v1985, %v1987
        %v1989 = vsel %vm551, %v1987, %v1985
        %v1990 = vld [vmem:[#allocation7] sm:$0x3]
        %v1992 = vlaneseq
        %v1993 = vshrl.u32 %v1992, 7
        %v1994 = vsub.s32 0, %v1993
        %v1995 = vrot.slane %v1990, %v1994
        %v1996 = vlaneseq
        %v1997 = vshrl.u32 %v1996, 7
        %v1998 = vsub.s32 1, %v1997
        %v1999 = vrot.slane %v1990, %v1998
        %v2002 = vmul.f32 %v1989, %v1995
        %v2003 = vmul.f32 %v1988, %v1999
        %2004 = vst [vmem:[#allocation3] sm:$0xf] %v2002
        %2005 = vst [vmem:[#allocation3 + $0x8] sm:$0xf] %v2003
        %2006 = vrot.lane.b32.xlu0 %v1982, 16
        %v2007 = vpop.permute.xlu0 %2006
        %2008 = vrot.lane.b32.xlu0 %v1983, 16
        %v2009 = vpop.permute.xlu0 %2008
        %v2010 = vsel %vm574, %v2007, %v2009
        %v2011 = vsel %vm574, %v2009, %v2007
        %v2012 = vld [vmem:[%s577] sm:$0x3]
        %v2014 = vlaneseq
        %v2015 = vshrl.u32 %v2014, 7
        %v2016 = vsub.s32 0, %v2015
        %v2017 = vrot.slane %v2012, %v2016
        %v2018 = vlaneseq
        %v2019 = vshrl.u32 %v2018, 7
        %v2020 = vsub.s32 1, %v2019
        %v2021 = vrot.slane %v2012, %v2020
        %v2024 = vmul.f32 %v2011, %v2017
        %v2025 = vmul.f32 %v2010, %v2021
        %v2028 = vrot.slane %v2024, 4
        %v2029 = vrot.slane %v2025, 4
        %2032 = vst [vmem:[#allocation3] sm:$0xf0] %v2028
        %2033 = vst [vmem:[#allocation3 + $0x8] sm:$0xf0] %v2029
        %2034 = vrot.lane.b32.xlu0 %v1982, 15
        %v2035 = vpop.permute.xlu0 %2034
        %2036 = vrot.lane.b32.xlu0 %v1983, 15
        %v2037 = vpop.permute.xlu0 %2036
        %v2038 = vsel %vm604, %v2035, %v2037
        %v2039 = vsel %vm604, %v2037, %v2035
        %v2040 = vld [vmem:[%s607] sm:$0x3]
        %v2042 = vlaneseq
        %v2043 = vshrl.u32 %v2042, 7
        %v2044 = vsub.s32 0, %v2043
        %v2045 = vrot.slane %v2040, %v2044
        %v2046 = vlaneseq
        %v2047 = vshrl.u32 %v2046, 7
        %v2048 = vsub.s32 1, %v2047
        %v2049 = vrot.slane %v2040, %v2048
        %v2052 = vmul.f32 %v2039, %v2045
        %v2053 = vmul.f32 %v2038, %v2049
        %2054 = vst [vmem:[#allocation3 + $0x10] sm:$0xf] %v2052
        %2055 = vst [vmem:[#allocation3 + $0x18] sm:$0xf] %v2053
        %2056 = vrot.lane.b32.xlu0 %v1982, 1
        %v2057 = vpop.permute.xlu0 %2056
        %2058 = vrot.lane.b32.xlu0 %v1983, 1
        %v2059 = vpop.permute.xlu0 %2058
        %v2060 = vsel %vm628, %v2057, %v2059
        %v2061 = vsel %vm628, %v2059, %v2057
        %v2062 = vld [vmem:[%s631] sm:$0x3]
        %v2064 = vlaneseq
        %v2065 = vshrl.u32 %v2064, 7
        %v2066 = vsub.s32 0, %v2065
        %v2067 = vrot.slane %v2062, %v2066
        %v2068 = vlaneseq
        %v2069 = vshrl.u32 %v2068, 7
        %v2070 = vsub.s32 1, %v2069
        %v2071 = vrot.slane %v2062, %v2070
        %v2074 = vmul.f32 %v2061, %v2067
        %v2075 = vmul.f32 %v2060, %v2071
        %v2078 = vrot.slane %v2074, 4
        %v2079 = vrot.slane %v2075, 4
        %2082 = vst [vmem:[#allocation3 + $0x10] sm:$0xf0] %v2078
        %2083 = vst [vmem:[#allocation3 + $0x18] sm:$0xf0] %v2079
        %2084 = vst [vmem:[#allocation3 + $0x20] sm:$0xf] %v1982
        %2085 = vst [vmem:[#allocation3 + $0x28] sm:$0xf] %v1983
        %2086 = vrot.lane.b32.xlu0 %v1982, 127
        %v2087 = vpop.permute.xlu0 %2086
        %2088 = vrot.lane.b32.xlu0 %v1983, 127
        %v2089 = vpop.permute.xlu0 %2088
        %v2090 = vsel %vm660, %v2087, %v2089
        %v2091 = vsel %vm660, %v2089, %v2087
        %v2092 = vld [vmem:[%s663] sm:$0x3]
        %v2094 = vlaneseq
        %v2095 = vshrl.u32 %v2094, 7
        %v2096 = vsub.s32 0, %v2095
        %v2097 = vrot.slane %v2092, %v2096
        %v2098 = vlaneseq
        %v2099 = vshrl.u32 %v2098, 7
        %v2100 = vsub.s32 1, %v2099
        %v2101 = vrot.slane %v2092, %v2100
        %v2104 = vmul.f32 %v2090, %v2097
        %v2105 = vmul.f32 %v2091, %v2101
        %v2108 = vrot.slane %v2104, 4
        %v2109 = vrot.slane %v2105, 4
        %2112 = vst [vmem:[#allocation3 + $0x20] sm:$0xf0] %v2108
        %2113 = vst [vmem:[#allocation3 + $0x28] sm:$0xf0] %v2109
        %2114 = vrot.lane.b32.xlu0 %v1982, 113
        %v2115 = vpop.permute.xlu0 %2114
        %2116 = vrot.lane.b32.xlu0 %v1983, 113
        %v2117 = vpop.permute.xlu0 %2116
        %v2118 = vsel %vm690, %v2115, %v2117
        %v2119 = vsel %vm690, %v2117, %v2115
        %v2120 = vld [vmem:[%s693] sm:$0x3]
        %v2122 = vlaneseq
        %v2123 = vshrl.u32 %v2122, 7
        %v2124 = vsub.s32 0, %v2123
        %v2125 = vrot.slane %v2120, %v2124
        %v2126 = vlaneseq
        %v2127 = vshrl.u32 %v2126, 7
        %v2128 = vsub.s32 1, %v2127
        %v2129 = vrot.slane %v2120, %v2128
        %v2132 = vmul.f32 %v2118, %v2125
        %v2133 = vmul.f32 %v2119, %v2129
        %2134 = vst [vmem:[#allocation3 + $0x30] sm:$0xf] %v2132
        %2135 = vst [vmem:[#allocation3 + $0x38] sm:$0xf] %v2133
        %2136 = vrot.lane.b32.xlu0 %v1982, 112
        %v2137 = vpop.permute.xlu0 %2136
        %2138 = vrot.lane.b32.xlu0 %v1983, 112
        %v2139 = vpop.permute.xlu0 %2138
        %v2140 = vsel %vm714, %v2137, %v2139
        %v2141 = vsel %vm714, %v2139, %v2137
        %v2142 = vld [vmem:[%s717] sm:$0x3]
        %v2144 = vlaneseq
        %v2145 = vshrl.u32 %v2144, 7
        %v2146 = vsub.s32 0, %v2145
        %v2147 = vrot.slane %v2142, %v2146
        %v2148 = vlaneseq
        %v2149 = vshrl.u32 %v2148, 7
        %v2150 = vsub.s32 1, %v2149
        %v2151 = vrot.slane %v2142, %v2150
        %v2154 = vmul.f32 %v2140, %v2147
        %v2155 = vmul.f32 %v2141, %v2151
        %v2158 = vrot.slane %v2154, 4
        %v2159 = vrot.slane %v2155, 4
        %2162 = vst [vmem:[#allocation3 + $0x30] sm:$0xf0] %v2158
        %2163 = vst [vmem:[#allocation3 + $0x38] sm:$0xf0] %v2159
        %2164 = vrot.lane.b32.xlu0 %v1982, 111
        %v2165 = vpop.permute.xlu0 %2164
        %2166 = vrot.lane.b32.xlu0 %v1983, 111
        %v2167 = vpop.permute.xlu0 %2166
        %v2168 = vsel %vm744, %v2165, %v2167
        %v2169 = vsel %vm744, %v2167, %v2165
        %v2170 = vld [vmem:[%s747] sm:$0x3]
        %v2172 = vlaneseq
        %v2173 = vshrl.u32 %v2172, 7
        %v2174 = vsub.s32 0, %v2173
        %v2175 = vrot.slane %v2170, %v2174
        %v2176 = vlaneseq
        %v2177 = vshrl.u32 %v2176, 7
        %v2178 = vsub.s32 1, %v2177
        %v2179 = vrot.slane %v2170, %v2178
        %v2182 = vmul.f32 %v2168, %v2175
        %v2183 = vmul.f32 %v2169, %v2179
        %2184 = vst [vmem:[#allocation3 + $0x40] sm:$0xf] %v2182
        %2185 = vst [vmem:[#allocation3 + $0x48] sm:$0xf] %v2183
        %s2186 = scalar_lea.vmem [#allocation15], 12
        %v2187 = vld [vmem:[%s2186] sm:$0xf]
        %v2188 = vld [vmem:[#allocation3] sm:$0xff]
        %v2189 = vld [vmem:[#allocation3 + $0x8] sm:$0xff]
        %v2190 = vld [vmem:[#allocation3 + $0x10] sm:$0xff]
        %v2191 = vld [vmem:[#allocation3 + $0x18] sm:$0xff]
        %v2192 = vld [vmem:[#allocation3 + $0x20] sm:$0xff]
        %v2193 = vld [vmem:[#allocation3 + $0x28] sm:$0xff]
        %v2194 = vld [vmem:[#allocation3 + $0x30] sm:$0xff]
        %v2195 = vld [vmem:[#allocation3 + $0x38] sm:$0xff]
        %v2196 = vld [vmem:[#allocation3 + $0x40] sm:$0xf]
        %v2197 = vld [vmem:[#allocation3 + $0x48] sm:$0xf]
        %s2198 = scalar_lea.vmem [#allocation16], 12
        %v2199 = vld [vmem:[%s2198] sm:$0xf]
        %2201 = vset.pattern.permute.xlu0 0
        %2202 = vperm.xlu0 %2201, %v2199
        %v2203 = vpop.permute.xlu0 %2202
        %v2206 = vsel %vm781, %v2187, 0
        %v2209 = vsel %vm465, %v2196, 0
        %v2212 = vsel %vm465, %v2197, 0
        %2214 = vmatprep.subr.mxu0 %v2189
        %2215 = vmatpush1.msra.mxu0 %v2188
        %2216 = vmatprep.subr.mxu0 %v2191
        %2217 = vmatpush1.msra.mxu0 %v2190
        %2218 = vmatprep.subr.mxu0 %v2193
        %2219 = vmatpush1.msra.mxu0 %v2192
        %2220 = vmatprep.subr.mxu0 %v2195
        %2221 = vmatpush1.msra.mxu0 %v2194
        %2222 = vmatprep.subr.mxu0 %v2212
        %2223 = vmatpush1.msra.mxu0 %v2209
        %2224 = vmatprep.subr.mxu0 0.0
        %2225 = vmatpush1.msra.mxu0 0.0
        %2226 = vmatprep.subr.mxu0 0.0
        %2227 = vmatpush1.msra.mxu0 0.0
        %2228 = vmatprep.subr.mxu0 0.0
        %2229 = vmatpush1.msra.mxu0 0.0
        %2230 = vmatprep.subr.mxu0 0.0
        %2231 = vmatpush1.msra.mxu0 0.0
        %2232 = vmatprep.subr.mxu0 0.0
        %2233 = vmatpush1.msra.mxu0 0.0
        %2234 = vmatprep.subr.mxu0 0.0
        %2235 = vmatpush1.msra.mxu0 0.0
        %2236 = vmatprep.subr.mxu0 0.0
        %2237 = vmatpush1.msra.mxu0 0.0
        %2238 = vmatprep.subr.mxu0 0.0
        %2239 = vmatpush1.msra.mxu0 0.0
        %2240 = vmatprep.subr.mxu0 0.0
        %2241 = vmatpush1.msra.mxu0 0.0
        %2242 = vmatprep.subr.mxu0 0.0
        %2243 = vmatpush1.msra.mxu0 0.0
        %2244 = vmatprep.subr.mxu0 0.0
        %2245 = vmatpush1.msra.mxu0 0.0
        %2246 = vmatprep.subr.mxu0 0.0
        %2247 = vmatpush1.msra.mxu0 0.0
        %2248 = vmatprep.subr.mxu0 0.0
        %2249 = vmatpush1.msra.mxu0 0.0
        %2250 = vmatprep.subr.mxu0 0.0
        %2251 = vmatpush1.msra.mxu0 0.0
        %2252 = vmatprep.subr.mxu0 0.0
        %2253 = vmatpush1.msra.mxu0 0.0
        %2254 = vmatprep.subr.mxu0 0.0
        %2255 = vmatpush1.msra.mxu0 0.0
        %2256 = vmatprep.subr.mxu0 0.0
        %2257 = vmatpush1.msra.mxu0 0.0
        %2258 = vmatprep.subr.mxu0 0.0
        %2259 = vmatpush1.msra.mxu0 0.0
        %2260 = vmatprep.subr.mxu0 0.0
        %2261 = vmatpush1.msra.mxu0 0.0
        %2262 = vmatprep.subr.mxu0 0.0
        %2263 = vmatpush1.msra.mxu0 0.0
        %2264 = vmatprep.subr.mxu0 0.0
        %2265 = vmatpush1.msra.mxu0 0.0
        %2266 = vmatprep.subr.mxu0 0.0
        %2267 = vmatpush1.msra.mxu0 0.0
        %2268 = vmatprep.subr.mxu0 0.0
        %2269 = vmatpush1.msra.mxu0 0.0
        %2270 = vmatprep.subr.mxu0 0.0
        %2271 = vmatpush1.msra.mxu0 0.0
        %2272 = vmatprep.subr.mxu0 0.0
        %2273 = vmatpush1.msra.mxu0 0.0
        %2274 = vmatprep.subr.mxu0 0.0
        %2275 = vmatpush1.msra.mxu0 0.0
        %2276 = vmatprep.subr.mxu0 0.0
        %2277 = vmatpush1.msra.mxu0 0.0
        %2278 = vmatprep.mubr.f32.mxu0 0.0
        %2279 = vmatmul.mubr.f32.gmra.mrb[0].mxu0 %v2206
        %v2280 = vpop.f32.mrb[0].mxu0
        %v2281 = vadd.f32 %v2203, %v2280
        %v2282 = vpop.f32.mrb[0].mxu0
        %v2283 = vadd.f32 %v2203, %v2282
        %2284 = vdwg.mxu0
        %2285 = vst [vmem:[%s423] sm:$0xf] %v2281
        %2286 = vst [vmem:[%s423 + $0x8] sm:$0xf] %v2283
        %s2287 = sand.u32 %s210, 1
        %s2288 = scalar_lea.sflag [#allocation6], %s2287
        %s2289 = sand.u32 %s210, 1
        %s2290 = smul.addr %s2289, 48
        %s2291 = scalar_lea.vmem [#allocation18], %s2290
        // Predicated region
        $region85: #{dense_block_forward.1} parent=51 // pred_check
          %p2292 = pneg %p220
        $region86: #{dense_block_forward.1} parent=51 // pred_check_branch
          %2294 = sbr.rel (%p2292) target = $region88
        $region87: #{dense_block_forward.1} parent=51 // pred_region
          %s2296 = ssub.s32 768, 768
          %2297 = vsyncadd %s2288, %s2296
          %s2298 = smul.addr %s29, 6
          %s2299 = smul.addr %s2298, 128
          %s2300 = scalar_lea.hbm %s8, %s2299
          %s2301 = sshll.u32 %s2291, 4
          %s2302 = int_to_ptr.vmem [resolvable:$true] %s2301
          %2307 = dma.vmem_to_hbm [thread:$0]  %s2302, 768, %s2300, %s2288, 256, 256, 16
        $region88: #{dense_block_forward.1} parent=51 // pred_fallthru
          _
      $region52: #{dense_block_forward.1} parent=5 // pred_fallthru
        _
      %p2308 = scmp.le.s32.totalorder 2, %s24
      // Predicated region
      $region89: #{dense_block_forward.1} parent=5 // pred_check
        %p2309 = pneg %p2308
      $region90: #{dense_block_forward.1} parent=5 // pred_check_branch
        %2311 = sbr.rel (%p2309) target = $region92
      $region91: #{dense_block_forward.1} parent=5 // pred_region
        %s2312 = ssub.s32 %s24, 2
        // Predicated region
        $region93: #{dense_block_forward.1} parent=91 // pred_check
          %p2313 = pneg %p226
        $region94: #{dense_block_forward.1} parent=91 // pred_check_branch
          %2315 = sbr.rel (%p2313) target = $region96
        $region95: #{dense_block_forward.1} parent=91 // pred_region
          %s2316 = sand.u32 %s211, 1
          %s2317 = scalar_lea.sflag [#allocation6], %s2316
          %s2318 = sand.u32 %s211, 1
          %s2319 = smul.addr %s2318, 48
          %s2320 = scalar_lea.vmem [#allocation18], %s2319
          %2321 = dma.done %s2317, 768
        $region96: #{dense_block_forward.1} parent=91 // pred_fallthru
          _
      $region92: #{dense_block_forward.1} parent=5 // pred_fallthru
        _
    $region6: #{dense_block_forward.1} parent=1 // loop_footer
      %s28 = sadd.s32 1, %s24
    $region7: #{dense_block_forward.1} parent=1 // loop_footer_branch
      %23 = sbr.rel target = $region3
    $region8: #{dense_block_forward.1} parent=1 // loop_exit
      _
    %2322 = vsyncpa [#allocation5], 1
    %s2323 = scalar_lea.sflag [#allocation5], 1
    %2324 = vsyncpa %s2323, 1
    %2325 = vsyncpa [#allocation8], 1
    %2326 = vsyncpa [#allocation11], 1
    %2327 = vsyncpa [#allocation14], 1
    %2328 = vsyncpa [#allocation17], 1
    %2329 = vsyncpa [#allocation6], 1
    %s2330 = scalar_lea.sflag [#allocation6], 1
    %2331 = vsyncpa %s2330, 1

</llo_original>
